<compile_context>
chip_gen: v7x
topology: tpu7x:2x2x1
jax: 0.10.0
libtpu: 0.0.40
codegen_flags: <defaults>
</compile_context>

<pallas_src>
from functools import partial

import jax
import jax.numpy as jnp
from jax import lax
from jax.experimental import pallas as pl
from jax.experimental.pallas import tpu as pltpu


# ----------------------------------------------------------------------------
# Kernel: single bf16 activation stream -> 5 matmuls (layer0 + hidden + output).
# ----------------------------------------------------------------------------
def _make_kernel(n_hidden):
    def kernel(x_ref, w0_ref, ball_ref, whid_ref, wout_ref, bout_ref, o_ref):
        # ---- layer 0: ONE matmul over the lane-dense 48-wide bf16 activation.
        h = jnp.dot(x_ref[...], w0_ref[...], preferred_element_type=jnp.float32)
        h = jnp.maximum(h + ball_ref[0:1, :], 0.0)

        # ---- hidden layers (ReLU); bf16 matmul operands, f32 accumulate/elementwise.
        for j in range(n_hidden):                                  # static unroll
            h = jnp.dot(h.astype(jnp.bfloat16), whid_ref[j],
                        preferred_element_type=jnp.float32)
            h = jnp.maximum(h + ball_ref[j + 1:j + 2, :], 0.0)

        # ---- output layer (lane-padded to 128) + sigmoid (squeeze_out=True);
        #      stored as bf16 to halve writeback.
        y = jnp.dot(h.astype(jnp.bfloat16), wout_ref[...],
                    preferred_element_type=jnp.float32)
        o_ref[...] = jax.nn.sigmoid(y + bout_ref[...]).astype(o_ref.dtype)

    return kernel


# ----------------------------------------------------------------------------
# One-time parameter packing (hoisted out of the per-call path, per review).
# ----------------------------------------------------------------------------
def pack_refract_params(params, *, d_out_pad=128):
    """Pack (w, b) pairs into MXU-friendly resident arrays. Call once at init.

    weight_norm at init is an identity reparametrization (g = ||v|| row-wise), so
    the effective forward weight equals the freshly initialized weight. For trained
    checkpoints reconstruct w = g * v / ||v|| before calling this.
    """
    n_hidden = len(params) - 2
    assert n_hidden >= 1, "expected at least 3 linear layers"
    d_hidden = params[0][0].shape[1]
    d_out = params[-1][0].shape[1]
    assert d_out <= d_out_pad

    w0 = jnp.asarray(params[0][0], jnp.float32)
    d_act = w0.shape[0]
    d_act_pad = ((d_act + 7) // 8) * 8                      # 43 -> 48 lanes
    w0p = (jnp.zeros((d_act_pad, d_hidden), jnp.float32)
           .at[:d_act].set(w0).astype(jnp.bfloat16))

    w_hid = jnp.stack([jnp.asarray(w, jnp.float32)
                       for w, _ in params[1:-1]]).astype(jnp.bfloat16)
    b_all = jnp.concatenate([jnp.asarray(b, jnp.float32).reshape(1, -1)
                             for _, b in params[:-1]], axis=0)

    w_out = (jnp.zeros((d_hidden, d_out_pad), jnp.float32)
             .at[:, :d_out].set(jnp.asarray(params[-1][0], jnp.float32))
             .astype(jnp.bfloat16))
    b_out = (jnp.zeros((1, d_out_pad), jnp.float32)
             .at[:, :d_out].set(jnp.asarray(params[-1][1], jnp.float32).reshape(1, -1)))

    return {"w0": w0p, "b_all": b_all, "w_hid": w_hid, "w_out": w_out, "b_out": b_out}


def _choose_tile_n(n, *, max_tile=4096, target_grid=2):
    # Grid of ~2 keeps both v7x TensorCores busy under "parallel" semantics while
    # costing v5e/v6e only one extra ~0.35us pipeline step; cap tiles at 4096 rows
    # for large N (review's 2048-4096 sweet spot). Multiple of 16 for bf16 sublanes.
    tile = -(-n // target_grid)
    tile = -(-tile // 16) * 16
    return max(16, min(tile, max_tile))


# ----------------------------------------------------------------------------
# NeRF view encoding (pure JAX, fused into one small pre-encode pass under jit).
# TODO(synk): exact NeRFEncoding variant (2*pi input scaling / sin-cos interleave /
# include_input position) is not given in the reference source; grouped sin bands,
# then cos bands, then raw dirs are used here (w0 rows packed consistently).
# ----------------------------------------------------------------------------
def nerf_encode(points, freqs):
    parts = ([jnp.sin(points * f) for f in freqs] +
             [jnp.cos(points * f) for f in freqs] + [points])
    return jnp.concatenate(parts, axis=-1)


# ----------------------------------------------------------------------------
# Forward wrapper: pre-encode + single pallas_call.
# ----------------------------------------------------------------------------
@partial(jax.jit, static_argnames=("multi_res", "d_out", "tile_n"))
def refract_network_forward(points, feature_vectors, packed, *,
                            multi_res=4, d_out=3, tile_n=None):
    """points: [N, 3], feature_vectors: [N, d_feature] -> [N, d_out] (f32)."""
    n, d_in = points.shape
    assert d_in == 3
    d_feature = feature_vectors.shape[1]
    freqs = tuple(2.0 ** k for k in range(multi_res))

    d_act = 3 * (2 * multi_res + 1) + d_feature
    d_act_pad = packed["w0"].shape[0]
    assert d_act_pad == ((d_act + 7) // 8) * 8, "packed params / config mismatch"
    n_hidden = packed["w_hid"].shape[0]
    d_out_pad = packed["w_out"].shape[1]

    if tile_n is None:
        tile_n = _choose_tile_n(n)
    assert tile_n % 16 == 0, "tile_n must be a multiple of 16 (bf16 sublane packing)"
    n_pad = pl.cdiv(n, tile_n) * tile_n

    # --- fused pre-encode pass (one XLA fusion): encoding + feature concat + bf16
    #     cast + row/lane padding -> single lane-dense [n_pad, 48] bf16 input stream.
    enc = nerf_encode(points.astype(jnp.float32), freqs)                  # [n, 27]
    x = jnp.concatenate([enc, feature_vectors.astype(jnp.float32)], -1)   # [n, 43]
    x = jnp.pad(x.astype(jnp.bfloat16),
                ((0, n_pad - n), (0, d_act_pad - d_act)))                 # [n_pad, 48]

    const2 = lambda i: (0, 0)                       # params resident across grid steps
    const3 = lambda i: (0, 0, 0)

    out = pl.pallas_call(
        _make_kernel(n_hidden),
        out_shape=jax.ShapeDtypeStruct((n_pad, d_out_pad), jnp.bfloat16),
        grid_spec=pltpu.PrefetchScalarGridSpec(
            num_scalar_prefetch=0,
            grid=(n_pad // tile_n,),
            in_specs=[
                pl.BlockSpec((tile_n, d_act_pad), lambda i: (i, 0)),
                pl.BlockSpec(packed["w0"].shape, const2),
                pl.BlockSpec(packed["b_all"].shape, const2),
                pl.BlockSpec(packed["w_hid"].shape, const3),
                pl.BlockSpec(packed["w_out"].shape, const2),
                pl.BlockSpec(packed["b_out"].shape, const2),
            ],
            out_specs=pl.BlockSpec((tile_n, d_out_pad), lambda i: (i, 0)),
        ),
        compiler_params=pltpu.CompilerParams(
            dimension_semantics=("parallel",)),
    )(x, packed["w0"], packed["b_all"], packed["w_hid"],
      packed["w_out"], packed["b_out"])

    return out[:n, :d_out].astype(jnp.float32)


# ----------------------------------------------------------------------------
# Deterministic parameter init (PyTorch nn.Linear: U(-1/sqrt(fan_in), 1/sqrt(fan_in))).
# ----------------------------------------------------------------------------
def init_params(key, dims):
    params = []
    for i in range(len(dims) - 1):
        fan_in, fan_out = dims[i], dims[i + 1]
        key, kw, kb = jax.random.split(key, 3)
        bound = 1.0 / jnp.sqrt(jnp.float32(fan_in))
        w = jax.random.uniform(kw, (fan_in, fan_out), jnp.float32, -bound, bound)
        b = jax.random.uniform(kb, (1, fan_out), jnp.float32, -bound, bound)
        params.append((w, b))
    return params


# ----------------------------------------------------------------------------
# Pure-JAX references (same encoding ordering as the packed weights).
# ----------------------------------------------------------------------------
def reference_forward_f32(points, feature_vectors, params, freqs):
    x = jnp.concatenate([nerf_encode(points, freqs), feature_vectors], axis=-1)
    for i, (w, b) in enumerate(params):
        x = jnp.dot(x, w, precision=lax.Precision.HIGHEST) + b
        if i < len(params) - 1:
            x = jnp.maximum(x, 0.0)
    return jax.nn.sigmoid(x)


def reference_forward_bf16(points, feature_vectors, params, freqs):
    # Matches the kernel's precision: bf16 matmul operands, f32 accumulation.
    x = jnp.concatenate([nerf_encode(points, freqs), feature_vectors], axis=-1)
    for i, (w, b) in enumerate(params):
        x = jnp.dot(x.astype(jnp.bfloat16), w.astype(jnp.bfloat16),
                    preferred_element_type=jnp.float32) + b
        if i < len(params) - 1:
            x = jnp.maximum(x, 0.0)
    return jax.nn.sigmoid(x)


if __name__ == "__main__":
    # Small config consistent with the module:
    #   d_in=3 (view dirs), d_feature=16, d_out=3, d_hidden=32, n_layers=4, multi_res=4
    # N=2000 exercises padding (padded to 2016 -> grid of 2, tile_n=1008).
    N, d_in, d_feature, d_out = 2000, 3, 16, 3
    d_hidden, n_layers, multi_res = 32, 4, 4

    embed_out_dim = d_in + 2 * d_in * multi_res                      # 27
    dims = [d_in + d_feature + (embed_out_dim - d_in)] \
        + [d_hidden] * n_layers + [d_out]                            # [43,32,32,32,32,3]

    key = jax.random.PRNGKey(0)
    kp, kf, kparam = jax.random.split(key, 3)
    points = jax.random.normal(kp, (N, d_in), jnp.float32)
    feature_vectors = jax.random.normal(kf, (N, d_feature), jnp.float32)
    params = init_params(kparam, dims)
    freqs = tuple(2.0 ** k for k in range(multi_res))

    packed = pack_refract_params(params)       # hoisted one-time packing

    out = refract_network_forward(points, feature_vectors, packed,
                                  multi_res=multi_res, d_out=d_out)
    out = jax.block_until_ready(out)
    assert out.shape == (N, d_out)

    # Tight check against an equivalent bf16-operand JAX forward (kernel correctness;
    # extra slack covers the bf16 output quantization of the stored slab).
    ref_bf16 = reference_forward_bf16(points, feature_vectors, params, freqs)
    err_bf16 = float(jnp.max(jnp.abs(out - ref_bf16)))
    assert err_bf16 < 6e-3, f"kernel vs bf16 reference max abs err {err_bf16}"

    # Looser check against the full-precision reference (bf16 matmul approximation).
    ref_f32 = reference_forward_f32(points, feature_vectors, params, freqs)
    err_f32 = float(jnp.max(jnp.abs(out - ref_f32)))
    assert err_f32 < 2.5e-2, f"kernel vs f32 reference max abs err {err_f32}"

    print("KERNEL_OK")
</pallas_src>

<mosaic_0001>
module attributes {stable_mosaic.version = 11 : i64} {
  func.func @kernel(%arg0: i32, %arg1: memref<1008x48xbf16, #tpu.memory_space<vmem>>, %arg2: memref<48x32xbf16, #tpu.memory_space<vmem>>, %arg3: memref<4x32xf32, #tpu.memory_space<vmem>>, %arg4: memref<3x32x32xbf16, #tpu.memory_space<vmem>>, %arg5: memref<32x128xbf16, #tpu.memory_space<vmem>>, %arg6: memref<1x128xf32, #tpu.memory_space<vmem>>, %arg7: memref<1008x128xbf16, #tpu.memory_space<vmem>>) attributes {dimension_semantics = [#tpu.dimension_semantics<parallel>], iteration_bounds = array<i64: 2>, scalar_prefetch = 0 : i64, scratch_operands = 0 : i64, tpu.core_type = #tpu.core_type<tc>, window_params = [{transform_indices = @transform_0, window_bounds = array<i64: 1008, 48>}, {pipeline_mode = #tpu.pipeline_mode<synchronous>, transform_indices = @transform_1, window_bounds = array<i64: 48, 32>}, {pipeline_mode = #tpu.pipeline_mode<synchronous>, transform_indices = @transform_2, window_bounds = array<i64: 4, 32>}, {pipeline_mode = #tpu.pipeline_mode<synchronous>, transform_indices = @transform_3, window_bounds = array<i64: 3, 32, 32>}, {pipeline_mode = #tpu.pipeline_mode<synchronous>, transform_indices = @transform_4, window_bounds = array<i64: 32, 128>}, {pipeline_mode = #tpu.pipeline_mode<synchronous>, transform_indices = @transform_5, window_bounds = array<i64: 1, 128>}, {transform_indices = @transform_6, window_bounds = array<i64: 1008, 128>}]} {
    %c0 = arith.constant 0 : index
    %c0_0 = arith.constant 0 : index
    %0 = vector.load %arg1[%c0, %c0_0] : memref<1008x48xbf16, #tpu.memory_space<vmem>>, vector<1008x48xbf16>
    %c0_1 = arith.constant 0 : index
    %c0_2 = arith.constant 0 : index
    %1 = vector.load %arg2[%c0_1, %c0_2] : memref<48x32xbf16, #tpu.memory_space<vmem>>, vector<48x32xbf16>
    %cst = arith.constant dense<0.000000e+00> : vector<1008x32xf32>
    %2 = tpu.matmul %0, %1, %cst {dimension_numbers = #tpu.dot_dimension_numbers<[1], [0], [0], [1], [0, 0, 1, 1], [], []>} : vector<1008x48xbf16>, vector<48x32xbf16>, vector<1008x32xf32> -> vector<1008x32xf32>
    %c0_3 = arith.constant 0 : index
    %c0_4 = arith.constant 0 : index
    %3 = vector.load %arg3[%c0_3, %c0_4] : memref<4x32xf32, #tpu.memory_space<vmem>>, vector<1x32xf32>
    %4 = vector.broadcast %3 : vector<1x32xf32> to vector<1008x32xf32>
    %5 = arith.addf %2, %4 : vector<1008x32xf32>
    %cst_5 = arith.constant 0.000000e+00 : f32
    %6 = vector.broadcast %cst_5 : f32 to vector<1008x32xf32>
    %7 = arith.maximumf %5, %6 : vector<1008x32xf32>
    %8 = arith.truncf %7 : vector<1008x32xf32> to vector<1008x32xbf16>
    %c0_6 = arith.constant 0 : index
    %c0_7 = arith.constant 0 : index
    %c0_8 = arith.constant 0 : index
    %9 = vector.load %arg4[%c0_6, %c0_7, %c0_8] : memref<3x32x32xbf16, #tpu.memory_space<vmem>>, vector<1x32x32xbf16>
    %10 = vector.shape_cast %9 : vector<1x32x32xbf16> to vector<32x32xbf16>
    %cst_9 = arith.constant dense<0.000000e+00> : vector<1008x32xf32>
    %11 = tpu.matmul %8, %10, %cst_9 {dimension_numbers = #tpu.dot_dimension_numbers<[1], [0], [0], [1], [0, 0, 1, 1], [], []>} : vector<1008x32xbf16>, vector<32x32xbf16>, vector<1008x32xf32> -> vector<1008x32xf32>
    %c1 = arith.constant 1 : index
    %c0_10 = arith.constant 0 : index
    %12 = vector.load %arg3[%c1, %c0_10] : memref<4x32xf32, #tpu.memory_space<vmem>>, vector<1x32xf32>
    %13 = vector.broadcast %12 : vector<1x32xf32> to vector<1008x32xf32>
    %14 = arith.addf %11, %13 : vector<1008x32xf32>
    %cst_11 = arith.constant 0.000000e+00 : f32
    %15 = vector.broadcast %cst_11 : f32 to vector<1008x32xf32>
    %16 = arith.maximumf %14, %15 : vector<1008x32xf32>
    %17 = arith.truncf %16 : vector<1008x32xf32> to vector<1008x32xbf16>
    %c1_12 = arith.constant 1 : index
    %c0_13 = arith.constant 0 : index
    %c0_14 = arith.constant 0 : index
    %18 = vector.load %arg4[%c1_12, %c0_13, %c0_14] : memref<3x32x32xbf16, #tpu.memory_space<vmem>>, vector<1x32x32xbf16>
    %19 = vector.shape_cast %18 : vector<1x32x32xbf16> to vector<32x32xbf16>
    %cst_15 = arith.constant dense<0.000000e+00> : vector<1008x32xf32>
    %20 = tpu.matmul %17, %19, %cst_15 {dimension_numbers = #tpu.dot_dimension_numbers<[1], [0], [0], [1], [0, 0, 1, 1], [], []>} : vector<1008x32xbf16>, vector<32x32xbf16>, vector<1008x32xf32> -> vector<1008x32xf32>
    %c2 = arith.constant 2 : index
    %c0_16 = arith.constant 0 : index
    %21 = vector.load %arg3[%c2, %c0_16] : memref<4x32xf32, #tpu.memory_space<vmem>>, vector<1x32xf32>
    %22 = vector.broadcast %21 : vector<1x32xf32> to vector<1008x32xf32>
    %23 = arith.addf %20, %22 : vector<1008x32xf32>
    %cst_17 = arith.constant 0.000000e+00 : f32
    %24 = vector.broadcast %cst_17 : f32 to vector<1008x32xf32>
    %25 = arith.maximumf %23, %24 : vector<1008x32xf32>
    %26 = arith.truncf %25 : vector<1008x32xf32> to vector<1008x32xbf16>
    %c2_18 = arith.constant 2 : index
    %c0_19 = arith.constant 0 : index
    %c0_20 = arith.constant 0 : index
    %27 = vector.load %arg4[%c2_18, %c0_19, %c0_20] : memref<3x32x32xbf16, #tpu.memory_space<vmem>>, vector<1x32x32xbf16>
    %28 = vector.shape_cast %27 : vector<1x32x32xbf16> to vector<32x32xbf16>
    %cst_21 = arith.constant dense<0.000000e+00> : vector<1008x32xf32>
    %29 = tpu.matmul %26, %28, %cst_21 {dimension_numbers = #tpu.dot_dimension_numbers<[1], [0], [0], [1], [0, 0, 1, 1], [], []>} : vector<1008x32xbf16>, vector<32x32xbf16>, vector<1008x32xf32> -> vector<1008x32xf32>
    %c3 = arith.constant 3 : index
    %c0_22 = arith.constant 0 : index
    %30 = vector.load %arg3[%c3, %c0_22] : memref<4x32xf32, #tpu.memory_space<vmem>>, vector<1x32xf32>
    %31 = vector.broadcast %30 : vector<1x32xf32> to vector<1008x32xf32>
    %32 = arith.addf %29, %31 : vector<1008x32xf32>
    %cst_23 = arith.constant 0.000000e+00 : f32
    %33 = vector.broadcast %cst_23 : f32 to vector<1008x32xf32>
    %34 = arith.maximumf %32, %33 : vector<1008x32xf32>
    %35 = arith.truncf %34 : vector<1008x32xf32> to vector<1008x32xbf16>
    %c0_24 = arith.constant 0 : index
    %c0_25 = arith.constant 0 : index
    %36 = vector.load %arg5[%c0_24, %c0_25] : memref<32x128xbf16, #tpu.memory_space<vmem>>, vector<32x128xbf16>
    %cst_26 = arith.constant dense<0.000000e+00> : vector<1008x128xf32>
    %37 = tpu.matmul %35, %36, %cst_26 {dimension_numbers = #tpu.dot_dimension_numbers<[1], [0], [0], [1], [0, 0, 1, 1], [], []>} : vector<1008x32xbf16>, vector<32x128xbf16>, vector<1008x128xf32> -> vector<1008x128xf32>
    %c0_27 = arith.constant 0 : index
    %c0_28 = arith.constant 0 : index
    %38 = vector.load %arg6[%c0_27, %c0_28] : memref<1x128xf32, #tpu.memory_space<vmem>>, vector<1x128xf32>
    %39 = vector.broadcast %38 : vector<1x128xf32> to vector<1008x128xf32>
    %40 = arith.addf %37, %39 : vector<1008x128xf32>
    %41 = arith.negf %40 : vector<1008x128xf32>
    %42 = math.exp %41 : vector<1008x128xf32>
    %cst_29 = arith.constant 1.000000e+00 : f32
    %43 = vector.broadcast %cst_29 : f32 to vector<1008x128xf32>
    %44 = arith.addf %43, %42 : vector<1008x128xf32>
    %45 = arith.divf %43, %44 : vector<1008x128xf32>
    %46 = arith.truncf %45 : vector<1008x128xf32> to vector<1008x128xbf16>
    %c0_30 = arith.constant 0 : index
    %c0_31 = arith.constant 0 : index
    %47 = vector.load %arg7[%c0_30, %c0_31] : memref<1008x128xbf16, #tpu.memory_space<vmem>>, vector<1008x128xbf16>
    tpu.vector_store %arg7[%c0_30, %c0_31], %46 {strides = array<i32>} : memref<1008x128xbf16, #tpu.memory_space<vmem>>, vector<1008x128xbf16>,
    return
  }
  func.func @transform_0(%arg0: i32) -> (i32, i32) {
    %c0_i32 = arith.constant 0 : i32
    %c0_i32_0 = arith.constant 0 : i32
    return %arg0, %c0_i32 : i32, i32
  }
  func.func @transform_1(%arg0: i32) -> (i32, i32) {
    %c0_i32 = arith.constant 0 : i32
    %c0_i32_0 = arith.constant 0 : i32
    %c0_i32_1 = arith.constant 0 : i32
    return %c0_i32, %c0_i32_0 : i32, i32
  }
  func.func @transform_2(%arg0: i32) -> (i32, i32) {
    %c0_i32 = arith.constant 0 : i32
    %c0_i32_0 = arith.constant 0 : i32
    %c0_i32_1 = arith.constant 0 : i32
    return %c0_i32, %c0_i32_0 : i32, i32
  }
  func.func @transform_3(%arg0: i32) -> (i32, i32, i32) {
    %c0_i32 = arith.constant 0 : i32
    %c0_i32_0 = arith.constant 0 : i32
    %c0_i32_1 = arith.constant 0 : i32
    %c0_i32_2 = arith.constant 0 : i32
    return %c0_i32, %c0_i32_0, %c0_i32_1 : i32, i32, i32
  }
  func.func @transform_4(%arg0: i32) -> (i32, i32) {
    %c0_i32 = arith.constant 0 : i32
    %c0_i32_0 = arith.constant 0 : i32
    %c0_i32_1 = arith.constant 0 : i32
    return %c0_i32, %c0_i32_0 : i32, i32
  }
  func.func @transform_5(%arg0: i32) -> (i32, i32) {
    %c0_i32 = arith.constant 0 : i32
    %c0_i32_0 = arith.constant 0 : i32
    %c0_i32_1 = arith.constant 0 : i32
    return %c0_i32, %c0_i32_0 : i32, i32
  }
  func.func @transform_6(%arg0: i32) -> (i32, i32) {
    %c0_i32 = arith.constant 0 : i32
    %c0_i32_0 = arith.constant 0 : i32
    return %arg0, %c0_i32 : i32, i32
  }
}

</mosaic_0001>

<llo_original>
// kernel: refract_network_forward.1
$region0: #{refract_network_forward.1}
  #allocation0 [shape = 'u32[]', space=smem, size = 0x4, offset = 0x4, fixed_abs, tag = 'smem constant byte address 0x4 - core index']
  #allocation1 [shape = 'u32[144,128]{1,0:T(1,128)}', space=vmem, size = 0x12000, scoped, tag = 'internal scratch']
  %s0 = inlined_call_operand.vmem [shape: bf16[2016,48], index: 0, kind: input, shape index: {}]
  %s1 = inlined_call_operand.vmem [shape: bf16[48,32], index: 1, kind: input, shape index: {}]
  %s2 = inlined_call_operand.vmem [shape: f32[4,32], index: 2, kind: input, shape index: {}]
  %s3 = inlined_call_operand.vmem [shape: bf16[3,32,32], index: 3, kind: input, shape index: {}]
  %s4 = inlined_call_operand.vmem [shape: bf16[32,128], index: 4, kind: input, shape index: {}]
  %s5 = inlined_call_operand.vmem [shape: f32[1,128], index: 5, kind: input, shape index: {}]
  %s6 = inlined_call_operand.vmem [shape: bf16[2016,128], index: 6, kind: output, shape index: {}]
  %s7 = sld [smem:[#allocation0]]
  $region57: #{refract_network_forward.1} parent=0
    _
  %s9 = ssub.s32 1, %s7
  %s10 = scalar_select 0, %s9, %s7
  loop: start=0, step=1, limit=4
  $region2: #{refract_network_forward.1} parent=0 // loop_pre_header
    _
  $region3: #{refract_network_forward.1} parent=0 // loop_header
    %s12 = sphi 0, %s16
    %p13 = scmp.ge.s32.totalorder %s12, 4
    %s22 = sphi 0, %s24
    %s25 = sphi 0, %s22
    %s26 = sphi 0, %s25
    %s42 = sphi 0, %s26
    %s46 = sphi 0, %s46
    %s48 = sphi 0, %s46
    %s49 = sphi 0, %s48
    %s63 = sphi 0, %s49
    %s67 = sphi 0, %s67
    %s69 = sphi 0, %s67
    %s70 = sphi 0, %s69
    %s84 = sphi 0, %s70
    %s88 = sphi 0, %s88
    %s90 = sphi 0, %s88
    %s91 = sphi 0, %s90
    %s105 = sphi 0, %s91
    %s109 = sphi 0, %s109
    %s111 = sphi 0, %s109
    %s112 = sphi 0, %s111
    %s126 = sphi 0, %s112
    %s130 = sphi 0, %s130
    %s132 = sphi 0, %s130
    %s133 = sphi 0, %s132
    %s147 = sphi 0, %s133
    %s153 = sphi 0, %s155
    %s156 = sphi 0, %s153
    %s157 = sphi 0, %s156
    %s173 = sphi 0, %s157
  $region4: #{refract_network_forward.1} parent=0 // loop_header_branch
    %15 = sbr.rel (%p13) target = $region8
  $region5: #{refract_network_forward.1} parent=0 // loop_body
    %s17 = ssub.s32 %s12, 1
    %s18 = ssub.s32 %s12, 2
    %s19 = sadd.s32 %s12, 1
    %s20 = ssub.s32 %s12, %s19
    %p21 = scmp.eq.s32.totalorder %s20, 0
    %s23 = sadd.s32 %s22, 1
    %s24 = scalar_select %p21, %s22, %s23
    %p27 = pneg %p21
    %p28 = scmp.eq.s32.totalorder %s12, 1
    %p29 = por %p27, %p28
    %p30 = scmp.ne.s32.totalorder %s22, %s25
    %p31 = scmp.eq.s32.totalorder %s12, 0
    %p32 = por %p30, %p31
    %p33 = scmp.ne.s32.totalorder %s22, %s25
    %p34 = scmp.eq.s32.totalorder %s17, 1
    %p35 = por %p33, %p34
    %p36 = scmp.ne.s32.totalorder %s25, %s26
    %p37 = scmp.eq.s32.totalorder %s17, 0
    %p38 = por %p36, %p37
    %p39 = scmp.ne.s32.totalorder %s25, %s26
    %p40 = scmp.eq.s32.totalorder %s18, 1
    %p41 = por %p39, %p40
    %p43 = scmp.ne.s32.totalorder %s26, %s42
    %p44 = scmp.eq.s32.totalorder %s18, 0
    %p45 = por %p43, %p44
    %s47 = sadd.s32 %s46, 1
    %p50 = scmp.eq.s32.totalorder %s12, 1
    %p51 = scmp.ne.s32.totalorder %s46, %s48
    %p52 = scmp.eq.s32.totalorder %s12, 0
    %p53 = por %p51, %p52
    %p54 = scmp.ne.s32.totalorder %s46, %s48
    %p55 = scmp.eq.s32.totalorder %s17, 1
    %p56 = por %p54, %p55
    %p57 = scmp.ne.s32.totalorder %s48, %s49
    %p58 = scmp.eq.s32.totalorder %s17, 0
    %p59 = por %p57, %p58
    %p60 = scmp.ne.s32.totalorder %s48, %s49
    %p61 = scmp.eq.s32.totalorder %s18, 1
    %p62 = por %p60, %p61
    %p64 = scmp.ne.s32.totalorder %s49, %s63
    %p65 = scmp.eq.s32.totalorder %s18, 0
    %p66 = por %p64, %p65
    %s68 = sadd.s32 %s67, 1
    %p71 = scmp.eq.s32.totalorder %s12, 1
    %p72 = scmp.ne.s32.totalorder %s67, %s69
    %p73 = scmp.eq.s32.totalorder %s12, 0
    %p74 = por %p72, %p73
    %p75 = scmp.ne.s32.totalorder %s67, %s69
    %p76 = scmp.eq.s32.totalorder %s17, 1
    %p77 = por %p75, %p76
    %p78 = scmp.ne.s32.totalorder %s69, %s70
    %p79 = scmp.eq.s32.totalorder %s17, 0
    %p80 = por %p78, %p79
    %p81 = scmp.ne.s32.totalorder %s69, %s70
    %p82 = scmp.eq.s32.totalorder %s18, 1
    %p83 = por %p81, %p82
    %p85 = scmp.ne.s32.totalorder %s70, %s84
    %p86 = scmp.eq.s32.totalorder %s18, 0
    %p87 = por %p85, %p86
    %s89 = sadd.s32 %s88, 1
    %p92 = scmp.eq.s32.totalorder %s12, 1
    %p93 = scmp.ne.s32.totalorder %s88, %s90
    %p94 = scmp.eq.s32.totalorder %s12, 0
    %p95 = por %p93, %p94
    %p96 = scmp.ne.s32.totalorder %s88, %s90
    %p97 = scmp.eq.s32.totalorder %s17, 1
    %p98 = por %p96, %p97
    %p99 = scmp.ne.s32.totalorder %s90, %s91
    %p100 = scmp.eq.s32.totalorder %s17, 0
    %p101 = por %p99, %p100
    %p102 = scmp.ne.s32.totalorder %s90, %s91
    %p103 = scmp.eq.s32.totalorder %s18, 1
    %p104 = por %p102, %p103
    %p106 = scmp.ne.s32.totalorder %s91, %s105
    %p107 = scmp.eq.s32.totalorder %s18, 0
    %p108 = por %p106, %p107
    %s110 = sadd.s32 %s109, 1
    %p113 = scmp.eq.s32.totalorder %s12, 1
    %p114 = scmp.ne.s32.totalorder %s109, %s111
    %p115 = scmp.eq.s32.totalorder %s12, 0
    %p116 = por %p114, %p115
    %p117 = scmp.ne.s32.totalorder %s109, %s111
    %p118 = scmp.eq.s32.totalorder %s17, 1
    %p119 = por %p117, %p118
    %p120 = scmp.ne.s32.totalorder %s111, %s112
    %p121 = scmp.eq.s32.totalorder %s17, 0
    %p122 = por %p120, %p121
    %p123 = scmp.ne.s32.totalorder %s111, %s112
    %p124 = scmp.eq.s32.totalorder %s18, 1
    %p125 = por %p123, %p124
    %p127 = scmp.ne.s32.totalorder %s112, %s126
    %p128 = scmp.eq.s32.totalorder %s18, 0
    %p129 = por %p127, %p128
    %s131 = sadd.s32 %s130, 1
    %p134 = scmp.eq.s32.totalorder %s12, 1
    %p135 = scmp.ne.s32.totalorder %s130, %s132
    %p136 = scmp.eq.s32.totalorder %s12, 0
    %p137 = por %p135, %p136
    %p138 = scmp.ne.s32.totalorder %s130, %s132
    %p139 = scmp.eq.s32.totalorder %s17, 1
    %p140 = por %p138, %p139
    %p141 = scmp.ne.s32.totalorder %s132, %s133
    %p142 = scmp.eq.s32.totalorder %s17, 0
    %p143 = por %p141, %p142
    %p144 = scmp.ne.s32.totalorder %s132, %s133
    %p145 = scmp.eq.s32.totalorder %s18, 1
    %p146 = por %p144, %p145
    %p148 = scmp.ne.s32.totalorder %s133, %s147
    %p149 = scmp.eq.s32.totalorder %s18, 0
    %p150 = por %p148, %p149
    %s151 = ssub.s32 %s12, %s19
    %p152 = scmp.eq.s32.totalorder %s151, 0
    %s154 = sadd.s32 %s153, 1
    %s155 = scalar_select %p152, %s153, %s154
    %p158 = pneg %p152
    %p159 = scmp.eq.s32.totalorder %s12, 1
    %p160 = por %p158, %p159
    %p161 = scmp.ne.s32.totalorder %s153, %s156
    %p162 = scmp.eq.s32.totalorder %s12, 0
    %p163 = por %p161, %p162
    %p164 = scmp.ne.s32.totalorder %s153, %s156
    %p165 = scmp.eq.s32.totalorder %s17, 1
    %p166 = por %p164, %p165
    %p167 = scmp.ne.s32.totalorder %s156, %s157
    %p168 = scmp.eq.s32.totalorder %s17, 0
    %p169 = por %p167, %p168
    %p170 = scmp.ne.s32.totalorder %s156, %s157
    %p171 = scmp.eq.s32.totalorder %s18, 1
    %p172 = por %p170, %p171
    %p174 = scmp.ne.s32.totalorder %s157, %s173
    %p175 = scmp.eq.s32.totalorder %s18, 0
    %p176 = por %p174, %p175
    %p177 = scmp.le.s32.totalorder 1, %s12
    %p178 = scmp.lt.s32.totalorder %s12, 3
    %p179 = pnand %p177, %p178
    %p180 = pneg %p179
    // Predicated region
    $region9: #{refract_network_forward.1} parent=5 // pred_check
      _
    $region10: #{refract_network_forward.1} parent=5 // pred_check_branch
      %182 = sbr.rel (%p179) target = $region12
    $region11: #{refract_network_forward.1} parent=5 // pred_region
      %s183 = ssub.s32 %s12, 1
      // Predicated region
      $region13: #{refract_network_forward.1} parent=11 // pred_check
        %p184 = pneg %p59
      $region14: #{refract_network_forward.1} parent=11 // pred_check_branch
        %186 = sbr.rel (%p184) target = $region16
      $region15: #{refract_network_forward.1} parent=11 // pred_region
        _
      $region16: #{refract_network_forward.1} parent=11 // pred_fallthru
        _
      // Predicated region
      $region17: #{refract_network_forward.1} parent=11 // pred_check
        %p187 = pneg %p80
      $region18: #{refract_network_forward.1} parent=11 // pred_check_branch
        %189 = sbr.rel (%p187) target = $region20
      $region19: #{refract_network_forward.1} parent=11 // pred_region
        _
      $region20: #{refract_network_forward.1} parent=11 // pred_fallthru
        _
      // Predicated region
      $region21: #{refract_network_forward.1} parent=11 // pred_check
        %p190 = pneg %p101
      $region22: #{refract_network_forward.1} parent=11 // pred_check_branch
        %192 = sbr.rel (%p190) target = $region24
      $region23: #{refract_network_forward.1} parent=11 // pred_region
        _
      $region24: #{refract_network_forward.1} parent=11 // pred_fallthru
        _
      // Predicated region
      $region25: #{refract_network_forward.1} parent=11 // pred_check
        %p193 = pneg %p122
      $region26: #{refract_network_forward.1} parent=11 // pred_check_branch
        %195 = sbr.rel (%p193) target = $region28
      $region27: #{refract_network_forward.1} parent=11 // pred_region
        _
      $region28: #{refract_network_forward.1} parent=11 // pred_fallthru
        _
      // Predicated region
      $region29: #{refract_network_forward.1} parent=11 // pred_check
        %p196 = pneg %p143
      $region30: #{refract_network_forward.1} parent=11 // pred_check_branch
        %198 = sbr.rel (%p196) target = $region32
      $region31: #{refract_network_forward.1} parent=11 // pred_region
        _
      $region32: #{refract_network_forward.1} parent=11 // pred_fallthru
        _
    $region12: #{refract_network_forward.1} parent=5 // pred_fallthru
      _
    %p199 = scmp.lt.s32.totalorder %s12, 2
    // Predicated region
    $region33: #{refract_network_forward.1} parent=5 // pred_check
      %p200 = pneg %p199
    $region34: #{refract_network_forward.1} parent=5 // pred_check_branch
      %202 = sbr.rel (%p200) target = $region36
    $region35: #{refract_network_forward.1} parent=5 // pred_region
      // Predicated region
      $region37: #{refract_network_forward.1} parent=35 // pred_check
        %p203 = pneg %p32
      $region38: #{refract_network_forward.1} parent=35 // pred_check_branch
        %205 = sbr.rel (%p203) target = $region40
      $region39: #{refract_network_forward.1} parent=35 // pred_region
        %s206 = smul.u32 126, %s12
        %p207 = scmp.lt.s32.totalorder %s206, 251
        %s208 = scalar_select %p207, %s206, 251
        %s209 = smul.addr %s208, 4
        %s210 = scalar_lea.vmem %s0, %s209
        %s211 = smul.u32 126, %s12
      $region40: #{refract_network_forward.1} parent=35 // pred_fallthru
        _
    $region36: #{refract_network_forward.1} parent=5 // pred_fallthru
      _
    %p212 = scmp.le.s32.totalorder 1, %s12
    %p213 = scmp.lt.s32.totalorder %s12, 3
    %p214 = pnand %p212, %p213
    %p215 = pneg %p214
    // Predicated region
    $region41: #{refract_network_forward.1} parent=5 // pred_check
      _
    $region42: #{refract_network_forward.1} parent=5 // pred_check_branch
      %217 = sbr.rel (%p214) target = $region44
    $region43: #{refract_network_forward.1} parent=5 // pred_region
      %s218 = ssub.s32 %s12, 1
      %s219 = smul.u32 126, %s17
      %p220 = scmp.lt.s32.totalorder %s219, 251
      %s221 = scalar_select %p220, %s219, 251
      %s222 = smul.addr %s221, 4
      %s223 = scalar_lea.vmem %s0, %s222
      %p224 = pneg %p38
      %p225 = pneg %p35
      %p226 = pneg %p59
      %p227 = pneg %p56
      %p228 = pneg %p80
      %p229 = pneg %p77
      %p230 = pneg %p101
      %p231 = pneg %p98
      %p232 = pneg %p122
      %p233 = pneg %p119
      %p234 = pneg %p143
      %p235 = pneg %p140
      %p236 = pneg %p169
      %p237 = pneg %p166
      %s238 = smul.u32 126, %s17
      %p239 = scmp.lt.s32.totalorder %s238, 251
      %s240 = scalar_select %p239, %s238, 251
      %s241 = smul.addr %s240, 4
      %s242 = scalar_lea.vmem %s6, %s241
      %s243 = smul.u32 126, %s17
      %p244 = scmp.lt.s32.totalorder %s243, 251
      %s245 = scalar_select %p244, %s243, 251
      %s246 = smul.addr %s245, 4
      %s247 = scalar_lea.vmem %s0, %s246
      %s248 = smul.u32 126, %s17
      %s249 = smul.u32 126, %s17
      %p250 = scmp.lt.s32.totalorder %s249, 251
      %s251 = scalar_select %p250, %s249, 251
      %s252 = smul.addr %s251, 4
      %s253 = scalar_lea.vmem %s6, %s252
      %s254 = smul.u32 126, %s17
      %v256 = vld [vmem:[%s247] sm:$0xf]
      %v257 = vld [vmem:[%s247 + $0x4] sm:$0xf]
      %v258 = vld [vmem:[%s247 + $0x8] sm:$0xf]
      %v259 = vld [vmem:[%s247 + $0xc] sm:$0xf]
      %v260 = vld [vmem:[%s247 + $0x10] sm:$0xf]
      %v261 = vld [vmem:[%s247 + $0x14] sm:$0xf]
      %v262 = vld [vmem:[%s247 + $0x18] sm:$0xf]
      %v263 = vld [vmem:[%s247 + $0x1c] sm:$0xf]
      %v264 = vld [vmem:[%s247 + $0x20] sm:$0xf]
      %v265 = vld [vmem:[%s247 + $0x24] sm:$0xf]
      %v266 = vld [vmem:[%s247 + $0x28] sm:$0xf]
      %v267 = vld [vmem:[%s247 + $0x2c] sm:$0xf]
      %v268 = vld [vmem:[%s247 + $0x30] sm:$0xf]
      %v269 = vld [vmem:[%s247 + $0x34] sm:$0xf]
      %v270 = vld [vmem:[%s247 + $0x38] sm:$0xf]
      %v271 = vld [vmem:[%s247 + $0x3c] sm:$0xf]
      %v272 = vld [vmem:[%s247 + $0x40] sm:$0xf]
      %v273 = vld [vmem:[%s247 + $0x44] sm:$0xf]
      %v274 = vld [vmem:[%s247 + $0x48] sm:$0xf]
      %v275 = vld [vmem:[%s247 + $0x4c] sm:$0xf]
      %v276 = vld [vmem:[%s247 + $0x50] sm:$0xf]
      %v277 = vld [vmem:[%s247 + $0x54] sm:$0xf]
      %v278 = vld [vmem:[%s247 + $0x58] sm:$0xf]
      %v279 = vld [vmem:[%s247 + $0x5c] sm:$0xf]
      %v280 = vld [vmem:[%s247 + $0x60] sm:$0xf]
      %v281 = vld [vmem:[%s247 + $0x64] sm:$0xf]
      %v282 = vld [vmem:[%s247 + $0x68] sm:$0xf]
      %v283 = vld [vmem:[%s247 + $0x6c] sm:$0xf]
      %v284 = vld [vmem:[%s247 + $0x70] sm:$0xf]
      %v285 = vld [vmem:[%s247 + $0x74] sm:$0xf]
      %v286 = vld [vmem:[%s247 + $0x78] sm:$0xf]
      %v287 = vld [vmem:[%s247 + $0x7c] sm:$0xf]
      %v288 = vld [vmem:[%s247 + $0x80] sm:$0xf]
      %v289 = vld [vmem:[%s247 + $0x84] sm:$0xf]
      %v290 = vld [vmem:[%s247 + $0x88] sm:$0xf]
      %v291 = vld [vmem:[%s247 + $0x8c] sm:$0xf]
      %v292 = vld [vmem:[%s247 + $0x90] sm:$0xf]
      %v293 = vld [vmem:[%s247 + $0x94] sm:$0xf]
      %v294 = vld [vmem:[%s247 + $0x98] sm:$0xf]
      %v295 = vld [vmem:[%s247 + $0x9c] sm:$0xf]
      %v296 = vld [vmem:[%s247 + $0xa0] sm:$0xf]
      %v297 = vld [vmem:[%s247 + $0xa4] sm:$0xf]
      %v298 = vld [vmem:[%s247 + $0xa8] sm:$0xf]
      %v299 = vld [vmem:[%s247 + $0xac] sm:$0xf]
      %v300 = vld [vmem:[%s247 + $0xb0] sm:$0xf]
      %v301 = vld [vmem:[%s247 + $0xb4] sm:$0xf]
      %v302 = vld [vmem:[%s247 + $0xb8] sm:$0xf]
      %v303 = vld [vmem:[%s247 + $0xbc] sm:$0xf]
      %v304 = vld [vmem:[%s247 + $0xc0] sm:$0xf]
      %v305 = vld [vmem:[%s247 + $0xc4] sm:$0xf]
      %v306 = vld [vmem:[%s247 + $0xc8] sm:$0xf]
      %v307 = vld [vmem:[%s247 + $0xcc] sm:$0xf]
      %v308 = vld [vmem:[%s247 + $0xd0] sm:$0xf]
      %v309 = vld [vmem:[%s247 + $0xd4] sm:$0xf]
      %v310 = vld [vmem:[%s247 + $0xd8] sm:$0xf]
      %v311 = vld [vmem:[%s247 + $0xdc] sm:$0xf]
      %v312 = vld [vmem:[%s247 + $0xe0] sm:$0xf]
      %v313 = vld [vmem:[%s247 + $0xe4] sm:$0xf]
      %v314 = vld [vmem:[%s247 + $0xe8] sm:$0xf]
      %v315 = vld [vmem:[%s247 + $0xec] sm:$0xf]
      %v316 = vld [vmem:[%s247 + $0xf0] sm:$0xf]
      %v317 = vld [vmem:[%s247 + $0xf4] sm:$0xf]
      %v318 = vld [vmem:[%s247 + $0xf8] sm:$0xf]
      %v319 = vld [vmem:[%s247 + $0xfc] sm:$0xf]
      %v320 = vld [vmem:[%s247 + $0x100] sm:$0xf]
      %v321 = vld [vmem:[%s247 + $0x104] sm:$0xf]
      %v322 = vld [vmem:[%s247 + $0x108] sm:$0xf]
      %v323 = vld [vmem:[%s247 + $0x10c] sm:$0xf]
      %v324 = vld [vmem:[%s247 + $0x110] sm:$0xf]
      %v325 = vld [vmem:[%s247 + $0x114] sm:$0xf]
      %v326 = vld [vmem:[%s247 + $0x118] sm:$0xf]
      %v327 = vld [vmem:[%s247 + $0x11c] sm:$0xf]
      %v328 = vld [vmem:[%s247 + $0x120] sm:$0xf]
      %v329 = vld [vmem:[%s247 + $0x124] sm:$0xf]
      %v330 = vld [vmem:[%s247 + $0x128] sm:$0xf]
      %v331 = vld [vmem:[%s247 + $0x12c] sm:$0xf]
      %v332 = vld [vmem:[%s247 + $0x130] sm:$0xf]
      %v333 = vld [vmem:[%s247 + $0x134] sm:$0xf]
      %v334 = vld [vmem:[%s247 + $0x138] sm:$0xf]
      %v335 = vld [vmem:[%s247 + $0x13c] sm:$0xf]
      %v336 = vld [vmem:[%s247 + $0x140] sm:$0xf]
      %v337 = vld [vmem:[%s247 + $0x144] sm:$0xf]
      %v338 = vld [vmem:[%s247 + $0x148] sm:$0xf]
      %v339 = vld [vmem:[%s247 + $0x14c] sm:$0xf]
      %v340 = vld [vmem:[%s247 + $0x150] sm:$0xf]
      %v341 = vld [vmem:[%s247 + $0x154] sm:$0xf]
      %v342 = vld [vmem:[%s247 + $0x158] sm:$0xf]
      %v343 = vld [vmem:[%s247 + $0x15c] sm:$0xf]
      %v344 = vld [vmem:[%s247 + $0x160] sm:$0xf]
      %v345 = vld [vmem:[%s247 + $0x164] sm:$0xf]
      %v346 = vld [vmem:[%s247 + $0x168] sm:$0xf]
      %v347 = vld [vmem:[%s247 + $0x16c] sm:$0xf]
      %v348 = vld [vmem:[%s247 + $0x170] sm:$0xf]
      %v349 = vld [vmem:[%s247 + $0x174] sm:$0xf]
      %v350 = vld [vmem:[%s247 + $0x178] sm:$0xf]
      %v351 = vld [vmem:[%s247 + $0x17c] sm:$0xf]
      %v352 = vld [vmem:[%s247 + $0x180] sm:$0xf]
      %v353 = vld [vmem:[%s247 + $0x184] sm:$0xf]
      %v354 = vld [vmem:[%s247 + $0x188] sm:$0xf]
      %v355 = vld [vmem:[%s247 + $0x18c] sm:$0xf]
      %v356 = vld [vmem:[%s247 + $0x190] sm:$0xf]
      %v357 = vld [vmem:[%s247 + $0x194] sm:$0xf]
      %v358 = vld [vmem:[%s247 + $0x198] sm:$0xf]
      %v359 = vld [vmem:[%s247 + $0x19c] sm:$0xf]
      %v360 = vld [vmem:[%s247 + $0x1a0] sm:$0xf]
      %v361 = vld [vmem:[%s247 + $0x1a4] sm:$0xf]
      %v362 = vld [vmem:[%s247 + $0x1a8] sm:$0xf]
      %v363 = vld [vmem:[%s247 + $0x1ac] sm:$0xf]
      %v364 = vld [vmem:[%s247 + $0x1b0] sm:$0xf]
      %v365 = vld [vmem:[%s247 + $0x1b4] sm:$0xf]
      %v366 = vld [vmem:[%s247 + $0x1b8] sm:$0xf]
      %v367 = vld [vmem:[%s247 + $0x1bc] sm:$0xf]
      %v368 = vld [vmem:[%s247 + $0x1c0] sm:$0xf]
      %v369 = vld [vmem:[%s247 + $0x1c4] sm:$0xf]
      %v370 = vld [vmem:[%s247 + $0x1c8] sm:$0xf]
      %v371 = vld [vmem:[%s247 + $0x1cc] sm:$0xf]
      %v372 = vld [vmem:[%s247 + $0x1d0] sm:$0xf]
      %v373 = vld [vmem:[%s247 + $0x1d4] sm:$0xf]
      %v374 = vld [vmem:[%s247 + $0x1d8] sm:$0xf]
      %v375 = vld [vmem:[%s247 + $0x1dc] sm:$0xf]
      %v376 = vld [vmem:[%s247 + $0x1e0] sm:$0xf]
      %v377 = vld [vmem:[%s247 + $0x1e4] sm:$0xf]
      %v378 = vld [vmem:[%s247 + $0x1e8] sm:$0xf]
      %v379 = vld [vmem:[%s247 + $0x1ec] sm:$0xf]
      %v380 = vld [vmem:[%s247 + $0x1f0] sm:$0xf]
      %v381 = vld [vmem:[%s247 + $0x1f4] sm:$0xf]
      %v382 = vld [vmem:[%s1] sm:$0xf]
      %v383 = vld [vmem:[%s1 + $0x4] sm:$0xf]
      %v384 = vld [vmem:[%s1 + $0x8] sm:$0xf]
      %v385 = vld [vmem:[%s1 + $0xc] sm:$0xf]
      %v386 = vld [vmem:[%s1 + $0x10] sm:$0xf]
      %v387 = vld [vmem:[%s1 + $0x14] sm:$0xf]
      %v388 = vld [vmem:[%s2] sm:$0x1]
      %v389 = vlaneseq
      %v390 = vshrl.u32 %v389, 7
      %v391 = vsub.s32 0, %v390
      %v392 = vrot.slane %v388, %v391
      %v519 = vunpack.c.l.b16 %v256
      %v520 = vunpack.c.l.b16 %v257
      %v521 = vunpack.c.l.b16 %v258
      %v522 = vunpack.c.l.b16 %v259
      %v523 = vunpack.c.l.b16 %v260
      %v524 = vunpack.c.l.b16 %v261
      %v525 = vunpack.c.l.b16 %v262
      %v526 = vunpack.c.l.b16 %v263
      %v527 = vunpack.c.l.b16 %v264
      %v528 = vunpack.c.l.b16 %v265
      %v529 = vunpack.c.l.b16 %v266
      %v530 = vunpack.c.l.b16 %v267
      %v531 = vunpack.c.l.b16 %v268
      %v532 = vunpack.c.l.b16 %v269
      %v533 = vunpack.c.l.b16 %v270
      %v534 = vunpack.c.l.b16 %v271
      %v535 = vunpack.c.l.b16 %v272
      %v536 = vunpack.c.l.b16 %v273
      %v537 = vunpack.c.l.b16 %v274
      %v538 = vunpack.c.l.b16 %v275
      %v539 = vunpack.c.l.b16 %v276
      %v540 = vunpack.c.l.b16 %v277
      %v541 = vunpack.c.l.b16 %v278
      %v542 = vunpack.c.l.b16 %v279
      %v543 = vunpack.c.l.b16 %v280
      %v544 = vunpack.c.l.b16 %v281
      %v545 = vunpack.c.l.b16 %v282
      %v546 = vunpack.c.l.b16 %v283
      %v547 = vunpack.c.l.b16 %v284
      %v548 = vunpack.c.l.b16 %v285
      %v549 = vunpack.c.l.b16 %v286
      %v550 = vunpack.c.l.b16 %v287
      %v551 = vunpack.c.l.b16 %v288
      %v552 = vunpack.c.l.b16 %v289
      %v553 = vunpack.c.l.b16 %v290
      %v554 = vunpack.c.l.b16 %v291
      %v555 = vunpack.c.l.b16 %v292
      %v556 = vunpack.c.l.b16 %v293
      %v557 = vunpack.c.l.b16 %v294
      %v558 = vunpack.c.l.b16 %v295
      %v559 = vunpack.c.l.b16 %v296
      %v560 = vunpack.c.l.b16 %v297
      %v561 = vunpack.c.l.b16 %v298
      %v562 = vunpack.c.l.b16 %v299
      %v563 = vunpack.c.l.b16 %v300
      %v564 = vunpack.c.l.b16 %v301
      %v565 = vunpack.c.l.b16 %v302
      %v566 = vunpack.c.l.b16 %v303
      %v567 = vunpack.c.l.b16 %v304
      %v568 = vunpack.c.l.b16 %v305
      %v569 = vunpack.c.l.b16 %v306
      %v570 = vunpack.c.l.b16 %v307
      %v571 = vunpack.c.l.b16 %v308
      %v572 = vunpack.c.l.b16 %v309
      %v573 = vunpack.c.l.b16 %v310
      %v574 = vunpack.c.l.b16 %v311
      %v575 = vunpack.c.l.b16 %v312
      %v576 = vunpack.c.l.b16 %v313
      %v577 = vunpack.c.l.b16 %v314
      %v578 = vunpack.c.l.b16 %v315
      %v579 = vunpack.c.l.b16 %v316
      %v580 = vunpack.c.l.b16 %v317
      %v581 = vunpack.c.l.b16 %v318
      %v582 = vunpack.c.l.b16 %v319
      %v583 = vunpack.c.l.b16 %v320
      %v584 = vunpack.c.l.b16 %v321
      %v585 = vunpack.c.l.b16 %v322
      %v586 = vunpack.c.l.b16 %v323
      %v587 = vunpack.c.l.b16 %v324
      %v588 = vunpack.c.l.b16 %v325
      %v589 = vunpack.c.l.b16 %v326
      %v590 = vunpack.c.l.b16 %v327
      %v591 = vunpack.c.l.b16 %v328
      %v592 = vunpack.c.l.b16 %v329
      %v593 = vunpack.c.l.b16 %v330
      %v594 = vunpack.c.l.b16 %v331
      %v595 = vunpack.c.l.b16 %v332
      %v596 = vunpack.c.l.b16 %v333
      %v597 = vunpack.c.l.b16 %v334
      %v598 = vunpack.c.l.b16 %v335
      %v599 = vunpack.c.l.b16 %v336
      %v600 = vunpack.c.l.b16 %v337
      %v601 = vunpack.c.l.b16 %v338
      %v602 = vunpack.c.l.b16 %v339
      %v603 = vunpack.c.l.b16 %v340
      %v604 = vunpack.c.l.b16 %v341
      %v605 = vunpack.c.l.b16 %v342
      %v606 = vunpack.c.l.b16 %v343
      %v607 = vunpack.c.l.b16 %v344
      %v608 = vunpack.c.l.b16 %v345
      %v609 = vunpack.c.l.b16 %v346
      %v610 = vunpack.c.l.b16 %v347
      %v611 = vunpack.c.l.b16 %v348
      %v612 = vunpack.c.l.b16 %v349
      %v613 = vunpack.c.l.b16 %v350
      %v614 = vunpack.c.l.b16 %v351
      %v615 = vunpack.c.l.b16 %v352
      %v616 = vunpack.c.l.b16 %v353
      %v617 = vunpack.c.l.b16 %v354
      %v618 = vunpack.c.l.b16 %v355
      %v619 = vunpack.c.l.b16 %v356
      %v620 = vunpack.c.l.b16 %v357
      %v621 = vunpack.c.l.b16 %v358
      %v622 = vunpack.c.l.b16 %v359
      %v623 = vunpack.c.l.b16 %v360
      %v624 = vunpack.c.l.b16 %v361
      %v625 = vunpack.c.l.b16 %v362
      %v626 = vunpack.c.l.b16 %v363
      %v627 = vunpack.c.l.b16 %v364
      %v628 = vunpack.c.l.b16 %v365
      %v629 = vunpack.c.l.b16 %v366
      %v630 = vunpack.c.l.b16 %v367
      %v631 = vunpack.c.l.b16 %v368
      %v632 = vunpack.c.l.b16 %v369
      %v633 = vunpack.c.l.b16 %v370
      %v634 = vunpack.c.l.b16 %v371
      %v635 = vunpack.c.l.b16 %v372
      %v636 = vunpack.c.l.b16 %v373
      %v637 = vunpack.c.l.b16 %v374
      %v638 = vunpack.c.l.b16 %v375
      %v639 = vunpack.c.l.b16 %v376
      %v640 = vunpack.c.l.b16 %v377
      %v641 = vunpack.c.l.b16 %v378
      %v642 = vunpack.c.l.b16 %v379
      %v643 = vunpack.c.l.b16 %v380
      %v644 = vunpack.c.l.b16 %v381
      %v645 = vpack.c.b16 %v520, %v519
      %v646 = vpack.c.b16 %v522, %v521
      %v647 = vpack.c.b16 %v524, %v523
      %v648 = vpack.c.b16 %v526, %v525
      %v649 = vpack.c.b16 %v528, %v527
      %v650 = vpack.c.b16 %v530, %v529
      %v651 = vpack.c.b16 %v532, %v531
      %v652 = vpack.c.b16 %v534, %v533
      %v653 = vpack.c.b16 %v536, %v535
      %v654 = vpack.c.b16 %v538, %v537
      %v655 = vpack.c.b16 %v540, %v539
      %v656 = vpack.c.b16 %v542, %v541
      %v657 = vpack.c.b16 %v544, %v543
      %v658 = vpack.c.b16 %v546, %v545
      %v659 = vpack.c.b16 %v548, %v547
      %v660 = vpack.c.b16 %v550, %v549
      %v661 = vpack.c.b16 %v552, %v551
      %v662 = vpack.c.b16 %v554, %v553
      %v663 = vpack.c.b16 %v556, %v555
      %v664 = vpack.c.b16 %v558, %v557
      %v665 = vpack.c.b16 %v560, %v559
      %v666 = vpack.c.b16 %v562, %v561
      %v667 = vpack.c.b16 %v564, %v563
      %v668 = vpack.c.b16 %v566, %v565
      %v669 = vpack.c.b16 %v568, %v567
      %v670 = vpack.c.b16 %v570, %v569
      %v671 = vpack.c.b16 %v572, %v571
      %v672 = vpack.c.b16 %v574, %v573
      %v673 = vpack.c.b16 %v576, %v575
      %v674 = vpack.c.b16 %v578, %v577
      %v675 = vpack.c.b16 %v580, %v579
      %v676 = vpack.c.b16 %v582, %v581
      %v677 = vpack.c.b16 %v584, %v583
      %v678 = vpack.c.b16 %v586, %v585
      %v679 = vpack.c.b16 %v588, %v587
      %v680 = vpack.c.b16 %v590, %v589
      %v681 = vpack.c.b16 %v592, %v591
      %v682 = vpack.c.b16 %v594, %v593
      %v683 = vpack.c.b16 %v596, %v595
      %v684 = vpack.c.b16 %v598, %v597
      %v685 = vpack.c.b16 %v600, %v599
      %v686 = vpack.c.b16 %v602, %v601
      %v687 = vpack.c.b16 %v604, %v603
      %v688 = vpack.c.b16 %v606, %v605
      %v689 = vpack.c.b16 %v608, %v607
      %v690 = vpack.c.b16 %v610, %v609
      %v691 = vpack.c.b16 %v612, %v611
      %v692 = vpack.c.b16 %v614, %v613
      %v693 = vpack.c.b16 %v616, %v615
      %v694 = vpack.c.b16 %v618, %v617
      %v695 = vpack.c.b16 %v620, %v619
      %v696 = vpack.c.b16 %v622, %v621
      %v697 = vpack.c.b16 %v624, %v623
      %v698 = vpack.c.b16 %v626, %v625
      %v699 = vpack.c.b16 %v628, %v627
      %v700 = vpack.c.b16 %v630, %v629
      %v701 = vpack.c.b16 %v632, %v631
      %v702 = vpack.c.b16 %v634, %v633
      %v703 = vpack.c.b16 %v636, %v635
      %v704 = vpack.c.b16 %v638, %v637
      %v705 = vpack.c.b16 %v640, %v639
      %v706 = vpack.c.b16 %v642, %v641
      %v707 = vpack.c.b16 %v644, %v643
      %v714 = vunpack.c.l.b16 %v382
      %v715 = vunpack.c.l.b16 %v383
      %v716 = vunpack.c.l.b16 %v384
      %v717 = vunpack.c.l.b16 %v385
      %v718 = vunpack.c.l.b16 %v386
      %v719 = vunpack.c.l.b16 %v387
      %v720 = vpack.c.b16 %v715, %v714
      %v721 = vpack.c.b16 %v717, %v716
      %v722 = vpack.c.b16 %v719, %v718
      %vm726 = vcmask 392192
      %v728 = vsel %vm726, %v645, 0
      %v731 = vsel %vm726, %v646, 0
      %v734 = vsel %vm726, %v647, 0
      %v737 = vsel %vm726, %v648, 0
      %v740 = vsel %vm726, %v649, 0
      %v743 = vsel %vm726, %v650, 0
      %v746 = vsel %vm726, %v651, 0
      %v749 = vsel %vm726, %v652, 0
      %v752 = vsel %vm726, %v653, 0
      %v755 = vsel %vm726, %v654, 0
      %v758 = vsel %vm726, %v655, 0
      %v761 = vsel %vm726, %v656, 0
      %v764 = vsel %vm726, %v657, 0
      %v767 = vsel %vm726, %v658, 0
      %v770 = vsel %vm726, %v659, 0
      %v773 = vsel %vm726, %v660, 0
      %v776 = vsel %vm726, %v661, 0
      %v779 = vsel %vm726, %v662, 0
      %v782 = vsel %vm726, %v663, 0
      %v785 = vsel %vm726, %v664, 0
      %v788 = vsel %vm726, %v665, 0
      %v791 = vsel %vm726, %v666, 0
      %v794 = vsel %vm726, %v667, 0
      %v797 = vsel %vm726, %v668, 0
      %v800 = vsel %vm726, %v669, 0
      %v803 = vsel %vm726, %v670, 0
      %v806 = vsel %vm726, %v671, 0
      %v809 = vsel %vm726, %v672, 0
      %v812 = vsel %vm726, %v673, 0
      %v815 = vsel %vm726, %v674, 0
      %v818 = vsel %vm726, %v675, 0
      %v821 = vsel %vm726, %v676, 0
      %v824 = vsel %vm726, %v677, 0
      %v827 = vsel %vm726, %v678, 0
      %v830 = vsel %vm726, %v679, 0
      %v833 = vsel %vm726, %v680, 0
      %v836 = vsel %vm726, %v681, 0
      %v839 = vsel %vm726, %v682, 0
      %v842 = vsel %vm726, %v683, 0
      %v845 = vsel %vm726, %v684, 0
      %v848 = vsel %vm726, %v685, 0
      %v851 = vsel %vm726, %v686, 0
      %v854 = vsel %vm726, %v687, 0
      %v857 = vsel %vm726, %v688, 0
      %v860 = vsel %vm726, %v689, 0
      %v863 = vsel %vm726, %v690, 0
      %v866 = vsel %vm726, %v691, 0
      %v869 = vsel %vm726, %v692, 0
      %v872 = vsel %vm726, %v693, 0
      %v875 = vsel %vm726, %v694, 0
      %v878 = vsel %vm726, %v695, 0
      %v881 = vsel %vm726, %v696, 0
      %v884 = vsel %vm726, %v697, 0
      %v887 = vsel %vm726, %v698, 0
      %v890 = vsel %vm726, %v699, 0
      %v893 = vsel %vm726, %v700, 0
      %v896 = vsel %vm726, %v701, 0
      %v899 = vsel %vm726, %v702, 0
      %v902 = vsel %vm726, %v703, 0
      %v905 = vsel %vm726, %v704, 0
      %v908 = vsel %vm726, %v705, 0
      %v911 = vsel %vm726, %v706, 0
      %v914 = vsel %vm726, %v707, 0
      %916 = vmatprep.subr.bf16.mxu0 0
      %917 = vmatpush1.bf16.msra.mxu0 %v720
      %918 = vmatprep.subr.bf16.mxu0 0
      %919 = vmatpush1.bf16.msra.mxu0 %v721
      %920 = vmatprep.subr.bf16.mxu0 0
      %921 = vmatpush1.bf16.msra.mxu0 %v722
      %922 = vmatprep.subr.bf16.mxu0 0
      %923 = vmatpush1.bf16.msra.mxu0 0
      %924 = vmatprep.subr.bf16.mxu0 0
      %925 = vmatpush1.bf16.msra.mxu0 0
      %926 = vmatprep.subr.bf16.mxu0 0
      %927 = vmatpush1.bf16.msra.mxu0 0
      %928 = vmatprep.subr.bf16.mxu0 0
      %929 = vmatpush1.bf16.msra.mxu0 0
      %930 = vmatprep.subr.bf16.mxu0 0
      %931 = vmatpush1.bf16.msra.mxu0 0
      %932 = vmatprep.subr.bf16.mxu0 0
      %933 = vmatpush1.bf16.msra.mxu0 0
      %934 = vmatprep.subr.bf16.mxu0 0
      %935 = vmatpush1.bf16.msra.mxu0 0
      %936 = vmatprep.subr.bf16.mxu0 0
      %937 = vmatpush1.bf16.msra.mxu0 0
      %938 = vmatprep.subr.bf16.mxu0 0
      %939 = vmatpush1.bf16.msra.mxu0 0
      %940 = vmatprep.subr.bf16.mxu0 0
      %941 = vmatpush1.bf16.msra.mxu0 0
      %942 = vmatprep.subr.bf16.mxu0 0
      %943 = vmatpush1.bf16.msra.mxu0 0
      %944 = vmatprep.subr.bf16.mxu0 0
      %945 = vmatpush1.bf16.msra.mxu0 0
      %946 = vmatprep.subr.bf16.mxu0 0
      %947 = vmatpush1.bf16.msra.mxu0 0
      %948 = vmatprep.mubr.bf16.mxu0 0
      %949 = vmatmul.mubr.bf16.gmra.mrb[0].mxu0 %v728
      %v950 = vpop.f32.mrb[0].mxu0
      %v951 = vadd.f32 %v392, %v950
      %v952 = vpop.f32.mrb[0].mxu0
      %v953 = vpop.f32.mrb[0].mxu0
      %v954 = vadd.f32 %v392, %v953
      %v955 = vpop.f32.mrb[0].mxu0
      %956 = vmatprep.mubr.bf16.mxu0 0
      %957 = vmatmul.mubr.bf16.gmra.mrb[0].mxu0 %v731
      %v958 = vpop.f32.mrb[0].mxu0
      %v959 = vadd.f32 %v392, %v958
      %v960 = vpop.f32.mrb[0].mxu0
      %v961 = vpop.f32.mrb[0].mxu0
      %v962 = vadd.f32 %v392, %v961
      %v963 = vpop.f32.mrb[0].mxu0
      %964 = vmatprep.mubr.bf16.mxu0 0
      %965 = vmatmul.mubr.bf16.gmra.mrb[0].mxu0 %v734
      %v966 = vpop.f32.mrb[0].mxu0
      %v967 = vadd.f32 %v392, %v966
      %v968 = vpop.f32.mrb[0].mxu0
      %v969 = vpop.f32.mrb[0].mxu0
      %v970 = vadd.f32 %v392, %v969
      %v971 = vpop.f32.mrb[0].mxu0
      %972 = vmatprep.mubr.bf16.mxu0 0
      %973 = vmatmul.mubr.bf16.gmra.mrb[0].mxu0 %v737
      %v974 = vpop.f32.mrb[0].mxu0
      %v975 = vadd.f32 %v392, %v974
      %v976 = vpop.f32.mrb[0].mxu0
      %v977 = vpop.f32.mrb[0].mxu0
      %v978 = vadd.f32 %v392, %v977
      %v979 = vpop.f32.mrb[0].mxu0
      %980 = vmatprep.mubr.bf16.mxu0 0
      %981 = vmatmul.mubr.bf16.gmra.mrb[0].mxu0 %v740
      %v982 = vpop.f32.mrb[0].mxu0
      %v983 = vadd.f32 %v392, %v982
      %v984 = vpop.f32.mrb[0].mxu0
      %v985 = vpop.f32.mrb[0].mxu0
      %v986 = vadd.f32 %v392, %v985
      %v987 = vpop.f32.mrb[0].mxu0
      %988 = vmatprep.mubr.bf16.mxu0 0
      %989 = vmatmul.mubr.bf16.gmra.mrb[0].mxu0 %v743
      %v990 = vpop.f32.mrb[0].mxu0
      %v991 = vadd.f32 %v392, %v990
      %v992 = vpop.f32.mrb[0].mxu0
      %v993 = vpop.f32.mrb[0].mxu0
      %v994 = vadd.f32 %v392, %v993
      %v995 = vpop.f32.mrb[0].mxu0
      %996 = vmatprep.mubr.bf16.mxu0 0
      %997 = vmatmul.mubr.bf16.gmra.mrb[0].mxu0 %v746
      %v998 = vpop.f32.mrb[0].mxu0
      %v999 = vadd.f32 %v392, %v998
      %v1000 = vpop.f32.mrb[0].mxu0
      %v1001 = vpop.f32.mrb[0].mxu0
      %v1002 = vadd.f32 %v392, %v1001
      %v1003 = vpop.f32.mrb[0].mxu0
      %1004 = vmatprep.mubr.bf16.mxu0 0
      %1005 = vmatmul.mubr.bf16.gmra.mrb[0].mxu0 %v749
      %v1006 = vpop.f32.mrb[0].mxu0
      %v1007 = vadd.f32 %v392, %v1006
      %v1008 = vpop.f32.mrb[0].mxu0
      %v1009 = vpop.f32.mrb[0].mxu0
      %v1010 = vadd.f32 %v392, %v1009
      %v1011 = vpop.f32.mrb[0].mxu0
      %1012 = vmatprep.mubr.bf16.mxu0 0
      %1013 = vmatmul.mubr.bf16.gmra.mrb[0].mxu0 %v752
      %v1014 = vpop.f32.mrb[0].mxu0
      %v1015 = vadd.f32 %v392, %v1014
      %v1016 = vpop.f32.mrb[0].mxu0
      %v1017 = vpop.f32.mrb[0].mxu0
      %v1018 = vadd.f32 %v392, %v1017
      %v1019 = vpop.f32.mrb[0].mxu0
      %1020 = vmatprep.mubr.bf16.mxu0 0
      %1021 = vmatmul.mubr.bf16.gmra.mrb[0].mxu0 %v755
      %v1022 = vpop.f32.mrb[0].mxu0
      %v1023 = vadd.f32 %v392, %v1022
      %v1024 = vpop.f32.mrb[0].mxu0
      %v1025 = vpop.f32.mrb[0].mxu0
      %v1026 = vadd.f32 %v392, %v1025
      %v1027 = vpop.f32.mrb[0].mxu0
      %1028 = vmatprep.mubr.bf16.mxu0 0
      %1029 = vmatmul.mubr.bf16.gmra.mrb[0].mxu0 %v758
      %v1030 = vpop.f32.mrb[0].mxu0
      %v1031 = vadd.f32 %v392, %v1030
      %v1032 = vpop.f32.mrb[0].mxu0
      %v1033 = vpop.f32.mrb[0].mxu0
      %v1034 = vadd.f32 %v392, %v1033
      %v1035 = vpop.f32.mrb[0].mxu0
      %1036 = vmatprep.mubr.bf16.mxu0 0
      %1037 = vmatmul.mubr.bf16.gmra.mrb[0].mxu0 %v761
      %v1038 = vpop.f32.mrb[0].mxu0
      %v1039 = vadd.f32 %v392, %v1038
      %v1040 = vpop.f32.mrb[0].mxu0
      %v1041 = vpop.f32.mrb[0].mxu0
      %v1042 = vadd.f32 %v392, %v1041
      %v1043 = vpop.f32.mrb[0].mxu0
      %1044 = vmatprep.mubr.bf16.mxu0 0
      %1045 = vmatmul.mubr.bf16.gmra.mrb[0].mxu0 %v764
      %v1046 = vpop.f32.mrb[0].mxu0
      %v1047 = vadd.f32 %v392, %v1046
      %v1048 = vpop.f32.mrb[0].mxu0
      %v1049 = vpop.f32.mrb[0].mxu0
      %v1050 = vadd.f32 %v392, %v1049
      %v1051 = vpop.f32.mrb[0].mxu0
      %1052 = vmatprep.mubr.bf16.mxu0 0
      %1053 = vmatmul.mubr.bf16.gmra.mrb[0].mxu0 %v767
      %v1054 = vpop.f32.mrb[0].mxu0
      %v1055 = vadd.f32 %v392, %v1054
      %v1056 = vpop.f32.mrb[0].mxu0
      %v1057 = vpop.f32.mrb[0].mxu0
      %v1058 = vadd.f32 %v392, %v1057
      %v1059 = vpop.f32.mrb[0].mxu0
      %1060 = vmatprep.mubr.bf16.mxu0 0
      %1061 = vmatmul.mubr.bf16.gmra.mrb[0].mxu0 %v770
      %v1062 = vpop.f32.mrb[0].mxu0
      %v1063 = vadd.f32 %v392, %v1062
      %v1064 = vpop.f32.mrb[0].mxu0
      %v1065 = vpop.f32.mrb[0].mxu0
      %v1066 = vadd.f32 %v392, %v1065
      %v1067 = vpop.f32.mrb[0].mxu0
      %1068 = vmatprep.mubr.bf16.mxu0 0
      %1069 = vmatmul.mubr.bf16.gmra.mrb[0].mxu0 %v773
      %v1070 = vpop.f32.mrb[0].mxu0
      %v1071 = vadd.f32 %v392, %v1070
      %v1072 = vpop.f32.mrb[0].mxu0
      %v1073 = vpop.f32.mrb[0].mxu0
      %v1074 = vadd.f32 %v392, %v1073
      %v1075 = vpop.f32.mrb[0].mxu0
      %1076 = vmatprep.mubr.bf16.mxu0 0
      %1077 = vmatmul.mubr.bf16.gmra.mrb[0].mxu0 %v776
      %v1078 = vpop.f32.mrb[0].mxu0
      %v1079 = vadd.f32 %v392, %v1078
      %v1080 = vpop.f32.mrb[0].mxu0
      %v1081 = vpop.f32.mrb[0].mxu0
      %v1082 = vadd.f32 %v392, %v1081
      %v1083 = vpop.f32.mrb[0].mxu0
      %1084 = vmatprep.mubr.bf16.mxu0 0
      %1085 = vmatmul.mubr.bf16.gmra.mrb[0].mxu0 %v779
      %v1086 = vpop.f32.mrb[0].mxu0
      %v1087 = vadd.f32 %v392, %v1086
      %v1088 = vpop.f32.mrb[0].mxu0
      %v1089 = vpop.f32.mrb[0].mxu0
      %v1090 = vadd.f32 %v392, %v1089
      %v1091 = vpop.f32.mrb[0].mxu0
      %1092 = vmatprep.mubr.bf16.mxu0 0
      %1093 = vmatmul.mubr.bf16.gmra.mrb[0].mxu0 %v782
      %v1094 = vpop.f32.mrb[0].mxu0
      %v1095 = vadd.f32 %v392, %v1094
      %v1096 = vpop.f32.mrb[0].mxu0
      %v1097 = vpop.f32.mrb[0].mxu0
      %v1098 = vadd.f32 %v392, %v1097
      %v1099 = vpop.f32.mrb[0].mxu0
      %1100 = vmatprep.mubr.bf16.mxu0 0
      %1101 = vmatmul.mubr.bf16.gmra.mrb[0].mxu0 %v785
      %v1102 = vpop.f32.mrb[0].mxu0
      %v1103 = vadd.f32 %v392, %v1102
      %v1104 = vpop.f32.mrb[0].mxu0
      %v1105 = vpop.f32.mrb[0].mxu0
      %v1106 = vadd.f32 %v392, %v1105
      %v1107 = vpop.f32.mrb[0].mxu0
      %1108 = vmatprep.mubr.bf16.mxu0 0
      %1109 = vmatmul.mubr.bf16.gmra.mrb[0].mxu0 %v788
      %v1110 = vpop.f32.mrb[0].mxu0
      %v1111 = vadd.f32 %v392, %v1110
      %v1112 = vpop.f32.mrb[0].mxu0
      %v1113 = vpop.f32.mrb[0].mxu0
      %v1114 = vadd.f32 %v392, %v1113
      %v1115 = vpop.f32.mrb[0].mxu0
      %1116 = vmatprep.mubr.bf16.mxu0 0
      %1117 = vmatmul.mubr.bf16.gmra.mrb[0].mxu0 %v791
      %v1118 = vpop.f32.mrb[0].mxu0
      %v1119 = vadd.f32 %v392, %v1118
      %v1120 = vpop.f32.mrb[0].mxu0
      %v1121 = vpop.f32.mrb[0].mxu0
      %v1122 = vadd.f32 %v392, %v1121
      %v1123 = vpop.f32.mrb[0].mxu0
      %1124 = vmatprep.mubr.bf16.mxu0 0
      %1125 = vmatmul.mubr.bf16.gmra.mrb[0].mxu0 %v794
      %v1126 = vpop.f32.mrb[0].mxu0
      %v1127 = vadd.f32 %v392, %v1126
      %v1128 = vpop.f32.mrb[0].mxu0
      %v1129 = vpop.f32.mrb[0].mxu0
      %v1130 = vadd.f32 %v392, %v1129
      %v1131 = vpop.f32.mrb[0].mxu0
      %1132 = vmatprep.mubr.bf16.mxu0 0
      %1133 = vmatmul.mubr.bf16.gmra.mrb[0].mxu0 %v797
      %v1134 = vpop.f32.mrb[0].mxu0
      %v1135 = vadd.f32 %v392, %v1134
      %v1136 = vpop.f32.mrb[0].mxu0
      %v1137 = vpop.f32.mrb[0].mxu0
      %v1138 = vadd.f32 %v392, %v1137
      %v1139 = vpop.f32.mrb[0].mxu0
      %1140 = vmatprep.mubr.bf16.mxu0 0
      %1141 = vmatmul.mubr.bf16.gmra.mrb[0].mxu0 %v800
      %v1142 = vpop.f32.mrb[0].mxu0
      %v1143 = vadd.f32 %v392, %v1142
      %v1144 = vpop.f32.mrb[0].mxu0
      %v1145 = vpop.f32.mrb[0].mxu0
      %v1146 = vadd.f32 %v392, %v1145
      %v1147 = vpop.f32.mrb[0].mxu0
      %1148 = vmatprep.mubr.bf16.mxu0 0
      %1149 = vmatmul.mubr.bf16.gmra.mrb[0].mxu0 %v803
      %v1150 = vpop.f32.mrb[0].mxu0
      %v1151 = vadd.f32 %v392, %v1150
      %v1152 = vpop.f32.mrb[0].mxu0
      %v1153 = vpop.f32.mrb[0].mxu0
      %v1154 = vadd.f32 %v392, %v1153
      %v1155 = vpop.f32.mrb[0].mxu0
      %1156 = vmatprep.mubr.bf16.mxu0 0
      %1157 = vmatmul.mubr.bf16.gmra.mrb[0].mxu0 %v806
      %v1158 = vpop.f32.mrb[0].mxu0
      %v1159 = vadd.f32 %v392, %v1158
      %v1160 = vpop.f32.mrb[0].mxu0
      %v1161 = vpop.f32.mrb[0].mxu0
      %v1162 = vadd.f32 %v392, %v1161
      %v1163 = vpop.f32.mrb[0].mxu0
      %1164 = vmatprep.mubr.bf16.mxu0 0
      %1165 = vmatmul.mubr.bf16.gmra.mrb[0].mxu0 %v809
      %v1166 = vpop.f32.mrb[0].mxu0
      %v1167 = vadd.f32 %v392, %v1166
      %v1168 = vpop.f32.mrb[0].mxu0
      %v1169 = vpop.f32.mrb[0].mxu0
      %v1170 = vadd.f32 %v392, %v1169
      %v1171 = vpop.f32.mrb[0].mxu0
      %1172 = vmatprep.mubr.bf16.mxu0 0
      %1173 = vmatmul.mubr.bf16.gmra.mrb[0].mxu0 %v812
      %v1174 = vpop.f32.mrb[0].mxu0
      %v1175 = vadd.f32 %v392, %v1174
      %v1176 = vpop.f32.mrb[0].mxu0
      %v1177 = vpop.f32.mrb[0].mxu0
      %v1178 = vadd.f32 %v392, %v1177
      %v1179 = vpop.f32.mrb[0].mxu0
      %1180 = vmatprep.mubr.bf16.mxu0 0
      %1181 = vmatmul.mubr.bf16.gmra.mrb[0].mxu0 %v815
      %v1182 = vpop.f32.mrb[0].mxu0
      %v1183 = vadd.f32 %v392, %v1182
      %v1184 = vpop.f32.mrb[0].mxu0
      %v1185 = vpop.f32.mrb[0].mxu0
      %v1186 = vadd.f32 %v392, %v1185
      %v1187 = vpop.f32.mrb[0].mxu0
      %1188 = vmatprep.mubr.bf16.mxu0 0
      %1189 = vmatmul.mubr.bf16.gmra.mrb[0].mxu0 %v818
      %v1190 = vpop.f32.mrb[0].mxu0
      %v1191 = vadd.f32 %v392, %v1190
      %v1192 = vpop.f32.mrb[0].mxu0
      %v1193 = vpop.f32.mrb[0].mxu0
      %v1194 = vadd.f32 %v392, %v1193
      %v1195 = vpop.f32.mrb[0].mxu0
      %1196 = vmatprep.mubr.bf16.mxu0 0
      %1197 = vmatmul.mubr.bf16.gmra.mrb[0].mxu0 %v821
      %v1198 = vpop.f32.mrb[0].mxu0
      %v1199 = vadd.f32 %v392, %v1198
      %v1200 = vpop.f32.mrb[0].mxu0
      %v1201 = vpop.f32.mrb[0].mxu0
      %v1202 = vadd.f32 %v392, %v1201
      %v1203 = vpop.f32.mrb[0].mxu0
      %1204 = vmatprep.mubr.bf16.mxu0 0
      %1205 = vmatmul.mubr.bf16.gmra.mrb[0].mxu0 %v824
      %v1206 = vpop.f32.mrb[0].mxu0
      %v1207 = vadd.f32 %v392, %v1206
      %v1208 = vpop.f32.mrb[0].mxu0
      %v1209 = vpop.f32.mrb[0].mxu0
      %v1210 = vadd.f32 %v392, %v1209
      %v1211 = vpop.f32.mrb[0].mxu0
      %1212 = vmatprep.mubr.bf16.mxu0 0
      %1213 = vmatmul.mubr.bf16.gmra.mrb[0].mxu0 %v827
      %v1214 = vpop.f32.mrb[0].mxu0
      %v1215 = vadd.f32 %v392, %v1214
      %v1216 = vpop.f32.mrb[0].mxu0
      %v1217 = vpop.f32.mrb[0].mxu0
      %v1218 = vadd.f32 %v392, %v1217
      %v1219 = vpop.f32.mrb[0].mxu0
      %1220 = vmatprep.mubr.bf16.mxu0 0
      %1221 = vmatmul.mubr.bf16.gmra.mrb[0].mxu0 %v830
      %v1222 = vpop.f32.mrb[0].mxu0
      %v1223 = vadd.f32 %v392, %v1222
      %v1224 = vpop.f32.mrb[0].mxu0
      %v1225 = vpop.f32.mrb[0].mxu0
      %v1226 = vadd.f32 %v392, %v1225
      %v1227 = vpop.f32.mrb[0].mxu0
      %1228 = vmatprep.mubr.bf16.mxu0 0
      %1229 = vmatmul.mubr.bf16.gmra.mrb[0].mxu0 %v833
      %v1230 = vpop.f32.mrb[0].mxu0
      %v1231 = vadd.f32 %v392, %v1230
      %v1232 = vpop.f32.mrb[0].mxu0
      %v1233 = vpop.f32.mrb[0].mxu0
      %v1234 = vadd.f32 %v392, %v1233
      %v1235 = vpop.f32.mrb[0].mxu0
      %1236 = vmatprep.mubr.bf16.mxu0 0
      %1237 = vmatmul.mubr.bf16.gmra.mrb[0].mxu0 %v836
      %v1238 = vpop.f32.mrb[0].mxu0
      %v1239 = vadd.f32 %v392, %v1238
      %v1240 = vpop.f32.mrb[0].mxu0
      %v1241 = vpop.f32.mrb[0].mxu0
      %v1242 = vadd.f32 %v392, %v1241
      %v1243 = vpop.f32.mrb[0].mxu0
      %1244 = vmatprep.mubr.bf16.mxu0 0
      %1245 = vmatmul.mubr.bf16.gmra.mrb[0].mxu0 %v839
      %v1246 = vpop.f32.mrb[0].mxu0
      %v1247 = vadd.f32 %v392, %v1246
      %v1248 = vpop.f32.mrb[0].mxu0
      %v1249 = vpop.f32.mrb[0].mxu0
      %v1250 = vadd.f32 %v392, %v1249
      %v1251 = vpop.f32.mrb[0].mxu0
      %1252 = vmatprep.mubr.bf16.mxu0 0
      %1253 = vmatmul.mubr.bf16.gmra.mrb[0].mxu0 %v842
      %v1254 = vpop.f32.mrb[0].mxu0
      %v1255 = vadd.f32 %v392, %v1254
      %v1256 = vpop.f32.mrb[0].mxu0
      %v1257 = vpop.f32.mrb[0].mxu0
      %v1258 = vadd.f32 %v392, %v1257
      %v1259 = vpop.f32.mrb[0].mxu0
      %1260 = vmatprep.mubr.bf16.mxu0 0
      %1261 = vmatmul.mubr.bf16.gmra.mrb[0].mxu0 %v845
      %v1262 = vpop.f32.mrb[0].mxu0
      %v1263 = vadd.f32 %v392, %v1262
      %v1264 = vpop.f32.mrb[0].mxu0
      %v1265 = vpop.f32.mrb[0].mxu0
      %v1266 = vadd.f32 %v392, %v1265
      %v1267 = vpop.f32.mrb[0].mxu0
      %1268 = vmatprep.mubr.bf16.mxu0 0
      %1269 = vmatmul.mubr.bf16.gmra.mrb[0].mxu0 %v848
      %v1270 = vpop.f32.mrb[0].mxu0
      %v1271 = vadd.f32 %v392, %v1270
      %v1272 = vpop.f32.mrb[0].mxu0
      %v1273 = vpop.f32.mrb[0].mxu0
      %v1274 = vadd.f32 %v392, %v1273
      %v1275 = vpop.f32.mrb[0].mxu0
      %1276 = vmatprep.mubr.bf16.mxu0 0
      %1277 = vmatmul.mubr.bf16.gmra.mrb[0].mxu0 %v851
      %v1278 = vpop.f32.mrb[0].mxu0
      %v1279 = vadd.f32 %v392, %v1278
      %v1280 = vpop.f32.mrb[0].mxu0
      %v1281 = vpop.f32.mrb[0].mxu0
      %v1282 = vadd.f32 %v392, %v1281
      %v1283 = vpop.f32.mrb[0].mxu0
      %1284 = vmatprep.mubr.bf16.mxu0 0
      %1285 = vmatmul.mubr.bf16.gmra.mrb[0].mxu0 %v854
      %v1286 = vpop.f32.mrb[0].mxu0
      %v1287 = vadd.f32 %v392, %v1286
      %v1288 = vpop.f32.mrb[0].mxu0
      %v1289 = vpop.f32.mrb[0].mxu0
      %v1290 = vadd.f32 %v392, %v1289
      %v1291 = vpop.f32.mrb[0].mxu0
      %1292 = vmatprep.mubr.bf16.mxu0 0
      %1293 = vmatmul.mubr.bf16.gmra.mrb[0].mxu0 %v857
      %v1294 = vpop.f32.mrb[0].mxu0
      %v1295 = vadd.f32 %v392, %v1294
      %v1296 = vpop.f32.mrb[0].mxu0
      %v1297 = vpop.f32.mrb[0].mxu0
      %v1298 = vadd.f32 %v392, %v1297
      %v1299 = vpop.f32.mrb[0].mxu0
      %1300 = vmatprep.mubr.bf16.mxu0 0
      %1301 = vmatmul.mubr.bf16.gmra.mrb[0].mxu0 %v860
      %v1302 = vpop.f32.mrb[0].mxu0
      %v1303 = vadd.f32 %v392, %v1302
      %v1304 = vpop.f32.mrb[0].mxu0
      %v1305 = vpop.f32.mrb[0].mxu0
      %v1306 = vadd.f32 %v392, %v1305
      %v1307 = vpop.f32.mrb[0].mxu0
      %1308 = vmatprep.mubr.bf16.mxu0 0
      %1309 = vmatmul.mubr.bf16.gmra.mrb[0].mxu0 %v863
      %v1310 = vpop.f32.mrb[0].mxu0
      %v1311 = vadd.f32 %v392, %v1310
      %v1312 = vpop.f32.mrb[0].mxu0
      %v1313 = vpop.f32.mrb[0].mxu0
      %v1314 = vadd.f32 %v392, %v1313
      %v1315 = vpop.f32.mrb[0].mxu0
      %1316 = vmatprep.mubr.bf16.mxu0 0
      %1317 = vmatmul.mubr.bf16.gmra.mrb[0].mxu0 %v866
      %v1318 = vpop.f32.mrb[0].mxu0
      %v1319 = vadd.f32 %v392, %v1318
      %v1320 = vpop.f32.mrb[0].mxu0
      %v1321 = vpop.f32.mrb[0].mxu0
      %v1322 = vadd.f32 %v392, %v1321
      %v1323 = vpop.f32.mrb[0].mxu0
      %1324 = vmatprep.mubr.bf16.mxu0 0
      %1325 = vmatmul.mubr.bf16.gmra.mrb[0].mxu0 %v869
      %v1326 = vpop.f32.mrb[0].mxu0
      %v1327 = vadd.f32 %v392, %v1326
      %v1328 = vpop.f32.mrb[0].mxu0
      %v1329 = vpop.f32.mrb[0].mxu0
      %v1330 = vadd.f32 %v392, %v1329
      %v1331 = vpop.f32.mrb[0].mxu0
      %1332 = vmatprep.mubr.bf16.mxu0 0
      %1333 = vmatmul.mubr.bf16.gmra.mrb[0].mxu0 %v872
      %v1334 = vpop.f32.mrb[0].mxu0
      %v1335 = vadd.f32 %v392, %v1334
      %v1336 = vpop.f32.mrb[0].mxu0
      %v1337 = vpop.f32.mrb[0].mxu0
      %v1338 = vadd.f32 %v392, %v1337
      %v1339 = vpop.f32.mrb[0].mxu0
      %1340 = vmatprep.mubr.bf16.mxu0 0
      %1341 = vmatmul.mubr.bf16.gmra.mrb[0].mxu0 %v875
      %v1342 = vpop.f32.mrb[0].mxu0
      %v1343 = vadd.f32 %v392, %v1342
      %v1344 = vpop.f32.mrb[0].mxu0
      %v1345 = vpop.f32.mrb[0].mxu0
      %v1346 = vadd.f32 %v392, %v1345
      %v1347 = vpop.f32.mrb[0].mxu0
      %1348 = vmatprep.mubr.bf16.mxu0 0
      %1349 = vmatmul.mubr.bf16.gmra.mrb[0].mxu0 %v878
      %v1350 = vpop.f32.mrb[0].mxu0
      %v1351 = vadd.f32 %v392, %v1350
      %v1352 = vpop.f32.mrb[0].mxu0
      %v1353 = vpop.f32.mrb[0].mxu0
      %v1354 = vadd.f32 %v392, %v1353
      %v1355 = vpop.f32.mrb[0].mxu0
      %1356 = vmatprep.mubr.bf16.mxu0 0
      %1357 = vmatmul.mubr.bf16.gmra.mrb[0].mxu0 %v881
      %v1358 = vpop.f32.mrb[0].mxu0
      %v1359 = vadd.f32 %v392, %v1358
      %v1360 = vpop.f32.mrb[0].mxu0
      %v1361 = vpop.f32.mrb[0].mxu0
      %v1362 = vadd.f32 %v392, %v1361
      %v1363 = vpop.f32.mrb[0].mxu0
      %1364 = vmatprep.mubr.bf16.mxu0 0
      %1365 = vmatmul.mubr.bf16.gmra.mrb[0].mxu0 %v884
      %v1366 = vpop.f32.mrb[0].mxu0
      %v1367 = vadd.f32 %v392, %v1366
      %v1368 = vpop.f32.mrb[0].mxu0
      %v1369 = vpop.f32.mrb[0].mxu0
      %v1370 = vadd.f32 %v392, %v1369
      %v1371 = vpop.f32.mrb[0].mxu0
      %1372 = vmatprep.mubr.bf16.mxu0 0
      %1373 = vmatmul.mubr.bf16.gmra.mrb[0].mxu0 %v887
      %v1374 = vpop.f32.mrb[0].mxu0
      %v1375 = vadd.f32 %v392, %v1374
      %v1376 = vpop.f32.mrb[0].mxu0
      %v1377 = vpop.f32.mrb[0].mxu0
      %v1378 = vadd.f32 %v392, %v1377
      %v1379 = vpop.f32.mrb[0].mxu0
      %1380 = vmatprep.mubr.bf16.mxu0 0
      %1381 = vmatmul.mubr.bf16.gmra.mrb[0].mxu0 %v890
      %v1382 = vpop.f32.mrb[0].mxu0
      %v1383 = vadd.f32 %v392, %v1382
      %v1384 = vpop.f32.mrb[0].mxu0
      %v1385 = vpop.f32.mrb[0].mxu0
      %v1386 = vadd.f32 %v392, %v1385
      %v1387 = vpop.f32.mrb[0].mxu0
      %1388 = vmatprep.mubr.bf16.mxu0 0
      %1389 = vmatmul.mubr.bf16.gmra.mrb[0].mxu0 %v893
      %v1390 = vpop.f32.mrb[0].mxu0
      %v1391 = vadd.f32 %v392, %v1390
      %v1392 = vpop.f32.mrb[0].mxu0
      %v1393 = vpop.f32.mrb[0].mxu0
      %v1394 = vadd.f32 %v392, %v1393
      %v1395 = vpop.f32.mrb[0].mxu0
      %1396 = vmatprep.mubr.bf16.mxu0 0
      %1397 = vmatmul.mubr.bf16.gmra.mrb[0].mxu0 %v896
      %v1398 = vpop.f32.mrb[0].mxu0
      %v1399 = vadd.f32 %v392, %v1398
      %v1400 = vpop.f32.mrb[0].mxu0
      %v1401 = vpop.f32.mrb[0].mxu0
      %v1402 = vadd.f32 %v392, %v1401
      %v1403 = vpop.f32.mrb[0].mxu0
      %1404 = vmatprep.mubr.bf16.mxu0 0
      %1405 = vmatmul.mubr.bf16.gmra.mrb[0].mxu0 %v899
      %v1406 = vpop.f32.mrb[0].mxu0
      %v1407 = vadd.f32 %v392, %v1406
      %v1408 = vpop.f32.mrb[0].mxu0
      %v1409 = vpop.f32.mrb[0].mxu0
      %v1410 = vadd.f32 %v392, %v1409
      %v1411 = vpop.f32.mrb[0].mxu0
      %1412 = vmatprep.mubr.bf16.mxu0 0
      %1413 = vmatmul.mubr.bf16.gmra.mrb[0].mxu0 %v902
      %v1414 = vpop.f32.mrb[0].mxu0
      %v1415 = vadd.f32 %v392, %v1414
      %v1416 = vpop.f32.mrb[0].mxu0
      %v1417 = vpop.f32.mrb[0].mxu0
      %v1418 = vadd.f32 %v392, %v1417
      %v1419 = vpop.f32.mrb[0].mxu0
      %1420 = vmatprep.mubr.bf16.mxu0 0
      %1421 = vmatmul.mubr.bf16.gmra.mrb[0].mxu0 %v905
      %v1422 = vpop.f32.mrb[0].mxu0
      %v1423 = vadd.f32 %v392, %v1422
      %v1424 = vpop.f32.mrb[0].mxu0
      %v1425 = vpop.f32.mrb[0].mxu0
      %v1426 = vadd.f32 %v392, %v1425
      %v1427 = vpop.f32.mrb[0].mxu0
      %1428 = vmatprep.mubr.bf16.mxu0 0
      %1429 = vmatmul.mubr.bf16.gmra.mrb[0].mxu0 %v908
      %v1430 = vpop.f32.mrb[0].mxu0
      %v1431 = vadd.f32 %v392, %v1430
      %v1432 = vpop.f32.mrb[0].mxu0
      %v1433 = vpop.f32.mrb[0].mxu0
      %v1434 = vadd.f32 %v392, %v1433
      %v1435 = vpop.f32.mrb[0].mxu0
      %1436 = vmatprep.mubr.bf16.mxu0 0
      %1437 = vmatmul.mubr.bf16.gmra.mrb[0].mxu0 %v911
      %v1438 = vpop.f32.mrb[0].mxu0
      %v1439 = vadd.f32 %v392, %v1438
      %v1440 = vpop.f32.mrb[0].mxu0
      %v1441 = vpop.f32.mrb[0].mxu0
      %v1442 = vadd.f32 %v392, %v1441
      %v1443 = vpop.f32.mrb[0].mxu0
      %1444 = vmatprep.mubr.bf16.mxu0 0
      %1445 = vmatmul.mubr.bf16.gmra.mrb[0].mxu0 %v914
      %v1446 = vpop.f32.mrb[0].mxu0
      %v1447 = vadd.f32 %v392, %v1446
      %v1448 = vpop.f32.mrb[0].mxu0
      %v1449 = vpop.f32.mrb[0].mxu0
      %v1450 = vadd.f32 %v392, %v1449
      %v1451 = vpop.f32.mrb[0].mxu0
      %1452 = vdwg.mxu0
      %v1453 = vmax.f32 %v951, 0.0
      %v1454 = vmax.f32 %v954, 0.0
      %v1455 = vmax.f32 %v959, 0.0
      %v1456 = vmax.f32 %v962, 0.0
      %v1457 = vmax.f32 %v967, 0.0
      %v1458 = vmax.f32 %v970, 0.0
      %v1459 = vmax.f32 %v975, 0.0
      %v1460 = vmax.f32 %v978, 0.0
      %v1461 = vmax.f32 %v983, 0.0
      %v1462 = vmax.f32 %v986, 0.0
      %v1463 = vmax.f32 %v991, 0.0
      %v1464 = vmax.f32 %v994, 0.0
      %v1465 = vmax.f32 %v999, 0.0
      %v1466 = vmax.f32 %v1002, 0.0
      %v1467 = vmax.f32 %v1007, 0.0
      %v1468 = vmax.f32 %v1010, 0.0
      %v1469 = vmax.f32 %v1015, 0.0
      %v1470 = vmax.f32 %v1018, 0.0
      %v1471 = vmax.f32 %v1023, 0.0
      %v1472 = vmax.f32 %v1026, 0.0
      %v1473 = vmax.f32 %v1031, 0.0
      %v1474 = vmax.f32 %v1034, 0.0
      %v1475 = vmax.f32 %v1039, 0.0
      %v1476 = vmax.f32 %v1042, 0.0
      %v1477 = vmax.f32 %v1047, 0.0
      %v1478 = vmax.f32 %v1050, 0.0
      %v1479 = vmax.f32 %v1055, 0.0
      %v1480 = vmax.f32 %v1058, 0.0
      %v1481 = vmax.f32 %v1063, 0.0
      %v1482 = vmax.f32 %v1066, 0.0
      %v1483 = vmax.f32 %v1071, 0.0
      %v1484 = vmax.f32 %v1074, 0.0
      %v1485 = vmax.f32 %v1079, 0.0
      %v1486 = vmax.f32 %v1082, 0.0
      %v1487 = vmax.f32 %v1087, 0.0
      %v1488 = vmax.f32 %v1090, 0.0
      %v1489 = vmax.f32 %v1095, 0.0
      %v1490 = vmax.f32 %v1098, 0.0
      %v1491 = vmax.f32 %v1103, 0.0
      %v1492 = vmax.f32 %v1106, 0.0
      %v1493 = vmax.f32 %v1111, 0.0
      %v1494 = vmax.f32 %v1114, 0.0
      %v1495 = vmax.f32 %v1119, 0.0
      %v1496 = vmax.f32 %v1122, 0.0
      %v1497 = vmax.f32 %v1127, 0.0
      %v1498 = vmax.f32 %v1130, 0.0
      %v1499 = vmax.f32 %v1135, 0.0
      %v1500 = vmax.f32 %v1138, 0.0
      %v1501 = vmax.f32 %v1143, 0.0
      %v1502 = vmax.f32 %v1146, 0.0
      %v1503 = vmax.f32 %v1151, 0.0
      %v1504 = vmax.f32 %v1154, 0.0
      %v1505 = vmax.f32 %v1159, 0.0
      %v1506 = vmax.f32 %v1162, 0.0
      %v1507 = vmax.f32 %v1167, 0.0
      %v1508 = vmax.f32 %v1170, 0.0
      %v1509 = vmax.f32 %v1175, 0.0
      %v1510 = vmax.f32 %v1178, 0.0
      %v1511 = vmax.f32 %v1183, 0.0
      %v1512 = vmax.f32 %v1186, 0.0
      %v1513 = vmax.f32 %v1191, 0.0
      %v1514 = vmax.f32 %v1194, 0.0
      %v1515 = vmax.f32 %v1199, 0.0
      %v1516 = vmax.f32 %v1202, 0.0
      %v1517 = vmax.f32 %v1207, 0.0
      %v1518 = vmax.f32 %v1210, 0.0
      %v1519 = vmax.f32 %v1215, 0.0
      %v1520 = vmax.f32 %v1218, 0.0
      %v1521 = vmax.f32 %v1223, 0.0
      %v1522 = vmax.f32 %v1226, 0.0
      %v1523 = vmax.f32 %v1231, 0.0
      %v1524 = vmax.f32 %v1234, 0.0
      %v1525 = vmax.f32 %v1239, 0.0
      %v1526 = vmax.f32 %v1242, 0.0
      %v1527 = vmax.f32 %v1247, 0.0
      %v1528 = vmax.f32 %v1250, 0.0
      %v1529 = vmax.f32 %v1255, 0.0
      %v1530 = vmax.f32 %v1258, 0.0
      %v1531 = vmax.f32 %v1263, 0.0
      %v1532 = vmax.f32 %v1266, 0.0
      %v1533 = vmax.f32 %v1271, 0.0
      %v1534 = vmax.f32 %v1274, 0.0
      %v1535 = vmax.f32 %v1279, 0.0
      %v1536 = vmax.f32 %v1282, 0.0
      %v1537 = vmax.f32 %v1287, 0.0
      %v1538 = vmax.f32 %v1290, 0.0
      %v1539 = vmax.f32 %v1295, 0.0
      %v1540 = vmax.f32 %v1298, 0.0
      %v1541 = vmax.f32 %v1303, 0.0
      %v1542 = vmax.f32 %v1306, 0.0
      %v1543 = vmax.f32 %v1311, 0.0
      %v1544 = vmax.f32 %v1314, 0.0
      %v1545 = vmax.f32 %v1319, 0.0
      %v1546 = vmax.f32 %v1322, 0.0
      %v1547 = vmax.f32 %v1327, 0.0
      %v1548 = vmax.f32 %v1330, 0.0
      %v1549 = vmax.f32 %v1335, 0.0
      %v1550 = vmax.f32 %v1338, 0.0
      %v1551 = vmax.f32 %v1343, 0.0
      %v1552 = vmax.f32 %v1346, 0.0
      %v1553 = vmax.f32 %v1351, 0.0
      %v1554 = vmax.f32 %v1354, 0.0
      %v1555 = vmax.f32 %v1359, 0.0
      %v1556 = vmax.f32 %v1362, 0.0
      %v1557 = vmax.f32 %v1367, 0.0
      %v1558 = vmax.f32 %v1370, 0.0
      %v1559 = vmax.f32 %v1375, 0.0
      %v1560 = vmax.f32 %v1378, 0.0
      %v1561 = vmax.f32 %v1383, 0.0
      %v1562 = vmax.f32 %v1386, 0.0
      %v1563 = vmax.f32 %v1391, 0.0
      %v1564 = vmax.f32 %v1394, 0.0
      %v1565 = vmax.f32 %v1399, 0.0
      %v1566 = vmax.f32 %v1402, 0.0
      %v1567 = vmax.f32 %v1407, 0.0
      %v1568 = vmax.f32 %v1410, 0.0
      %v1569 = vmax.f32 %v1415, 0.0
      %v1570 = vmax.f32 %v1418, 0.0
      %v1571 = vmax.f32 %v1423, 0.0
      %v1572 = vmax.f32 %v1426, 0.0
      %v1573 = vmax.f32 %v1431, 0.0
      %v1574 = vmax.f32 %v1434, 0.0
      %v1575 = vmax.f32 %v1439, 0.0
      %v1576 = vmax.f32 %v1442, 0.0
      %v1577 = vmax.f32 %v1447, 0.0
      %v1578 = vmax.f32 %v1450, 0.0
      %v1579 = vpack.c.bf16 %v1454, %v1453
      %v1580 = vpack.c.bf16 %v1456, %v1455
      %v1581 = vpack.c.bf16 %v1458, %v1457
      %v1582 = vpack.c.bf16 %v1460, %v1459
      %v1583 = vpack.c.bf16 %v1462, %v1461
      %v1584 = vpack.c.bf16 %v1464, %v1463
      %v1585 = vpack.c.bf16 %v1466, %v1465
      %v1586 = vpack.c.bf16 %v1468, %v1467
      %v1587 = vpack.c.bf16 %v1470, %v1469
      %v1588 = vpack.c.bf16 %v1472, %v1471
      %v1589 = vpack.c.bf16 %v1474, %v1473
      %v1590 = vpack.c.bf16 %v1476, %v1475
      %v1591 = vpack.c.bf16 %v1478, %v1477
      %v1592 = vpack.c.bf16 %v1480, %v1479
      %v1593 = vpack.c.bf16 %v1482, %v1481
      %v1594 = vpack.c.bf16 %v1484, %v1483
      %v1595 = vpack.c.bf16 %v1486, %v1485
      %v1596 = vpack.c.bf16 %v1488, %v1487
      %v1597 = vpack.c.bf16 %v1490, %v1489
      %v1598 = vpack.c.bf16 %v1492, %v1491
      %v1599 = vpack.c.bf16 %v1494, %v1493
      %v1600 = vpack.c.bf16 %v1496, %v1495
      %v1601 = vpack.c.bf16 %v1498, %v1497
      %v1602 = vpack.c.bf16 %v1500, %v1499
      %v1603 = vpack.c.bf16 %v1502, %v1501
      %v1604 = vpack.c.bf16 %v1504, %v1503
      %v1605 = vpack.c.bf16 %v1506, %v1505
      %v1606 = vpack.c.bf16 %v1508, %v1507
      %v1607 = vpack.c.bf16 %v1510, %v1509
      %v1608 = vpack.c.bf16 %v1512, %v1511
      %v1609 = vpack.c.bf16 %v1514, %v1513
      %v1610 = vpack.c.bf16 %v1516, %v1515
      %v1611 = vpack.c.bf16 %v1518, %v1517
      %v1612 = vpack.c.bf16 %v1520, %v1519
      %v1613 = vpack.c.bf16 %v1522, %v1521
      %v1614 = vpack.c.bf16 %v1524, %v1523
      %v1615 = vpack.c.bf16 %v1526, %v1525
      %v1616 = vpack.c.bf16 %v1528, %v1527
      %v1617 = vpack.c.bf16 %v1530, %v1529
      %v1618 = vpack.c.bf16 %v1532, %v1531
      %v1619 = vpack.c.bf16 %v1534, %v1533
      %v1620 = vpack.c.bf16 %v1536, %v1535
      %v1621 = vpack.c.bf16 %v1538, %v1537
      %v1622 = vpack.c.bf16 %v1540, %v1539
      %v1623 = vpack.c.bf16 %v1542, %v1541
      %v1624 = vpack.c.bf16 %v1544, %v1543
      %v1625 = vpack.c.bf16 %v1546, %v1545
      %v1626 = vpack.c.bf16 %v1548, %v1547
      %v1627 = vpack.c.bf16 %v1550, %v1549
      %v1628 = vpack.c.bf16 %v1552, %v1551
      %v1629 = vpack.c.bf16 %v1554, %v1553
      %v1630 = vpack.c.bf16 %v1556, %v1555
      %v1631 = vpack.c.bf16 %v1558, %v1557
      %v1632 = vpack.c.bf16 %v1560, %v1559
      %v1633 = vpack.c.bf16 %v1562, %v1561
      %v1634 = vpack.c.bf16 %v1564, %v1563
      %v1635 = vpack.c.bf16 %v1566, %v1565
      %v1636 = vpack.c.bf16 %v1568, %v1567
      %v1637 = vpack.c.bf16 %v1570, %v1569
      %v1638 = vpack.c.bf16 %v1572, %v1571
      %v1639 = vpack.c.bf16 %v1574, %v1573
      %v1640 = vpack.c.bf16 %v1576, %v1575
      %v1641 = vpack.c.bf16 %v1578, %v1577
      %v1642 = vld [vmem:[%s3] sm:$0xf]
      %v1643 = vld [vmem:[%s3 + $0x4] sm:$0xf]
      %v1644 = vld [vmem:[%s3 + $0x8] sm:$0xf]
      %v1645 = vld [vmem:[%s3 + $0xc] sm:$0xf]
      %v1646 = vld [vmem:[%s2 + $0x1] sm:$0x1]
      %v1647 = vlaneseq
      %v1648 = vshrl.u32 %v1647, 7
      %v1649 = vsub.s32 0, %v1648
      %v1650 = vrot.slane %v1646, %v1649
      %v1655 = vunpack.c.l.b16 %v1642
      %v1656 = vunpack.c.l.b16 %v1643
      %v1657 = vunpack.c.l.b16 %v1644
      %v1658 = vunpack.c.l.b16 %v1645
      %v1659 = vpack.c.b16 %v1656, %v1655
      %v1660 = vpack.c.b16 %v1658, %v1657
      %vm1663 = vcmask 261120
      %v1665 = vsel %vm1663, %v1579, 0
      %v1668 = vsel %vm1663, %v1580, 0
      %v1671 = vsel %vm1663, %v1581, 0
      %v1674 = vsel %vm1663, %v1582, 0
      %v1677 = vsel %vm1663, %v1583, 0
      %v1680 = vsel %vm1663, %v1584, 0
      %v1683 = vsel %vm1663, %v1585, 0
      %v1686 = vsel %vm1663, %v1586, 0
      %v1689 = vsel %vm1663, %v1587, 0
      %v1692 = vsel %vm1663, %v1588, 0
      %v1695 = vsel %vm1663, %v1589, 0
      %v1698 = vsel %vm1663, %v1590, 0
      %v1701 = vsel %vm1663, %v1591, 0
      %v1704 = vsel %vm1663, %v1592, 0
      %v1707 = vsel %vm1663, %v1593, 0
      %v1710 = vsel %vm1663, %v1594, 0
      %v1713 = vsel %vm1663, %v1595, 0
      %v1716 = vsel %vm1663, %v1596, 0
      %v1719 = vsel %vm1663, %v1597, 0
      %v1722 = vsel %vm1663, %v1598, 0
      %v1725 = vsel %vm1663, %v1599, 0
      %v1728 = vsel %vm1663, %v1600, 0
      %v1731 = vsel %vm1663, %v1601, 0
      %v1734 = vsel %vm1663, %v1602, 0
      %v1737 = vsel %vm1663, %v1603, 0
      %v1740 = vsel %vm1663, %v1604, 0
      %v1743 = vsel %vm1663, %v1605, 0
      %v1746 = vsel %vm1663, %v1606, 0
      %v1749 = vsel %vm1663, %v1607, 0
      %v1752 = vsel %vm1663, %v1608, 0
      %v1755 = vsel %vm1663, %v1609, 0
      %v1758 = vsel %vm1663, %v1610, 0
      %v1761 = vsel %vm1663, %v1611, 0
      %v1764 = vsel %vm1663, %v1612, 0
      %v1767 = vsel %vm1663, %v1613, 0
      %v1770 = vsel %vm1663, %v1614, 0
      %v1773 = vsel %vm1663, %v1615, 0
      %v1776 = vsel %vm1663, %v1616, 0
      %v1779 = vsel %vm1663, %v1617, 0
      %v1782 = vsel %vm1663, %v1618, 0
      %v1785 = vsel %vm1663, %v1619, 0
      %v1788 = vsel %vm1663, %v1620, 0
      %v1791 = vsel %vm1663, %v1621, 0
      %v1794 = vsel %vm1663, %v1622, 0
      %v1797 = vsel %vm1663, %v1623, 0
      %v1800 = vsel %vm1663, %v1624, 0
      %v1803 = vsel %vm1663, %v1625, 0
      %v1806 = vsel %vm1663, %v1626, 0
      %v1809 = vsel %vm1663, %v1627, 0
      %v1812 = vsel %vm1663, %v1628, 0
      %v1815 = vsel %vm1663, %v1629, 0
      %v1818 = vsel %vm1663, %v1630, 0
      %v1821 = vsel %vm1663, %v1631, 0
      %v1824 = vsel %vm1663, %v1632, 0
      %v1827 = vsel %vm1663, %v1633, 0
      %v1830 = vsel %vm1663, %v1634, 0
      %v1833 = vsel %vm1663, %v1635, 0
      %v1836 = vsel %vm1663, %v1636, 0
      %v1839 = vsel %vm1663, %v1637, 0
      %v1842 = vsel %vm1663, %v1638, 0
      %v1845 = vsel %vm1663, %v1639, 0
      %v1848 = vsel %vm1663, %v1640, 0
      %v1851 = vsel %vm1663, %v1641, 0
      %1853 = vmatprep.subr.bf16.mxu0 0
      %1854 = vmatpush1.bf16.msra.mxu0 %v1659
      %1855 = vmatprep.subr.bf16.mxu0 0
      %1856 = vmatpush1.bf16.msra.mxu0 %v1660
      %1857 = vmatprep.subr.bf16.mxu0 0
      %1858 = vmatpush1.bf16.msra.mxu0 0
      %1859 = vmatprep.subr.bf16.mxu0 0
      %1860 = vmatpush1.bf16.msra.mxu0 0
      %1861 = vmatprep.subr.bf16.mxu0 0
      %1862 = vmatpush1.bf16.msra.mxu0 0
      %1863 = vmatprep.subr.bf16.mxu0 0
      %1864 = vmatpush1.bf16.msra.mxu0 0
      %1865 = vmatprep.subr.bf16.mxu0 0
      %1866 = vmatpush1.bf16.msra.mxu0 0
      %1867 = vmatprep.subr.bf16.mxu0 0
      %1868 = vmatpush1.bf16.msra.mxu0 0
      %1869 = vmatprep.subr.bf16.mxu0 0
      %1870 = vmatpush1.bf16.msra.mxu0 0
      %1871 = vmatprep.subr.bf16.mxu0 0
      %1872 = vmatpush1.bf16.msra.mxu0 0
      %1873 = vmatprep.subr.bf16.mxu0 0
      %1874 = vmatpush1.bf16.msra.mxu0 0
      %1875 = vmatprep.subr.bf16.mxu0 0
      %1876 = vmatpush1.bf16.msra.mxu0 0
      %1877 = vmatprep.subr.bf16.mxu0 0
      %1878 = vmatpush1.bf16.msra.mxu0 0
      %1879 = vmatprep.subr.bf16.mxu0 0
      %1880 = vmatpush1.bf16.msra.mxu0 0
      %1881 = vmatprep.subr.bf16.mxu0 0
      %1882 = vmatpush1.bf16.msra.mxu0 0
      %1883 = vmatprep.subr.bf16.mxu0 0
      %1884 = vmatpush1.bf16.msra.mxu0 0
      %1885 = vmatprep.mubr.bf16.mxu0 0
      %1886 = vmatmul.mubr.bf16.gmra.mrb[0].mxu0 %v1665
      %v1887 = vpop.f32.mrb[0].mxu0
      %v1888 = vadd.f32 %v1650, %v1887
      %v1889 = vpop.f32.mrb[0].mxu0
      %v1890 = vpop.f32.mrb[0].mxu0
      %v1891 = vadd.f32 %v1650, %v1890
      %v1892 = vpop.f32.mrb[0].mxu0
      %1893 = vmatprep.mubr.bf16.mxu0 0
      %1894 = vmatmul.mubr.bf16.gmra.mrb[0].mxu0 %v1668
      %v1895 = vpop.f32.mrb[0].mxu0
      %v1896 = vadd.f32 %v1650, %v1895
      %v1897 = vpop.f32.mrb[0].mxu0
      %v1898 = vpop.f32.mrb[0].mxu0
      %v1899 = vadd.f32 %v1650, %v1898
      %v1900 = vpop.f32.mrb[0].mxu0
      %1901 = vmatprep.mubr.bf16.mxu0 0
      %1902 = vmatmul.mubr.bf16.gmra.mrb[0].mxu0 %v1671
      %v1903 = vpop.f32.mrb[0].mxu0
      %v1904 = vadd.f32 %v1650, %v1903
      %v1905 = vpop.f32.mrb[0].mxu0
      %v1906 = vpop.f32.mrb[0].mxu0
      %v1907 = vadd.f32 %v1650, %v1906
      %v1908 = vpop.f32.mrb[0].mxu0
      %1909 = vmatprep.mubr.bf16.mxu0 0
      %1910 = vmatmul.mubr.bf16.gmra.mrb[0].mxu0 %v1674
      %v1911 = vpop.f32.mrb[0].mxu0
      %v1912 = vadd.f32 %v1650, %v1911
      %v1913 = vpop.f32.mrb[0].mxu0
      %v1914 = vpop.f32.mrb[0].mxu0
      %v1915 = vadd.f32 %v1650, %v1914
      %v1916 = vpop.f32.mrb[0].mxu0
      %1917 = vmatprep.mubr.bf16.mxu0 0
      %1918 = vmatmul.mubr.bf16.gmra.mrb[0].mxu0 %v1677
      %v1919 = vpop.f32.mrb[0].mxu0
      %v1920 = vadd.f32 %v1650, %v1919
      %v1921 = vpop.f32.mrb[0].mxu0
      %v1922 = vpop.f32.mrb[0].mxu0
      %v1923 = vadd.f32 %v1650, %v1922
      %v1924 = vpop.f32.mrb[0].mxu0
      %1925 = vmatprep.mubr.bf16.mxu0 0
      %1926 = vmatmul.mubr.bf16.gmra.mrb[0].mxu0 %v1680
      %v1927 = vpop.f32.mrb[0].mxu0
      %v1928 = vadd.f32 %v1650, %v1927
      %v1929 = vpop.f32.mrb[0].mxu0
      %v1930 = vpop.f32.mrb[0].mxu0
      %v1931 = vadd.f32 %v1650, %v1930
      %v1932 = vpop.f32.mrb[0].mxu0
      %1933 = vmatprep.mubr.bf16.mxu0 0
      %1934 = vmatmul.mubr.bf16.gmra.mrb[0].mxu0 %v1683
      %v1935 = vpop.f32.mrb[0].mxu0
      %v1936 = vadd.f32 %v1650, %v1935
      %v1937 = vpop.f32.mrb[0].mxu0
      %v1938 = vpop.f32.mrb[0].mxu0
      %v1939 = vadd.f32 %v1650, %v1938
      %v1940 = vpop.f32.mrb[0].mxu0
      %1941 = vmatprep.mubr.bf16.mxu0 0
      %1942 = vmatmul.mubr.bf16.gmra.mrb[0].mxu0 %v1686
      %v1943 = vpop.f32.mrb[0].mxu0
      %v1944 = vadd.f32 %v1650, %v1943
      %v1945 = vpop.f32.mrb[0].mxu0
      %v1946 = vpop.f32.mrb[0].mxu0
      %v1947 = vadd.f32 %v1650, %v1946
      %v1948 = vpop.f32.mrb[0].mxu0
      %1949 = vmatprep.mubr.bf16.mxu0 0
      %1950 = vmatmul.mubr.bf16.gmra.mrb[0].mxu0 %v1689
      %v1951 = vpop.f32.mrb[0].mxu0
      %v1952 = vadd.f32 %v1650, %v1951
      %v1953 = vpop.f32.mrb[0].mxu0
      %v1954 = vpop.f32.mrb[0].mxu0
      %v1955 = vadd.f32 %v1650, %v1954
      %v1956 = vpop.f32.mrb[0].mxu0
      %1957 = vmatprep.mubr.bf16.mxu0 0
      %1958 = vmatmul.mubr.bf16.gmra.mrb[0].mxu0 %v1692
      %v1959 = vpop.f32.mrb[0].mxu0
      %v1960 = vadd.f32 %v1650, %v1959
      %v1961 = vpop.f32.mrb[0].mxu0
      %v1962 = vpop.f32.mrb[0].mxu0
      %v1963 = vadd.f32 %v1650, %v1962
      %v1964 = vpop.f32.mrb[0].mxu0
      %1965 = vmatprep.mubr.bf16.mxu0 0
      %1966 = vmatmul.mubr.bf16.gmra.mrb[0].mxu0 %v1695
      %v1967 = vpop.f32.mrb[0].mxu0
      %v1968 = vadd.f32 %v1650, %v1967
      %v1969 = vpop.f32.mrb[0].mxu0
      %v1970 = vpop.f32.mrb[0].mxu0
      %v1971 = vadd.f32 %v1650, %v1970
      %v1972 = vpop.f32.mrb[0].mxu0
      %1973 = vmatprep.mubr.bf16.mxu0 0
      %1974 = vmatmul.mubr.bf16.gmra.mrb[0].mxu0 %v1698
      %v1975 = vpop.f32.mrb[0].mxu0
      %v1976 = vadd.f32 %v1650, %v1975
      %v1977 = vpop.f32.mrb[0].mxu0
      %v1978 = vpop.f32.mrb[0].mxu0
      %v1979 = vadd.f32 %v1650, %v1978
      %v1980 = vpop.f32.mrb[0].mxu0
      %1981 = vmatprep.mubr.bf16.mxu0 0
      %1982 = vmatmul.mubr.bf16.gmra.mrb[0].mxu0 %v1701
      %v1983 = vpop.f32.mrb[0].mxu0
      %v1984 = vadd.f32 %v1650, %v1983
      %v1985 = vpop.f32.mrb[0].mxu0
      %v1986 = vpop.f32.mrb[0].mxu0
      %v1987 = vadd.f32 %v1650, %v1986
      %v1988 = vpop.f32.mrb[0].mxu0
      %1989 = vmatprep.mubr.bf16.mxu0 0
      %1990 = vmatmul.mubr.bf16.gmra.mrb[0].mxu0 %v1704
      %v1991 = vpop.f32.mrb[0].mxu0
      %v1992 = vadd.f32 %v1650, %v1991
      %v1993 = vpop.f32.mrb[0].mxu0
      %v1994 = vpop.f32.mrb[0].mxu0
      %v1995 = vadd.f32 %v1650, %v1994
      %v1996 = vpop.f32.mrb[0].mxu0
      %1997 = vmatprep.mubr.bf16.mxu0 0
      %1998 = vmatmul.mubr.bf16.gmra.mrb[0].mxu0 %v1707
      %v1999 = vpop.f32.mrb[0].mxu0
      %v2000 = vadd.f32 %v1650, %v1999
      %v2001 = vpop.f32.mrb[0].mxu0
      %v2002 = vpop.f32.mrb[0].mxu0
      %v2003 = vadd.f32 %v1650, %v2002
      %v2004 = vpop.f32.mrb[0].mxu0
      %2005 = vmatprep.mubr.bf16.mxu0 0
      %2006 = vmatmul.mubr.bf16.gmra.mrb[0].mxu0 %v1710
      %v2007 = vpop.f32.mrb[0].mxu0
      %v2008 = vadd.f32 %v1650, %v2007
      %v2009 = vpop.f32.mrb[0].mxu0
      %v2010 = vpop.f32.mrb[0].mxu0
      %v2011 = vadd.f32 %v1650, %v2010
      %v2012 = vpop.f32.mrb[0].mxu0
      %2013 = vmatprep.mubr.bf16.mxu0 0
      %2014 = vmatmul.mubr.bf16.gmra.mrb[0].mxu0 %v1713
      %v2015 = vpop.f32.mrb[0].mxu0
      %v2016 = vadd.f32 %v1650, %v2015
      %v2017 = vpop.f32.mrb[0].mxu0
      %v2018 = vpop.f32.mrb[0].mxu0
      %v2019 = vadd.f32 %v1650, %v2018
      %v2020 = vpop.f32.mrb[0].mxu0
      %2021 = vmatprep.mubr.bf16.mxu0 0
      %2022 = vmatmul.mubr.bf16.gmra.mrb[0].mxu0 %v1716
      %v2023 = vpop.f32.mrb[0].mxu0
      %v2024 = vadd.f32 %v1650, %v2023
      %v2025 = vpop.f32.mrb[0].mxu0
      %v2026 = vpop.f32.mrb[0].mxu0
      %v2027 = vadd.f32 %v1650, %v2026
      %v2028 = vpop.f32.mrb[0].mxu0
      %2029 = vmatprep.mubr.bf16.mxu0 0
      %2030 = vmatmul.mubr.bf16.gmra.mrb[0].mxu0 %v1719
      %v2031 = vpop.f32.mrb[0].mxu0
      %v2032 = vadd.f32 %v1650, %v2031
      %v2033 = vpop.f32.mrb[0].mxu0
      %v2034 = vpop.f32.mrb[0].mxu0
      %v2035 = vadd.f32 %v1650, %v2034
      %v2036 = vpop.f32.mrb[0].mxu0
      %2037 = vmatprep.mubr.bf16.mxu0 0
      %2038 = vmatmul.mubr.bf16.gmra.mrb[0].mxu0 %v1722
      %v2039 = vpop.f32.mrb[0].mxu0
      %v2040 = vadd.f32 %v1650, %v2039
      %v2041 = vpop.f32.mrb[0].mxu0
      %v2042 = vpop.f32.mrb[0].mxu0
      %v2043 = vadd.f32 %v1650, %v2042
      %v2044 = vpop.f32.mrb[0].mxu0
      %2045 = vmatprep.mubr.bf16.mxu0 0
      %2046 = vmatmul.mubr.bf16.gmra.mrb[0].mxu0 %v1725
      %v2047 = vpop.f32.mrb[0].mxu0
      %v2048 = vadd.f32 %v1650, %v2047
      %v2049 = vpop.f32.mrb[0].mxu0
      %v2050 = vpop.f32.mrb[0].mxu0
      %v2051 = vadd.f32 %v1650, %v2050
      %v2052 = vpop.f32.mrb[0].mxu0
      %2053 = vmatprep.mubr.bf16.mxu0 0
      %2054 = vmatmul.mubr.bf16.gmra.mrb[0].mxu0 %v1728
      %v2055 = vpop.f32.mrb[0].mxu0
      %v2056 = vadd.f32 %v1650, %v2055
      %v2057 = vpop.f32.mrb[0].mxu0
      %v2058 = vpop.f32.mrb[0].mxu0
      %v2059 = vadd.f32 %v1650, %v2058
      %v2060 = vpop.f32.mrb[0].mxu0
      %2061 = vmatprep.mubr.bf16.mxu0 0
      %2062 = vmatmul.mubr.bf16.gmra.mrb[0].mxu0 %v1731
      %v2063 = vpop.f32.mrb[0].mxu0
      %v2064 = vadd.f32 %v1650, %v2063
      %v2065 = vpop.f32.mrb[0].mxu0
      %v2066 = vpop.f32.mrb[0].mxu0
      %v2067 = vadd.f32 %v1650, %v2066
      %v2068 = vpop.f32.mrb[0].mxu0
      %2069 = vmatprep.mubr.bf16.mxu0 0
      %2070 = vmatmul.mubr.bf16.gmra.mrb[0].mxu0 %v1734
      %v2071 = vpop.f32.mrb[0].mxu0
      %v2072 = vadd.f32 %v1650, %v2071
      %v2073 = vpop.f32.mrb[0].mxu0
      %v2074 = vpop.f32.mrb[0].mxu0
      %v2075 = vadd.f32 %v1650, %v2074
      %v2076 = vpop.f32.mrb[0].mxu0
      %2077 = vmatprep.mubr.bf16.mxu0 0
      %2078 = vmatmul.mubr.bf16.gmra.mrb[0].mxu0 %v1737
      %v2079 = vpop.f32.mrb[0].mxu0
      %v2080 = vadd.f32 %v1650, %v2079
      %v2081 = vpop.f32.mrb[0].mxu0
      %v2082 = vpop.f32.mrb[0].mxu0
      %v2083 = vadd.f32 %v1650, %v2082
      %v2084 = vpop.f32.mrb[0].mxu0
      %2085 = vmatprep.mubr.bf16.mxu0 0
      %2086 = vmatmul.mubr.bf16.gmra.mrb[0].mxu0 %v1740
      %v2087 = vpop.f32.mrb[0].mxu0
      %v2088 = vadd.f32 %v1650, %v2087
      %v2089 = vpop.f32.mrb[0].mxu0
      %v2090 = vpop.f32.mrb[0].mxu0
      %v2091 = vadd.f32 %v1650, %v2090
      %v2092 = vpop.f32.mrb[0].mxu0
      %2093 = vmatprep.mubr.bf16.mxu0 0
      %2094 = vmatmul.mubr.bf16.gmra.mrb[0].mxu0 %v1743
      %v2095 = vpop.f32.mrb[0].mxu0
      %v2096 = vadd.f32 %v1650, %v2095
      %v2097 = vpop.f32.mrb[0].mxu0
      %v2098 = vpop.f32.mrb[0].mxu0
      %v2099 = vadd.f32 %v1650, %v2098
      %v2100 = vpop.f32.mrb[0].mxu0
      %2101 = vmatprep.mubr.bf16.mxu0 0
      %2102 = vmatmul.mubr.bf16.gmra.mrb[0].mxu0 %v1746
      %v2103 = vpop.f32.mrb[0].mxu0
      %v2104 = vadd.f32 %v1650, %v2103
      %v2105 = vpop.f32.mrb[0].mxu0
      %v2106 = vpop.f32.mrb[0].mxu0
      %v2107 = vadd.f32 %v1650, %v2106
      %v2108 = vpop.f32.mrb[0].mxu0
      %2109 = vmatprep.mubr.bf16.mxu0 0
      %2110 = vmatmul.mubr.bf16.gmra.mrb[0].mxu0 %v1749
      %v2111 = vpop.f32.mrb[0].mxu0
      %v2112 = vadd.f32 %v1650, %v2111
      %v2113 = vpop.f32.mrb[0].mxu0
      %v2114 = vpop.f32.mrb[0].mxu0
      %v2115 = vadd.f32 %v1650, %v2114
      %v2116 = vpop.f32.mrb[0].mxu0
      %2117 = vmatprep.mubr.bf16.mxu0 0
      %2118 = vmatmul.mubr.bf16.gmra.mrb[0].mxu0 %v1752
      %v2119 = vpop.f32.mrb[0].mxu0
      %v2120 = vadd.f32 %v1650, %v2119
      %v2121 = vpop.f32.mrb[0].mxu0
      %v2122 = vpop.f32.mrb[0].mxu0
      %v2123 = vadd.f32 %v1650, %v2122
      %v2124 = vpop.f32.mrb[0].mxu0
      %2125 = vmatprep.mubr.bf16.mxu0 0
      %2126 = vmatmul.mubr.bf16.gmra.mrb[0].mxu0 %v1755
      %v2127 = vpop.f32.mrb[0].mxu0
      %v2128 = vadd.f32 %v1650, %v2127
      %v2129 = vpop.f32.mrb[0].mxu0
      %v2130 = vpop.f32.mrb[0].mxu0
      %v2131 = vadd.f32 %v1650, %v2130
      %v2132 = vpop.f32.mrb[0].mxu0
      %2133 = vmatprep.mubr.bf16.mxu0 0
      %2134 = vmatmul.mubr.bf16.gmra.mrb[0].mxu0 %v1758
      %v2135 = vpop.f32.mrb[0].mxu0
      %v2136 = vadd.f32 %v1650, %v2135
      %v2137 = vpop.f32.mrb[0].mxu0
      %v2138 = vpop.f32.mrb[0].mxu0
      %v2139 = vadd.f32 %v1650, %v2138
      %v2140 = vpop.f32.mrb[0].mxu0
      %2141 = vmatprep.mubr.bf16.mxu0 0
      %2142 = vmatmul.mubr.bf16.gmra.mrb[0].mxu0 %v1761
      %v2143 = vpop.f32.mrb[0].mxu0
      %v2144 = vadd.f32 %v1650, %v2143
      %v2145 = vpop.f32.mrb[0].mxu0
      %v2146 = vpop.f32.mrb[0].mxu0
      %v2147 = vadd.f32 %v1650, %v2146
      %v2148 = vpop.f32.mrb[0].mxu0
      %2149 = vmatprep.mubr.bf16.mxu0 0
      %2150 = vmatmul.mubr.bf16.gmra.mrb[0].mxu0 %v1764
      %v2151 = vpop.f32.mrb[0].mxu0
      %v2152 = vadd.f32 %v1650, %v2151
      %v2153 = vpop.f32.mrb[0].mxu0
      %v2154 = vpop.f32.mrb[0].mxu0
      %v2155 = vadd.f32 %v1650, %v2154
      %v2156 = vpop.f32.mrb[0].mxu0
      %2157 = vmatprep.mubr.bf16.mxu0 0
      %2158 = vmatmul.mubr.bf16.gmra.mrb[0].mxu0 %v1767
      %v2159 = vpop.f32.mrb[0].mxu0
      %v2160 = vadd.f32 %v1650, %v2159
      %v2161 = vpop.f32.mrb[0].mxu0
      %v2162 = vpop.f32.mrb[0].mxu0
      %v2163 = vadd.f32 %v1650, %v2162
      %v2164 = vpop.f32.mrb[0].mxu0
      %2165 = vmatprep.mubr.bf16.mxu0 0
      %2166 = vmatmul.mubr.bf16.gmra.mrb[0].mxu0 %v1770
      %v2167 = vpop.f32.mrb[0].mxu0
      %v2168 = vadd.f32 %v1650, %v2167
      %v2169 = vpop.f32.mrb[0].mxu0
      %v2170 = vpop.f32.mrb[0].mxu0
      %v2171 = vadd.f32 %v1650, %v2170
      %v2172 = vpop.f32.mrb[0].mxu0
      %2173 = vmatprep.mubr.bf16.mxu0 0
      %2174 = vmatmul.mubr.bf16.gmra.mrb[0].mxu0 %v1773
      %v2175 = vpop.f32.mrb[0].mxu0
      %v2176 = vadd.f32 %v1650, %v2175
      %v2177 = vpop.f32.mrb[0].mxu0
      %v2178 = vpop.f32.mrb[0].mxu0
      %v2179 = vadd.f32 %v1650, %v2178
      %v2180 = vpop.f32.mrb[0].mxu0
      %2181 = vmatprep.mubr.bf16.mxu0 0
      %2182 = vmatmul.mubr.bf16.gmra.mrb[0].mxu0 %v1776
      %v2183 = vpop.f32.mrb[0].mxu0
      %v2184 = vadd.f32 %v1650, %v2183
      %v2185 = vpop.f32.mrb[0].mxu0
      %v2186 = vpop.f32.mrb[0].mxu0
      %v2187 = vadd.f32 %v1650, %v2186
      %v2188 = vpop.f32.mrb[0].mxu0
      %2189 = vmatprep.mubr.bf16.mxu0 0
      %2190 = vmatmul.mubr.bf16.gmra.mrb[0].mxu0 %v1779
      %v2191 = vpop.f32.mrb[0].mxu0
      %v2192 = vadd.f32 %v1650, %v2191
      %v2193 = vpop.f32.mrb[0].mxu0
      %v2194 = vpop.f32.mrb[0].mxu0
      %v2195 = vadd.f32 %v1650, %v2194
      %v2196 = vpop.f32.mrb[0].mxu0
      %2197 = vmatprep.mubr.bf16.mxu0 0
      %2198 = vmatmul.mubr.bf16.gmra.mrb[0].mxu0 %v1782
      %v2199 = vpop.f32.mrb[0].mxu0
      %v2200 = vadd.f32 %v1650, %v2199
      %v2201 = vpop.f32.mrb[0].mxu0
      %v2202 = vpop.f32.mrb[0].mxu0
      %v2203 = vadd.f32 %v1650, %v2202
      %v2204 = vpop.f32.mrb[0].mxu0
      %2205 = vmatprep.mubr.bf16.mxu0 0
      %2206 = vmatmul.mubr.bf16.gmra.mrb[0].mxu0 %v1785
      %v2207 = vpop.f32.mrb[0].mxu0
      %v2208 = vadd.f32 %v1650, %v2207
      %v2209 = vpop.f32.mrb[0].mxu0
      %v2210 = vpop.f32.mrb[0].mxu0
      %v2211 = vadd.f32 %v1650, %v2210
      %v2212 = vpop.f32.mrb[0].mxu0
      %2213 = vmatprep.mubr.bf16.mxu0 0
      %2214 = vmatmul.mubr.bf16.gmra.mrb[0].mxu0 %v1788
      %v2215 = vpop.f32.mrb[0].mxu0
      %v2216 = vadd.f32 %v1650, %v2215
      %v2217 = vpop.f32.mrb[0].mxu0
      %v2218 = vpop.f32.mrb[0].mxu0
      %v2219 = vadd.f32 %v1650, %v2218
      %v2220 = vpop.f32.mrb[0].mxu0
      %2221 = vmatprep.mubr.bf16.mxu0 0
      %2222 = vmatmul.mubr.bf16.gmra.mrb[0].mxu0 %v1791
      %v2223 = vpop.f32.mrb[0].mxu0
      %v2224 = vadd.f32 %v1650, %v2223
      %v2225 = vpop.f32.mrb[0].mxu0
      %v2226 = vpop.f32.mrb[0].mxu0
      %v2227 = vadd.f32 %v1650, %v2226
      %v2228 = vpop.f32.mrb[0].mxu0
      %2229 = vmatprep.mubr.bf16.mxu0 0
      %2230 = vmatmul.mubr.bf16.gmra.mrb[0].mxu0 %v1794
      %v2231 = vpop.f32.mrb[0].mxu0
      %v2232 = vadd.f32 %v1650, %v2231
      %v2233 = vpop.f32.mrb[0].mxu0
      %v2234 = vpop.f32.mrb[0].mxu0
      %v2235 = vadd.f32 %v1650, %v2234
      %v2236 = vpop.f32.mrb[0].mxu0
      %2237 = vmatprep.mubr.bf16.mxu0 0
      %2238 = vmatmul.mubr.bf16.gmra.mrb[0].mxu0 %v1797
      %v2239 = vpop.f32.mrb[0].mxu0
      %v2240 = vadd.f32 %v1650, %v2239
      %v2241 = vpop.f32.mrb[0].mxu0
      %v2242 = vpop.f32.mrb[0].mxu0
      %v2243 = vadd.f32 %v1650, %v2242
      %v2244 = vpop.f32.mrb[0].mxu0
      %2245 = vmatprep.mubr.bf16.mxu0 0
      %2246 = vmatmul.mubr.bf16.gmra.mrb[0].mxu0 %v1800
      %v2247 = vpop.f32.mrb[0].mxu0
      %v2248 = vadd.f32 %v1650, %v2247
      %v2249 = vpop.f32.mrb[0].mxu0
      %v2250 = vpop.f32.mrb[0].mxu0
      %v2251 = vadd.f32 %v1650, %v2250
      %v2252 = vpop.f32.mrb[0].mxu0
      %2253 = vmatprep.mubr.bf16.mxu0 0
      %2254 = vmatmul.mubr.bf16.gmra.mrb[0].mxu0 %v1803
      %v2255 = vpop.f32.mrb[0].mxu0
      %v2256 = vadd.f32 %v1650, %v2255
      %v2257 = vpop.f32.mrb[0].mxu0
      %v2258 = vpop.f32.mrb[0].mxu0
      %v2259 = vadd.f32 %v1650, %v2258
      %v2260 = vpop.f32.mrb[0].mxu0
      %2261 = vmatprep.mubr.bf16.mxu0 0
      %2262 = vmatmul.mubr.bf16.gmra.mrb[0].mxu0 %v1806
      %v2263 = vpop.f32.mrb[0].mxu0
      %v2264 = vadd.f32 %v1650, %v2263
      %v2265 = vpop.f32.mrb[0].mxu0
      %v2266 = vpop.f32.mrb[0].mxu0
      %v2267 = vadd.f32 %v1650, %v2266
      %v2268 = vpop.f32.mrb[0].mxu0
      %2269 = vmatprep.mubr.bf16.mxu0 0
      %2270 = vmatmul.mubr.bf16.gmra.mrb[0].mxu0 %v1809
      %v2271 = vpop.f32.mrb[0].mxu0
      %v2272 = vadd.f32 %v1650, %v2271
      %v2273 = vpop.f32.mrb[0].mxu0
      %v2274 = vpop.f32.mrb[0].mxu0
      %v2275 = vadd.f32 %v1650, %v2274
      %v2276 = vpop.f32.mrb[0].mxu0
      %2277 = vmatprep.mubr.bf16.mxu0 0
      %2278 = vmatmul.mubr.bf16.gmra.mrb[0].mxu0 %v1812
      %v2279 = vpop.f32.mrb[0].mxu0
      %v2280 = vadd.f32 %v1650, %v2279
      %v2281 = vpop.f32.mrb[0].mxu0
      %v2282 = vpop.f32.mrb[0].mxu0
      %v2283 = vadd.f32 %v1650, %v2282
      %v2284 = vpop.f32.mrb[0].mxu0
      %2285 = vmatprep.mubr.bf16.mxu0 0
      %2286 = vmatmul.mubr.bf16.gmra.mrb[0].mxu0 %v1815
      %v2287 = vpop.f32.mrb[0].mxu0
      %v2288 = vadd.f32 %v1650, %v2287
      %v2289 = vpop.f32.mrb[0].mxu0
      %v2290 = vpop.f32.mrb[0].mxu0
      %v2291 = vadd.f32 %v1650, %v2290
      %v2292 = vpop.f32.mrb[0].mxu0
      %2293 = vmatprep.mubr.bf16.mxu0 0
      %2294 = vmatmul.mubr.bf16.gmra.mrb[0].mxu0 %v1818
      %v2295 = vpop.f32.mrb[0].mxu0
      %v2296 = vadd.f32 %v1650, %v2295
      %v2297 = vpop.f32.mrb[0].mxu0
      %v2298 = vpop.f32.mrb[0].mxu0
      %v2299 = vadd.f32 %v1650, %v2298
      %v2300 = vpop.f32.mrb[0].mxu0
      %2301 = vmatprep.mubr.bf16.mxu0 0
      %2302 = vmatmul.mubr.bf16.gmra.mrb[0].mxu0 %v1821
      %v2303 = vpop.f32.mrb[0].mxu0
      %v2304 = vadd.f32 %v1650, %v2303
      %v2305 = vpop.f32.mrb[0].mxu0
      %v2306 = vpop.f32.mrb[0].mxu0
      %v2307 = vadd.f32 %v1650, %v2306
      %v2308 = vpop.f32.mrb[0].mxu0
      %2309 = vmatprep.mubr.bf16.mxu0 0
      %2310 = vmatmul.mubr.bf16.gmra.mrb[0].mxu0 %v1824
      %v2311 = vpop.f32.mrb[0].mxu0
      %v2312 = vadd.f32 %v1650, %v2311
      %v2313 = vpop.f32.mrb[0].mxu0
      %v2314 = vpop.f32.mrb[0].mxu0
      %v2315 = vadd.f32 %v1650, %v2314
      %v2316 = vpop.f32.mrb[0].mxu0
      %2317 = vmatprep.mubr.bf16.mxu0 0
      %2318 = vmatmul.mubr.bf16.gmra.mrb[0].mxu0 %v1827
      %v2319 = vpop.f32.mrb[0].mxu0
      %v2320 = vadd.f32 %v1650, %v2319
      %v2321 = vpop.f32.mrb[0].mxu0
      %v2322 = vpop.f32.mrb[0].mxu0
      %v2323 = vadd.f32 %v1650, %v2322
      %v2324 = vpop.f32.mrb[0].mxu0
      %2325 = vmatprep.mubr.bf16.mxu0 0
      %2326 = vmatmul.mubr.bf16.gmra.mrb[0].mxu0 %v1830
      %v2327 = vpop.f32.mrb[0].mxu0
      %v2328 = vadd.f32 %v1650, %v2327
      %v2329 = vpop.f32.mrb[0].mxu0
      %v2330 = vpop.f32.mrb[0].mxu0
      %v2331 = vadd.f32 %v1650, %v2330
      %v2332 = vpop.f32.mrb[0].mxu0
      %2333 = vmatprep.mubr.bf16.mxu0 0
      %2334 = vmatmul.mubr.bf16.gmra.mrb[0].mxu0 %v1833
      %v2335 = vpop.f32.mrb[0].mxu0
      %v2336 = vadd.f32 %v1650, %v2335
      %v2337 = vpop.f32.mrb[0].mxu0
      %v2338 = vpop.f32.mrb[0].mxu0
      %v2339 = vadd.f32 %v1650, %v2338
      %v2340 = vpop.f32.mrb[0].mxu0
      %2341 = vmatprep.mubr.bf16.mxu0 0
      %2342 = vmatmul.mubr.bf16.gmra.mrb[0].mxu0 %v1836
      %v2343 = vpop.f32.mrb[0].mxu0
      %v2344 = vadd.f32 %v1650, %v2343
      %v2345 = vpop.f32.mrb[0].mxu0
      %v2346 = vpop.f32.mrb[0].mxu0
      %v2347 = vadd.f32 %v1650, %v2346
      %v2348 = vpop.f32.mrb[0].mxu0
      %2349 = vmatprep.mubr.bf16.mxu0 0
      %2350 = vmatmul.mubr.bf16.gmra.mrb[0].mxu0 %v1839
      %v2351 = vpop.f32.mrb[0].mxu0
      %v2352 = vadd.f32 %v1650, %v2351
      %v2353 = vpop.f32.mrb[0].mxu0
      %v2354 = vpop.f32.mrb[0].mxu0
      %v2355 = vadd.f32 %v1650, %v2354
      %v2356 = vpop.f32.mrb[0].mxu0
      %2357 = vmatprep.mubr.bf16.mxu0 0
      %2358 = vmatmul.mubr.bf16.gmra.mrb[0].mxu0 %v1842
      %v2359 = vpop.f32.mrb[0].mxu0
      %v2360 = vadd.f32 %v1650, %v2359
      %v2361 = vpop.f32.mrb[0].mxu0
      %v2362 = vpop.f32.mrb[0].mxu0
      %v2363 = vadd.f32 %v1650, %v2362
      %v2364 = vpop.f32.mrb[0].mxu0
      %2365 = vmatprep.mubr.bf16.mxu0 0
      %2366 = vmatmul.mubr.bf16.gmra.mrb[0].mxu0 %v1845
      %v2367 = vpop.f32.mrb[0].mxu0
      %v2368 = vadd.f32 %v1650, %v2367
      %v2369 = vpop.f32.mrb[0].mxu0
      %v2370 = vpop.f32.mrb[0].mxu0
      %v2371 = vadd.f32 %v1650, %v2370
      %v2372 = vpop.f32.mrb[0].mxu0
      %2373 = vmatprep.mubr.bf16.mxu0 0
      %2374 = vmatmul.mubr.bf16.gmra.mrb[0].mxu0 %v1848
      %v2375 = vpop.f32.mrb[0].mxu0
      %v2376 = vadd.f32 %v1650, %v2375
      %v2377 = vpop.f32.mrb[0].mxu0
      %v2378 = vpop.f32.mrb[0].mxu0
      %v2379 = vadd.f32 %v1650, %v2378
      %v2380 = vpop.f32.mrb[0].mxu0
      %2381 = vmatprep.mubr.bf16.mxu0 0
      %2382 = vmatmul.mubr.bf16.gmra.mrb[0].mxu0 %v1851
      %v2383 = vpop.f32.mrb[0].mxu0
      %v2384 = vadd.f32 %v1650, %v2383
      %v2385 = vpop.f32.mrb[0].mxu0
      %v2386 = vpop.f32.mrb[0].mxu0
      %v2387 = vadd.f32 %v1650, %v2386
      %v2388 = vpop.f32.mrb[0].mxu0
      %2389 = vdwg.mxu0
      %v2390 = vmax.f32 %v1888, 0.0
      %v2391 = vmax.f32 %v1891, 0.0
      %v2392 = vmax.f32 %v1896, 0.0
      %v2393 = vmax.f32 %v1899, 0.0
      %v2394 = vmax.f32 %v1904, 0.0
      %v2395 = vmax.f32 %v1907, 0.0
      %v2396 = vmax.f32 %v1912, 0.0
      %v2397 = vmax.f32 %v1915, 0.0
      %v2398 = vmax.f32 %v1920, 0.0
      %v2399 = vmax.f32 %v1923, 0.0
      %v2400 = vmax.f32 %v1928, 0.0
      %v2401 = vmax.f32 %v1931, 0.0
      %v2402 = vmax.f32 %v1936, 0.0
      %v2403 = vmax.f32 %v1939, 0.0
      %v2404 = vmax.f32 %v1944, 0.0
      %v2405 = vmax.f32 %v1947, 0.0
      %v2406 = vmax.f32 %v1952, 0.0
      %v2407 = vmax.f32 %v1955, 0.0
      %v2408 = vmax.f32 %v1960, 0.0
      %v2409 = vmax.f32 %v1963, 0.0
      %v2410 = vmax.f32 %v1968, 0.0
      %v2411 = vmax.f32 %v1971, 0.0
      %v2412 = vmax.f32 %v1976, 0.0
      %v2413 = vmax.f32 %v1979, 0.0
      %v2414 = vmax.f32 %v1984, 0.0
      %v2415 = vmax.f32 %v1987, 0.0
      %v2416 = vmax.f32 %v1992, 0.0
      %v2417 = vmax.f32 %v1995, 0.0
      %v2418 = vmax.f32 %v2000, 0.0
      %v2419 = vmax.f32 %v2003, 0.0
      %v2420 = vmax.f32 %v2008, 0.0
      %v2421 = vmax.f32 %v2011, 0.0
      %v2422 = vmax.f32 %v2016, 0.0
      %v2423 = vmax.f32 %v2019, 0.0
      %v2424 = vmax.f32 %v2024, 0.0
      %v2425 = vmax.f32 %v2027, 0.0
      %v2426 = vmax.f32 %v2032, 0.0
      %v2427 = vmax.f32 %v2035, 0.0
      %v2428 = vmax.f32 %v2040, 0.0
      %v2429 = vmax.f32 %v2043, 0.0
      %v2430 = vmax.f32 %v2048, 0.0
      %v2431 = vmax.f32 %v2051, 0.0
      %v2432 = vmax.f32 %v2056, 0.0
      %v2433 = vmax.f32 %v2059, 0.0
      %v2434 = vmax.f32 %v2064, 0.0
      %v2435 = vmax.f32 %v2067, 0.0
      %v2436 = vmax.f32 %v2072, 0.0
      %v2437 = vmax.f32 %v2075, 0.0
      %v2438 = vmax.f32 %v2080, 0.0
      %v2439 = vmax.f32 %v2083, 0.0
      %v2440 = vmax.f32 %v2088, 0.0
      %v2441 = vmax.f32 %v2091, 0.0
      %v2442 = vmax.f32 %v2096, 0.0
      %v2443 = vmax.f32 %v2099, 0.0
      %v2444 = vmax.f32 %v2104, 0.0
      %v2445 = vmax.f32 %v2107, 0.0
      %v2446 = vmax.f32 %v2112, 0.0
      %v2447 = vmax.f32 %v2115, 0.0
      %v2448 = vmax.f32 %v2120, 0.0
      %v2449 = vmax.f32 %v2123, 0.0
      %v2450 = vmax.f32 %v2128, 0.0
      %v2451 = vmax.f32 %v2131, 0.0
      %v2452 = vmax.f32 %v2136, 0.0
      %v2453 = vmax.f32 %v2139, 0.0
      %v2454 = vmax.f32 %v2144, 0.0
      %v2455 = vmax.f32 %v2147, 0.0
      %v2456 = vmax.f32 %v2152, 0.0
      %v2457 = vmax.f32 %v2155, 0.0
      %v2458 = vmax.f32 %v2160, 0.0
      %v2459 = vmax.f32 %v2163, 0.0
      %v2460 = vmax.f32 %v2168, 0.0
      %v2461 = vmax.f32 %v2171, 0.0
      %v2462 = vmax.f32 %v2176, 0.0
      %v2463 = vmax.f32 %v2179, 0.0
      %v2464 = vmax.f32 %v2184, 0.0
      %v2465 = vmax.f32 %v2187, 0.0
      %v2466 = vmax.f32 %v2192, 0.0
      %v2467 = vmax.f32 %v2195, 0.0
      %v2468 = vmax.f32 %v2200, 0.0
      %v2469 = vmax.f32 %v2203, 0.0
      %v2470 = vmax.f32 %v2208, 0.0
      %v2471 = vmax.f32 %v2211, 0.0
      %v2472 = vmax.f32 %v2216, 0.0
      %v2473 = vmax.f32 %v2219, 0.0
      %v2474 = vmax.f32 %v2224, 0.0
      %v2475 = vmax.f32 %v2227, 0.0
      %v2476 = vmax.f32 %v2232, 0.0
      %v2477 = vmax.f32 %v2235, 0.0
      %v2478 = vmax.f32 %v2240, 0.0
      %v2479 = vmax.f32 %v2243, 0.0
      %v2480 = vmax.f32 %v2248, 0.0
      %v2481 = vmax.f32 %v2251, 0.0
      %v2482 = vmax.f32 %v2256, 0.0
      %v2483 = vmax.f32 %v2259, 0.0
      %v2484 = vmax.f32 %v2264, 0.0
      %v2485 = vmax.f32 %v2267, 0.0
      %v2486 = vmax.f32 %v2272, 0.0
      %v2487 = vmax.f32 %v2275, 0.0
      %v2488 = vmax.f32 %v2280, 0.0
      %v2489 = vmax.f32 %v2283, 0.0
      %v2490 = vmax.f32 %v2288, 0.0
      %v2491 = vmax.f32 %v2291, 0.0
      %v2492 = vmax.f32 %v2296, 0.0
      %v2493 = vmax.f32 %v2299, 0.0
      %v2494 = vmax.f32 %v2304, 0.0
      %v2495 = vmax.f32 %v2307, 0.0
      %v2496 = vmax.f32 %v2312, 0.0
      %v2497 = vmax.f32 %v2315, 0.0
      %v2498 = vmax.f32 %v2320, 0.0
      %v2499 = vmax.f32 %v2323, 0.0
      %v2500 = vmax.f32 %v2328, 0.0
      %v2501 = vmax.f32 %v2331, 0.0
      %v2502 = vmax.f32 %v2336, 0.0
      %v2503 = vmax.f32 %v2339, 0.0
      %v2504 = vmax.f32 %v2344, 0.0
      %v2505 = vmax.f32 %v2347, 0.0
      %v2506 = vmax.f32 %v2352, 0.0
      %v2507 = vmax.f32 %v2355, 0.0
      %v2508 = vmax.f32 %v2360, 0.0
      %v2509 = vmax.f32 %v2363, 0.0
      %v2510 = vmax.f32 %v2368, 0.0
      %v2511 = vmax.f32 %v2371, 0.0
      %v2512 = vmax.f32 %v2376, 0.0
      %v2513 = vmax.f32 %v2379, 0.0
      %v2514 = vmax.f32 %v2384, 0.0
      %v2515 = vmax.f32 %v2387, 0.0
      %v2516 = vpack.c.bf16 %v2391, %v2390
      %v2517 = vpack.c.bf16 %v2393, %v2392
      %v2518 = vpack.c.bf16 %v2395, %v2394
      %v2519 = vpack.c.bf16 %v2397, %v2396
      %v2520 = vpack.c.bf16 %v2399, %v2398
      %v2521 = vpack.c.bf16 %v2401, %v2400
      %v2522 = vpack.c.bf16 %v2403, %v2402
      %v2523 = vpack.c.bf16 %v2405, %v2404
      %v2524 = vpack.c.bf16 %v2407, %v2406
      %v2525 = vpack.c.bf16 %v2409, %v2408
      %v2526 = vpack.c.bf16 %v2411, %v2410
      %v2527 = vpack.c.bf16 %v2413, %v2412
      %v2528 = vpack.c.bf16 %v2415, %v2414
      %v2529 = vpack.c.bf16 %v2417, %v2416
      %v2530 = vpack.c.bf16 %v2419, %v2418
      %v2531 = vpack.c.bf16 %v2421, %v2420
      %v2532 = vpack.c.bf16 %v2423, %v2422
      %v2533 = vpack.c.bf16 %v2425, %v2424
      %v2534 = vpack.c.bf16 %v2427, %v2426
      %v2535 = vpack.c.bf16 %v2429, %v2428
      %v2536 = vpack.c.bf16 %v2431, %v2430
      %v2537 = vpack.c.bf16 %v2433, %v2432
      %v2538 = vpack.c.bf16 %v2435, %v2434
      %v2539 = vpack.c.bf16 %v2437, %v2436
      %v2540 = vpack.c.bf16 %v2439, %v2438
      %v2541 = vpack.c.bf16 %v2441, %v2440
      %v2542 = vpack.c.bf16 %v2443, %v2442
      %v2543 = vpack.c.bf16 %v2445, %v2444
      %v2544 = vpack.c.bf16 %v2447, %v2446
      %v2545 = vpack.c.bf16 %v2449, %v2448
      %v2546 = vpack.c.bf16 %v2451, %v2450
      %v2547 = vpack.c.bf16 %v2453, %v2452
      %v2548 = vpack.c.bf16 %v2455, %v2454
      %v2549 = vpack.c.bf16 %v2457, %v2456
      %v2550 = vpack.c.bf16 %v2459, %v2458
      %v2551 = vpack.c.bf16 %v2461, %v2460
      %v2552 = vpack.c.bf16 %v2463, %v2462
      %v2553 = vpack.c.bf16 %v2465, %v2464
      %v2554 = vpack.c.bf16 %v2467, %v2466
      %v2555 = vpack.c.bf16 %v2469, %v2468
      %v2556 = vpack.c.bf16 %v2471, %v2470
      %v2557 = vpack.c.bf16 %v2473, %v2472
      %v2558 = vpack.c.bf16 %v2475, %v2474
      %v2559 = vpack.c.bf16 %v2477, %v2476
      %v2560 = vpack.c.bf16 %v2479, %v2478
      %v2561 = vpack.c.bf16 %v2481, %v2480
      %v2562 = vpack.c.bf16 %v2483, %v2482
      %v2563 = vpack.c.bf16 %v2485, %v2484
      %v2564 = vpack.c.bf16 %v2487, %v2486
      %v2565 = vpack.c.bf16 %v2489, %v2488
      %v2566 = vpack.c.bf16 %v2491, %v2490
      %v2567 = vpack.c.bf16 %v2493, %v2492
      %v2568 = vpack.c.bf16 %v2495, %v2494
      %v2569 = vpack.c.bf16 %v2497, %v2496
      %v2570 = vpack.c.bf16 %v2499, %v2498
      %v2571 = vpack.c.bf16 %v2501, %v2500
      %v2572 = vpack.c.bf16 %v2503, %v2502
      %v2573 = vpack.c.bf16 %v2505, %v2504
      %v2574 = vpack.c.bf16 %v2507, %v2506
      %v2575 = vpack.c.bf16 %v2509, %v2508
      %v2576 = vpack.c.bf16 %v2511, %v2510
      %v2577 = vpack.c.bf16 %v2513, %v2512
      %v2578 = vpack.c.bf16 %v2515, %v2514
      %s2579 = scalar_lea.vmem %s3, 16
      %v2580 = vld [vmem:[%s2579] sm:$0xf]
      %v2581 = vld [vmem:[%s2579 + $0x4] sm:$0xf]
      %v2582 = vld [vmem:[%s2579 + $0x8] sm:$0xf]
      %v2583 = vld [vmem:[%s2579 + $0xc] sm:$0xf]
      %v2584 = vld [vmem:[%s2 + $0x2] sm:$0x1]
      %v2585 = vlaneseq
      %v2586 = vshrl.u32 %v2585, 7
      %v2587 = vsub.s32 0, %v2586
      %v2588 = vrot.slane %v2584, %v2587
      %v2593 = vunpack.c.l.b16 %v2580
      %v2594 = vunpack.c.l.b16 %v2581
      %v2595 = vunpack.c.l.b16 %v2582
      %v2596 = vunpack.c.l.b16 %v2583
      %v2597 = vpack.c.b16 %v2594, %v2593
      %v2598 = vpack.c.b16 %v2596, %v2595
      %v2602 = vsel %vm1663, %v2516, 0
      %v2605 = vsel %vm1663, %v2517, 0
      %v2608 = vsel %vm1663, %v2518, 0
      %v2611 = vsel %vm1663, %v2519, 0
      %v2614 = vsel %vm1663, %v2520, 0
      %v2617 = vsel %vm1663, %v2521, 0
      %v2620 = vsel %vm1663, %v2522, 0
      %v2623 = vsel %vm1663, %v2523, 0
      %v2626 = vsel %vm1663, %v2524, 0
      %v2629 = vsel %vm1663, %v2525, 0
      %v2632 = vsel %vm1663, %v2526, 0
      %v2635 = vsel %vm1663, %v2527, 0
      %v2638 = vsel %vm1663, %v2528, 0
      %v2641 = vsel %vm1663, %v2529, 0
      %v2644 = vsel %vm1663, %v2530, 0
      %v2647 = vsel %vm1663, %v2531, 0
      %v2650 = vsel %vm1663, %v2532, 0
      %v2653 = vsel %vm1663, %v2533, 0
      %v2656 = vsel %vm1663, %v2534, 0
      %v2659 = vsel %vm1663, %v2535, 0
      %v2662 = vsel %vm1663, %v2536, 0
      %v2665 = vsel %vm1663, %v2537, 0
      %v2668 = vsel %vm1663, %v2538, 0
      %v2671 = vsel %vm1663, %v2539, 0
      %v2674 = vsel %vm1663, %v2540, 0
      %v2677 = vsel %vm1663, %v2541, 0
      %v2680 = vsel %vm1663, %v2542, 0
      %v2683 = vsel %vm1663, %v2543, 0
      %v2686 = vsel %vm1663, %v2544, 0
      %v2689 = vsel %vm1663, %v2545, 0
      %v2692 = vsel %vm1663, %v2546, 0
      %v2695 = vsel %vm1663, %v2547, 0
      %v2698 = vsel %vm1663, %v2548, 0
      %v2701 = vsel %vm1663, %v2549, 0
      %v2704 = vsel %vm1663, %v2550, 0
      %v2707 = vsel %vm1663, %v2551, 0
      %v2710 = vsel %vm1663, %v2552, 0
      %v2713 = vsel %vm1663, %v2553, 0
      %v2716 = vsel %vm1663, %v2554, 0
      %v2719 = vsel %vm1663, %v2555, 0
      %v2722 = vsel %vm1663, %v2556, 0
      %v2725 = vsel %vm1663, %v2557, 0
      %v2728 = vsel %vm1663, %v2558, 0
      %v2731 = vsel %vm1663, %v2559, 0
      %v2734 = vsel %vm1663, %v2560, 0
      %v2737 = vsel %vm1663, %v2561, 0
      %v2740 = vsel %vm1663, %v2562, 0
      %v2743 = vsel %vm1663, %v2563, 0
      %v2746 = vsel %vm1663, %v2564, 0
      %v2749 = vsel %vm1663, %v2565, 0
      %v2752 = vsel %vm1663, %v2566, 0
      %v2755 = vsel %vm1663, %v2567, 0
      %v2758 = vsel %vm1663, %v2568, 0
      %v2761 = vsel %vm1663, %v2569, 0
      %v2764 = vsel %vm1663, %v2570, 0
      %v2767 = vsel %vm1663, %v2571, 0
      %v2770 = vsel %vm1663, %v2572, 0
      %v2773 = vsel %vm1663, %v2573, 0
      %v2776 = vsel %vm1663, %v2574, 0
      %v2779 = vsel %vm1663, %v2575, 0
      %v2782 = vsel %vm1663, %v2576, 0
      %v2785 = vsel %vm1663, %v2577, 0
      %v2788 = vsel %vm1663, %v2578, 0
      %2790 = vmatprep.subr.bf16.mxu0 0
      %2791 = vmatpush1.bf16.msra.mxu0 %v2597
      %2792 = vmatprep.subr.bf16.mxu0 0
      %2793 = vmatpush1.bf16.msra.mxu0 %v2598
      %2794 = vmatprep.subr.bf16.mxu0 0
      %2795 = vmatpush1.bf16.msra.mxu0 0
      %2796 = vmatprep.subr.bf16.mxu0 0
      %2797 = vmatpush1.bf16.msra.mxu0 0
      %2798 = vmatprep.subr.bf16.mxu0 0
      %2799 = vmatpush1.bf16.msra.mxu0 0
      %2800 = vmatprep.subr.bf16.mxu0 0
      %2801 = vmatpush1.bf16.msra.mxu0 0
      %2802 = vmatprep.subr.bf16.mxu0 0
      %2803 = vmatpush1.bf16.msra.mxu0 0
      %2804 = vmatprep.subr.bf16.mxu0 0
      %2805 = vmatpush1.bf16.msra.mxu0 0
      %2806 = vmatprep.subr.bf16.mxu0 0
      %2807 = vmatpush1.bf16.msra.mxu0 0
      %2808 = vmatprep.subr.bf16.mxu0 0
      %2809 = vmatpush1.bf16.msra.mxu0 0
      %2810 = vmatprep.subr.bf16.mxu0 0
      %2811 = vmatpush1.bf16.msra.mxu0 0
      %2812 = vmatprep.subr.bf16.mxu0 0
      %2813 = vmatpush1.bf16.msra.mxu0 0
      %2814 = vmatprep.subr.bf16.mxu0 0
      %2815 = vmatpush1.bf16.msra.mxu0 0
      %2816 = vmatprep.subr.bf16.mxu0 0
      %2817 = vmatpush1.bf16.msra.mxu0 0
      %2818 = vmatprep.subr.bf16.mxu0 0
      %2819 = vmatpush1.bf16.msra.mxu0 0
      %2820 = vmatprep.subr.bf16.mxu0 0
      %2821 = vmatpush1.bf16.msra.mxu0 0
      %2822 = vmatprep.mubr.bf16.mxu0 0
      %2823 = vmatmul.mubr.bf16.gmra.mrb[0].mxu0 %v2602
      %v2824 = vpop.f32.mrb[0].mxu0
      %v2825 = vadd.f32 %v2588, %v2824
      %v2826 = vpop.f32.mrb[0].mxu0
      %v2827 = vpop.f32.mrb[0].mxu0
      %v2828 = vadd.f32 %v2588, %v2827
      %v2829 = vpop.f32.mrb[0].mxu0
      %2830 = vmatprep.mubr.bf16.mxu0 0
      %2831 = vmatmul.mubr.bf16.gmra.mrb[0].mxu0 %v2605
      %v2832 = vpop.f32.mrb[0].mxu0
      %v2833 = vadd.f32 %v2588, %v2832
      %v2834 = vpop.f32.mrb[0].mxu0
      %v2835 = vpop.f32.mrb[0].mxu0
      %v2836 = vadd.f32 %v2588, %v2835
      %v2837 = vpop.f32.mrb[0].mxu0
      %2838 = vmatprep.mubr.bf16.mxu0 0
      %2839 = vmatmul.mubr.bf16.gmra.mrb[0].mxu0 %v2608
      %v2840 = vpop.f32.mrb[0].mxu0
      %v2841 = vadd.f32 %v2588, %v2840
      %v2842 = vpop.f32.mrb[0].mxu0
      %v2843 = vpop.f32.mrb[0].mxu0
      %v2844 = vadd.f32 %v2588, %v2843
      %v2845 = vpop.f32.mrb[0].mxu0
      %2846 = vmatprep.mubr.bf16.mxu0 0
      %2847 = vmatmul.mubr.bf16.gmra.mrb[0].mxu0 %v2611
      %v2848 = vpop.f32.mrb[0].mxu0
      %v2849 = vadd.f32 %v2588, %v2848
      %v2850 = vpop.f32.mrb[0].mxu0
      %v2851 = vpop.f32.mrb[0].mxu0
      %v2852 = vadd.f32 %v2588, %v2851
      %v2853 = vpop.f32.mrb[0].mxu0
      %2854 = vmatprep.mubr.bf16.mxu0 0
      %2855 = vmatmul.mubr.bf16.gmra.mrb[0].mxu0 %v2614
      %v2856 = vpop.f32.mrb[0].mxu0
      %v2857 = vadd.f32 %v2588, %v2856
      %v2858 = vpop.f32.mrb[0].mxu0
      %v2859 = vpop.f32.mrb[0].mxu0
      %v2860 = vadd.f32 %v2588, %v2859
      %v2861 = vpop.f32.mrb[0].mxu0
      %2862 = vmatprep.mubr.bf16.mxu0 0
      %2863 = vmatmul.mubr.bf16.gmra.mrb[0].mxu0 %v2617
      %v2864 = vpop.f32.mrb[0].mxu0
      %v2865 = vadd.f32 %v2588, %v2864
      %v2866 = vpop.f32.mrb[0].mxu0
      %v2867 = vpop.f32.mrb[0].mxu0
      %v2868 = vadd.f32 %v2588, %v2867
      %v2869 = vpop.f32.mrb[0].mxu0
      %2870 = vmatprep.mubr.bf16.mxu0 0
      %2871 = vmatmul.mubr.bf16.gmra.mrb[0].mxu0 %v2620
      %v2872 = vpop.f32.mrb[0].mxu0
      %v2873 = vadd.f32 %v2588, %v2872
      %v2874 = vpop.f32.mrb[0].mxu0
      %v2875 = vpop.f32.mrb[0].mxu0
      %v2876 = vadd.f32 %v2588, %v2875
      %v2877 = vpop.f32.mrb[0].mxu0
      %2878 = vmatprep.mubr.bf16.mxu0 0
      %2879 = vmatmul.mubr.bf16.gmra.mrb[0].mxu0 %v2623
      %v2880 = vpop.f32.mrb[0].mxu0
      %v2881 = vadd.f32 %v2588, %v2880
      %v2882 = vpop.f32.mrb[0].mxu0
      %v2883 = vpop.f32.mrb[0].mxu0
      %v2884 = vadd.f32 %v2588, %v2883
      %v2885 = vpop.f32.mrb[0].mxu0
      %2886 = vmatprep.mubr.bf16.mxu0 0
      %2887 = vmatmul.mubr.bf16.gmra.mrb[0].mxu0 %v2626
      %v2888 = vpop.f32.mrb[0].mxu0
      %v2889 = vadd.f32 %v2588, %v2888
      %v2890 = vpop.f32.mrb[0].mxu0
      %v2891 = vpop.f32.mrb[0].mxu0
      %v2892 = vadd.f32 %v2588, %v2891
      %v2893 = vpop.f32.mrb[0].mxu0
      %2894 = vmatprep.mubr.bf16.mxu0 0
      %2895 = vmatmul.mubr.bf16.gmra.mrb[0].mxu0 %v2629
      %v2896 = vpop.f32.mrb[0].mxu0
      %v2897 = vadd.f32 %v2588, %v2896
      %v2898 = vpop.f32.mrb[0].mxu0
      %v2899 = vpop.f32.mrb[0].mxu0
      %v2900 = vadd.f32 %v2588, %v2899
      %v2901 = vpop.f32.mrb[0].mxu0
      %2902 = vmatprep.mubr.bf16.mxu0 0
      %2903 = vmatmul.mubr.bf16.gmra.mrb[0].mxu0 %v2632
      %v2904 = vpop.f32.mrb[0].mxu0
      %v2905 = vadd.f32 %v2588, %v2904
      %v2906 = vpop.f32.mrb[0].mxu0
      %v2907 = vpop.f32.mrb[0].mxu0
      %v2908 = vadd.f32 %v2588, %v2907
      %v2909 = vpop.f32.mrb[0].mxu0
      %2910 = vmatprep.mubr.bf16.mxu0 0
      %2911 = vmatmul.mubr.bf16.gmra.mrb[0].mxu0 %v2635
      %v2912 = vpop.f32.mrb[0].mxu0
      %v2913 = vadd.f32 %v2588, %v2912
      %v2914 = vpop.f32.mrb[0].mxu0
      %v2915 = vpop.f32.mrb[0].mxu0
      %v2916 = vadd.f32 %v2588, %v2915
      %v2917 = vpop.f32.mrb[0].mxu0
      %2918 = vmatprep.mubr.bf16.mxu0 0
      %2919 = vmatmul.mubr.bf16.gmra.mrb[0].mxu0 %v2638
      %v2920 = vpop.f32.mrb[0].mxu0
      %v2921 = vadd.f32 %v2588, %v2920
      %v2922 = vpop.f32.mrb[0].mxu0
      %v2923 = vpop.f32.mrb[0].mxu0
      %v2924 = vadd.f32 %v2588, %v2923
      %v2925 = vpop.f32.mrb[0].mxu0
      %2926 = vmatprep.mubr.bf16.mxu0 0
      %2927 = vmatmul.mubr.bf16.gmra.mrb[0].mxu0 %v2641
      %v2928 = vpop.f32.mrb[0].mxu0
      %v2929 = vadd.f32 %v2588, %v2928
      %v2930 = vpop.f32.mrb[0].mxu0
      %v2931 = vpop.f32.mrb[0].mxu0
      %v2932 = vadd.f32 %v2588, %v2931
      %v2933 = vpop.f32.mrb[0].mxu0
      %2934 = vmatprep.mubr.bf16.mxu0 0
      %2935 = vmatmul.mubr.bf16.gmra.mrb[0].mxu0 %v2644
      %v2936 = vpop.f32.mrb[0].mxu0
      %v2937 = vadd.f32 %v2588, %v2936
      %v2938 = vpop.f32.mrb[0].mxu0
      %v2939 = vpop.f32.mrb[0].mxu0
      %v2940 = vadd.f32 %v2588, %v2939
      %v2941 = vpop.f32.mrb[0].mxu0
      %2942 = vmatprep.mubr.bf16.mxu0 0
      %2943 = vmatmul.mubr.bf16.gmra.mrb[0].mxu0 %v2647
      %v2944 = vpop.f32.mrb[0].mxu0
      %v2945 = vadd.f32 %v2588, %v2944
      %v2946 = vpop.f32.mrb[0].mxu0
      %v2947 = vpop.f32.mrb[0].mxu0
      %v2948 = vadd.f32 %v2588, %v2947
      %v2949 = vpop.f32.mrb[0].mxu0
      %2950 = vmatprep.mubr.bf16.mxu0 0
      %2951 = vmatmul.mubr.bf16.gmra.mrb[0].mxu0 %v2650
      %v2952 = vpop.f32.mrb[0].mxu0
      %v2953 = vadd.f32 %v2588, %v2952
      %v2954 = vpop.f32.mrb[0].mxu0
      %v2955 = vpop.f32.mrb[0].mxu0
      %v2956 = vadd.f32 %v2588, %v2955
      %v2957 = vpop.f32.mrb[0].mxu0
      %2958 = vmatprep.mubr.bf16.mxu0 0
      %2959 = vmatmul.mubr.bf16.gmra.mrb[0].mxu0 %v2653
      %v2960 = vpop.f32.mrb[0].mxu0
      %v2961 = vadd.f32 %v2588, %v2960
      %v2962 = vpop.f32.mrb[0].mxu0
      %v2963 = vpop.f32.mrb[0].mxu0
      %v2964 = vadd.f32 %v2588, %v2963
      %v2965 = vpop.f32.mrb[0].mxu0
      %2966 = vmatprep.mubr.bf16.mxu0 0
      %2967 = vmatmul.mubr.bf16.gmra.mrb[0].mxu0 %v2656
      %v2968 = vpop.f32.mrb[0].mxu0
      %v2969 = vadd.f32 %v2588, %v2968
      %v2970 = vpop.f32.mrb[0].mxu0
      %v2971 = vpop.f32.mrb[0].mxu0
      %v2972 = vadd.f32 %v2588, %v2971
      %v2973 = vpop.f32.mrb[0].mxu0
      %2974 = vmatprep.mubr.bf16.mxu0 0
      %2975 = vmatmul.mubr.bf16.gmra.mrb[0].mxu0 %v2659
      %v2976 = vpop.f32.mrb[0].mxu0
      %v2977 = vadd.f32 %v2588, %v2976
      %v2978 = vpop.f32.mrb[0].mxu0
      %v2979 = vpop.f32.mrb[0].mxu0
      %v2980 = vadd.f32 %v2588, %v2979
      %v2981 = vpop.f32.mrb[0].mxu0
      %2982 = vmatprep.mubr.bf16.mxu0 0
      %2983 = vmatmul.mubr.bf16.gmra.mrb[0].mxu0 %v2662
      %v2984 = vpop.f32.mrb[0].mxu0
      %v2985 = vadd.f32 %v2588, %v2984
      %v2986 = vpop.f32.mrb[0].mxu0
      %v2987 = vpop.f32.mrb[0].mxu0
      %v2988 = vadd.f32 %v2588, %v2987
      %v2989 = vpop.f32.mrb[0].mxu0
      %2990 = vmatprep.mubr.bf16.mxu0 0
      %2991 = vmatmul.mubr.bf16.gmra.mrb[0].mxu0 %v2665
      %v2992 = vpop.f32.mrb[0].mxu0
      %v2993 = vadd.f32 %v2588, %v2992
      %v2994 = vpop.f32.mrb[0].mxu0
      %v2995 = vpop.f32.mrb[0].mxu0
      %v2996 = vadd.f32 %v2588, %v2995
      %v2997 = vpop.f32.mrb[0].mxu0
      %2998 = vmatprep.mubr.bf16.mxu0 0
      %2999 = vmatmul.mubr.bf16.gmra.mrb[0].mxu0 %v2668
      %v3000 = vpop.f32.mrb[0].mxu0
      %v3001 = vadd.f32 %v2588, %v3000
      %v3002 = vpop.f32.mrb[0].mxu0
      %v3003 = vpop.f32.mrb[0].mxu0
      %v3004 = vadd.f32 %v2588, %v3003
      %v3005 = vpop.f32.mrb[0].mxu0
      %3006 = vmatprep.mubr.bf16.mxu0 0
      %3007 = vmatmul.mubr.bf16.gmra.mrb[0].mxu0 %v2671
      %v3008 = vpop.f32.mrb[0].mxu0
      %v3009 = vadd.f32 %v2588, %v3008
      %v3010 = vpop.f32.mrb[0].mxu0
      %v3011 = vpop.f32.mrb[0].mxu0
      %v3012 = vadd.f32 %v2588, %v3011
      %v3013 = vpop.f32.mrb[0].mxu0
      %3014 = vmatprep.mubr.bf16.mxu0 0
      %3015 = vmatmul.mubr.bf16.gmra.mrb[0].mxu0 %v2674
      %v3016 = vpop.f32.mrb[0].mxu0
      %v3017 = vadd.f32 %v2588, %v3016
      %v3018 = vpop.f32.mrb[0].mxu0
      %v3019 = vpop.f32.mrb[0].mxu0
      %v3020 = vadd.f32 %v2588, %v3019
      %v3021 = vpop.f32.mrb[0].mxu0
      %3022 = vmatprep.mubr.bf16.mxu0 0
      %3023 = vmatmul.mubr.bf16.gmra.mrb[0].mxu0 %v2677
      %v3024 = vpop.f32.mrb[0].mxu0
      %v3025 = vadd.f32 %v2588, %v3024
      %v3026 = vpop.f32.mrb[0].mxu0
      %v3027 = vpop.f32.mrb[0].mxu0
      %v3028 = vadd.f32 %v2588, %v3027
      %v3029 = vpop.f32.mrb[0].mxu0
      %3030 = vmatprep.mubr.bf16.mxu0 0
      %3031 = vmatmul.mubr.bf16.gmra.mrb[0].mxu0 %v2680
      %v3032 = vpop.f32.mrb[0].mxu0
      %v3033 = vadd.f32 %v2588, %v3032
      %v3034 = vpop.f32.mrb[0].mxu0
      %v3035 = vpop.f32.mrb[0].mxu0
      %v3036 = vadd.f32 %v2588, %v3035
      %v3037 = vpop.f32.mrb[0].mxu0
      %3038 = vmatprep.mubr.bf16.mxu0 0
      %3039 = vmatmul.mubr.bf16.gmra.mrb[0].mxu0 %v2683
      %v3040 = vpop.f32.mrb[0].mxu0
      %v3041 = vadd.f32 %v2588, %v3040
      %v3042 = vpop.f32.mrb[0].mxu0
      %v3043 = vpop.f32.mrb[0].mxu0
      %v3044 = vadd.f32 %v2588, %v3043
      %v3045 = vpop.f32.mrb[0].mxu0
      %3046 = vmatprep.mubr.bf16.mxu0 0
      %3047 = vmatmul.mubr.bf16.gmra.mrb[0].mxu0 %v2686
      %v3048 = vpop.f32.mrb[0].mxu0
      %v3049 = vadd.f32 %v2588, %v3048
      %v3050 = vpop.f32.mrb[0].mxu0
      %v3051 = vpop.f32.mrb[0].mxu0
      %v3052 = vadd.f32 %v2588, %v3051
      %v3053 = vpop.f32.mrb[0].mxu0
      %3054 = vmatprep.mubr.bf16.mxu0 0
      %3055 = vmatmul.mubr.bf16.gmra.mrb[0].mxu0 %v2689
      %v3056 = vpop.f32.mrb[0].mxu0
      %v3057 = vadd.f32 %v2588, %v3056
      %v3058 = vpop.f32.mrb[0].mxu0
      %v3059 = vpop.f32.mrb[0].mxu0
      %v3060 = vadd.f32 %v2588, %v3059
      %v3061 = vpop.f32.mrb[0].mxu0
      %3062 = vmatprep.mubr.bf16.mxu0 0
      %3063 = vmatmul.mubr.bf16.gmra.mrb[0].mxu0 %v2692
      %v3064 = vpop.f32.mrb[0].mxu0
      %v3065 = vadd.f32 %v2588, %v3064
      %v3066 = vpop.f32.mrb[0].mxu0
      %v3067 = vpop.f32.mrb[0].mxu0
      %v3068 = vadd.f32 %v2588, %v3067
      %v3069 = vpop.f32.mrb[0].mxu0
      %3070 = vmatprep.mubr.bf16.mxu0 0
      %3071 = vmatmul.mubr.bf16.gmra.mrb[0].mxu0 %v2695
      %v3072 = vpop.f32.mrb[0].mxu0
      %v3073 = vadd.f32 %v2588, %v3072
      %v3074 = vpop.f32.mrb[0].mxu0
      %v3075 = vpop.f32.mrb[0].mxu0
      %v3076 = vadd.f32 %v2588, %v3075
      %v3077 = vpop.f32.mrb[0].mxu0
      %3078 = vmatprep.mubr.bf16.mxu0 0
      %3079 = vmatmul.mubr.bf16.gmra.mrb[0].mxu0 %v2698
      %v3080 = vpop.f32.mrb[0].mxu0
      %v3081 = vadd.f32 %v2588, %v3080
      %v3082 = vpop.f32.mrb[0].mxu0
      %v3083 = vpop.f32.mrb[0].mxu0
      %v3084 = vadd.f32 %v2588, %v3083
      %v3085 = vpop.f32.mrb[0].mxu0
      %3086 = vmatprep.mubr.bf16.mxu0 0
      %3087 = vmatmul.mubr.bf16.gmra.mrb[0].mxu0 %v2701
      %v3088 = vpop.f32.mrb[0].mxu0
      %v3089 = vadd.f32 %v2588, %v3088
      %v3090 = vpop.f32.mrb[0].mxu0
      %v3091 = vpop.f32.mrb[0].mxu0
      %v3092 = vadd.f32 %v2588, %v3091
      %v3093 = vpop.f32.mrb[0].mxu0
      %3094 = vmatprep.mubr.bf16.mxu0 0
      %3095 = vmatmul.mubr.bf16.gmra.mrb[0].mxu0 %v2704
      %v3096 = vpop.f32.mrb[0].mxu0
      %v3097 = vadd.f32 %v2588, %v3096
      %v3098 = vpop.f32.mrb[0].mxu0
      %v3099 = vpop.f32.mrb[0].mxu0
      %v3100 = vadd.f32 %v2588, %v3099
      %v3101 = vpop.f32.mrb[0].mxu0
      %3102 = vmatprep.mubr.bf16.mxu0 0
      %3103 = vmatmul.mubr.bf16.gmra.mrb[0].mxu0 %v2707
      %v3104 = vpop.f32.mrb[0].mxu0
      %v3105 = vadd.f32 %v2588, %v3104
      %v3106 = vpop.f32.mrb[0].mxu0
      %v3107 = vpop.f32.mrb[0].mxu0
      %v3108 = vadd.f32 %v2588, %v3107
      %v3109 = vpop.f32.mrb[0].mxu0
      %3110 = vmatprep.mubr.bf16.mxu0 0
      %3111 = vmatmul.mubr.bf16.gmra.mrb[0].mxu0 %v2710
      %v3112 = vpop.f32.mrb[0].mxu0
      %v3113 = vadd.f32 %v2588, %v3112
      %v3114 = vpop.f32.mrb[0].mxu0
      %v3115 = vpop.f32.mrb[0].mxu0
      %v3116 = vadd.f32 %v2588, %v3115
      %v3117 = vpop.f32.mrb[0].mxu0
      %3118 = vmatprep.mubr.bf16.mxu0 0
      %3119 = vmatmul.mubr.bf16.gmra.mrb[0].mxu0 %v2713
      %v3120 = vpop.f32.mrb[0].mxu0
      %v3121 = vadd.f32 %v2588, %v3120
      %v3122 = vpop.f32.mrb[0].mxu0
      %v3123 = vpop.f32.mrb[0].mxu0
      %v3124 = vadd.f32 %v2588, %v3123
      %v3125 = vpop.f32.mrb[0].mxu0
      %3126 = vmatprep.mubr.bf16.mxu0 0
      %3127 = vmatmul.mubr.bf16.gmra.mrb[0].mxu0 %v2716
      %v3128 = vpop.f32.mrb[0].mxu0
      %v3129 = vadd.f32 %v2588, %v3128
      %v3130 = vpop.f32.mrb[0].mxu0
      %v3131 = vpop.f32.mrb[0].mxu0
      %v3132 = vadd.f32 %v2588, %v3131
      %v3133 = vpop.f32.mrb[0].mxu0
      %3134 = vmatprep.mubr.bf16.mxu0 0
      %3135 = vmatmul.mubr.bf16.gmra.mrb[0].mxu0 %v2719
      %v3136 = vpop.f32.mrb[0].mxu0
      %v3137 = vadd.f32 %v2588, %v3136
      %v3138 = vpop.f32.mrb[0].mxu0
      %v3139 = vpop.f32.mrb[0].mxu0
      %v3140 = vadd.f32 %v2588, %v3139
      %v3141 = vpop.f32.mrb[0].mxu0
      %3142 = vmatprep.mubr.bf16.mxu0 0
      %3143 = vmatmul.mubr.bf16.gmra.mrb[0].mxu0 %v2722
      %v3144 = vpop.f32.mrb[0].mxu0
      %v3145 = vadd.f32 %v2588, %v3144
      %v3146 = vpop.f32.mrb[0].mxu0
      %v3147 = vpop.f32.mrb[0].mxu0
      %v3148 = vadd.f32 %v2588, %v3147
      %v3149 = vpop.f32.mrb[0].mxu0
      %3150 = vmatprep.mubr.bf16.mxu0 0
      %3151 = vmatmul.mubr.bf16.gmra.mrb[0].mxu0 %v2725
      %v3152 = vpop.f32.mrb[0].mxu0
      %v3153 = vadd.f32 %v2588, %v3152
      %v3154 = vpop.f32.mrb[0].mxu0
      %v3155 = vpop.f32.mrb[0].mxu0
      %v3156 = vadd.f32 %v2588, %v3155
      %v3157 = vpop.f32.mrb[0].mxu0
      %3158 = vmatprep.mubr.bf16.mxu0 0
      %3159 = vmatmul.mubr.bf16.gmra.mrb[0].mxu0 %v2728
      %v3160 = vpop.f32.mrb[0].mxu0
      %v3161 = vadd.f32 %v2588, %v3160
      %v3162 = vpop.f32.mrb[0].mxu0
      %v3163 = vpop.f32.mrb[0].mxu0
      %v3164 = vadd.f32 %v2588, %v3163
      %v3165 = vpop.f32.mrb[0].mxu0
      %3166 = vmatprep.mubr.bf16.mxu0 0
      %3167 = vmatmul.mubr.bf16.gmra.mrb[0].mxu0 %v2731
      %v3168 = vpop.f32.mrb[0].mxu0
      %v3169 = vadd.f32 %v2588, %v3168
      %v3170 = vpop.f32.mrb[0].mxu0
      %v3171 = vpop.f32.mrb[0].mxu0
      %v3172 = vadd.f32 %v2588, %v3171
      %v3173 = vpop.f32.mrb[0].mxu0
      %3174 = vmatprep.mubr.bf16.mxu0 0
      %3175 = vmatmul.mubr.bf16.gmra.mrb[0].mxu0 %v2734
      %v3176 = vpop.f32.mrb[0].mxu0
      %v3177 = vadd.f32 %v2588, %v3176
      %v3178 = vpop.f32.mrb[0].mxu0
      %v3179 = vpop.f32.mrb[0].mxu0
      %v3180 = vadd.f32 %v2588, %v3179
      %v3181 = vpop.f32.mrb[0].mxu0
      %3182 = vmatprep.mubr.bf16.mxu0 0
      %3183 = vmatmul.mubr.bf16.gmra.mrb[0].mxu0 %v2737
      %v3184 = vpop.f32.mrb[0].mxu0
      %v3185 = vadd.f32 %v2588, %v3184
      %v3186 = vpop.f32.mrb[0].mxu0
      %v3187 = vpop.f32.mrb[0].mxu0
      %v3188 = vadd.f32 %v2588, %v3187
      %v3189 = vpop.f32.mrb[0].mxu0
      %3190 = vmatprep.mubr.bf16.mxu0 0
      %3191 = vmatmul.mubr.bf16.gmra.mrb[0].mxu0 %v2740
      %v3192 = vpop.f32.mrb[0].mxu0
      %v3193 = vadd.f32 %v2588, %v3192
      %v3194 = vpop.f32.mrb[0].mxu0
      %v3195 = vpop.f32.mrb[0].mxu0
      %v3196 = vadd.f32 %v2588, %v3195
      %v3197 = vpop.f32.mrb[0].mxu0
      %3198 = vmatprep.mubr.bf16.mxu0 0
      %3199 = vmatmul.mubr.bf16.gmra.mrb[0].mxu0 %v2743
      %v3200 = vpop.f32.mrb[0].mxu0
      %v3201 = vadd.f32 %v2588, %v3200
      %v3202 = vpop.f32.mrb[0].mxu0
      %v3203 = vpop.f32.mrb[0].mxu0
      %v3204 = vadd.f32 %v2588, %v3203
      %v3205 = vpop.f32.mrb[0].mxu0
      %3206 = vmatprep.mubr.bf16.mxu0 0
      %3207 = vmatmul.mubr.bf16.gmra.mrb[0].mxu0 %v2746
      %v3208 = vpop.f32.mrb[0].mxu0
      %v3209 = vadd.f32 %v2588, %v3208
      %v3210 = vpop.f32.mrb[0].mxu0
      %v3211 = vpop.f32.mrb[0].mxu0
      %v3212 = vadd.f32 %v2588, %v3211
      %v3213 = vpop.f32.mrb[0].mxu0
      %3214 = vmatprep.mubr.bf16.mxu0 0
      %3215 = vmatmul.mubr.bf16.gmra.mrb[0].mxu0 %v2749
      %v3216 = vpop.f32.mrb[0].mxu0
      %v3217 = vadd.f32 %v2588, %v3216
      %v3218 = vpop.f32.mrb[0].mxu0
      %v3219 = vpop.f32.mrb[0].mxu0
      %v3220 = vadd.f32 %v2588, %v3219
      %v3221 = vpop.f32.mrb[0].mxu0
      %3222 = vmatprep.mubr.bf16.mxu0 0
      %3223 = vmatmul.mubr.bf16.gmra.mrb[0].mxu0 %v2752
      %v3224 = vpop.f32.mrb[0].mxu0
      %v3225 = vadd.f32 %v2588, %v3224
      %v3226 = vpop.f32.mrb[0].mxu0
      %v3227 = vpop.f32.mrb[0].mxu0
      %v3228 = vadd.f32 %v2588, %v3227
      %v3229 = vpop.f32.mrb[0].mxu0
      %3230 = vmatprep.mubr.bf16.mxu0 0
      %3231 = vmatmul.mubr.bf16.gmra.mrb[0].mxu0 %v2755
      %v3232 = vpop.f32.mrb[0].mxu0
      %v3233 = vadd.f32 %v2588, %v3232
      %v3234 = vpop.f32.mrb[0].mxu0
      %v3235 = vpop.f32.mrb[0].mxu0
      %v3236 = vadd.f32 %v2588, %v3235
      %v3237 = vpop.f32.mrb[0].mxu0
      %3238 = vmatprep.mubr.bf16.mxu0 0
      %3239 = vmatmul.mubr.bf16.gmra.mrb[0].mxu0 %v2758
      %v3240 = vpop.f32.mrb[0].mxu0
      %v3241 = vadd.f32 %v2588, %v3240
      %v3242 = vpop.f32.mrb[0].mxu0
      %v3243 = vpop.f32.mrb[0].mxu0
      %v3244 = vadd.f32 %v2588, %v3243
      %v3245 = vpop.f32.mrb[0].mxu0
      %3246 = vmatprep.mubr.bf16.mxu0 0
      %3247 = vmatmul.mubr.bf16.gmra.mrb[0].mxu0 %v2761
      %v3248 = vpop.f32.mrb[0].mxu0
      %v3249 = vadd.f32 %v2588, %v3248
      %v3250 = vpop.f32.mrb[0].mxu0
      %v3251 = vpop.f32.mrb[0].mxu0
      %v3252 = vadd.f32 %v2588, %v3251
      %v3253 = vpop.f32.mrb[0].mxu0
      %3254 = vmatprep.mubr.bf16.mxu0 0
      %3255 = vmatmul.mubr.bf16.gmra.mrb[0].mxu0 %v2764
      %v3256 = vpop.f32.mrb[0].mxu0
      %v3257 = vadd.f32 %v2588, %v3256
      %v3258 = vpop.f32.mrb[0].mxu0
      %v3259 = vpop.f32.mrb[0].mxu0
      %v3260 = vadd.f32 %v2588, %v3259
      %v3261 = vpop.f32.mrb[0].mxu0
      %3262 = vmatprep.mubr.bf16.mxu0 0
      %3263 = vmatmul.mubr.bf16.gmra.mrb[0].mxu0 %v2767
      %v3264 = vpop.f32.mrb[0].mxu0
      %v3265 = vadd.f32 %v2588, %v3264
      %v3266 = vpop.f32.mrb[0].mxu0
      %v3267 = vpop.f32.mrb[0].mxu0
      %v3268 = vadd.f32 %v2588, %v3267
      %v3269 = vpop.f32.mrb[0].mxu0
      %3270 = vmatprep.mubr.bf16.mxu0 0
      %3271 = vmatmul.mubr.bf16.gmra.mrb[0].mxu0 %v2770
      %v3272 = vpop.f32.mrb[0].mxu0
      %v3273 = vadd.f32 %v2588, %v3272
      %v3274 = vpop.f32.mrb[0].mxu0
      %v3275 = vpop.f32.mrb[0].mxu0
      %v3276 = vadd.f32 %v2588, %v3275
      %v3277 = vpop.f32.mrb[0].mxu0
      %3278 = vmatprep.mubr.bf16.mxu0 0
      %3279 = vmatmul.mubr.bf16.gmra.mrb[0].mxu0 %v2773
      %v3280 = vpop.f32.mrb[0].mxu0
      %v3281 = vadd.f32 %v2588, %v3280
      %v3282 = vpop.f32.mrb[0].mxu0
      %v3283 = vpop.f32.mrb[0].mxu0
      %v3284 = vadd.f32 %v2588, %v3283
      %v3285 = vpop.f32.mrb[0].mxu0
      %3286 = vmatprep.mubr.bf16.mxu0 0
      %3287 = vmatmul.mubr.bf16.gmra.mrb[0].mxu0 %v2776
      %v3288 = vpop.f32.mrb[0].mxu0
      %v3289 = vadd.f32 %v2588, %v3288
      %v3290 = vpop.f32.mrb[0].mxu0
      %v3291 = vpop.f32.mrb[0].mxu0
      %v3292 = vadd.f32 %v2588, %v3291
      %v3293 = vpop.f32.mrb[0].mxu0
      %3294 = vmatprep.mubr.bf16.mxu0 0
      %3295 = vmatmul.mubr.bf16.gmra.mrb[0].mxu0 %v2779
      %v3296 = vpop.f32.mrb[0].mxu0
      %v3297 = vadd.f32 %v2588, %v3296
      %v3298 = vpop.f32.mrb[0].mxu0
      %v3299 = vpop.f32.mrb[0].mxu0
      %v3300 = vadd.f32 %v2588, %v3299
      %v3301 = vpop.f32.mrb[0].mxu0
      %3302 = vmatprep.mubr.bf16.mxu0 0
      %3303 = vmatmul.mubr.bf16.gmra.mrb[0].mxu0 %v2782
      %v3304 = vpop.f32.mrb[0].mxu0
      %v3305 = vadd.f32 %v2588, %v3304
      %v3306 = vpop.f32.mrb[0].mxu0
      %v3307 = vpop.f32.mrb[0].mxu0
      %v3308 = vadd.f32 %v2588, %v3307
      %v3309 = vpop.f32.mrb[0].mxu0
      %3310 = vmatprep.mubr.bf16.mxu0 0
      %3311 = vmatmul.mubr.bf16.gmra.mrb[0].mxu0 %v2785
      %v3312 = vpop.f32.mrb[0].mxu0
      %v3313 = vadd.f32 %v2588, %v3312
      %v3314 = vpop.f32.mrb[0].mxu0
      %v3315 = vpop.f32.mrb[0].mxu0
      %v3316 = vadd.f32 %v2588, %v3315
      %v3317 = vpop.f32.mrb[0].mxu0
      %3318 = vmatprep.mubr.bf16.mxu0 0
      %3319 = vmatmul.mubr.bf16.gmra.mrb[0].mxu0 %v2788
      %v3320 = vpop.f32.mrb[0].mxu0
      %v3321 = vadd.f32 %v2588, %v3320
      %v3322 = vpop.f32.mrb[0].mxu0
      %v3323 = vpop.f32.mrb[0].mxu0
      %v3324 = vadd.f32 %v2588, %v3323
      %v3325 = vpop.f32.mrb[0].mxu0
      %3326 = vdwg.mxu0
      %v3327 = vmax.f32 %v2825, 0.0
      %v3328 = vmax.f32 %v2828, 0.0
      %v3329 = vmax.f32 %v2833, 0.0
      %v3330 = vmax.f32 %v2836, 0.0
      %v3331 = vmax.f32 %v2841, 0.0
      %v3332 = vmax.f32 %v2844, 0.0
      %v3333 = vmax.f32 %v2849, 0.0
      %v3334 = vmax.f32 %v2852, 0.0
      %v3335 = vmax.f32 %v2857, 0.0
      %v3336 = vmax.f32 %v2860, 0.0
      %v3337 = vmax.f32 %v2865, 0.0
      %v3338 = vmax.f32 %v2868, 0.0
      %v3339 = vmax.f32 %v2873, 0.0
      %v3340 = vmax.f32 %v2876, 0.0
      %v3341 = vmax.f32 %v2881, 0.0
      %v3342 = vmax.f32 %v2884, 0.0
      %v3343 = vmax.f32 %v2889, 0.0
      %v3344 = vmax.f32 %v2892, 0.0
      %v3345 = vmax.f32 %v2897, 0.0
      %v3346 = vmax.f32 %v2900, 0.0
      %v3347 = vmax.f32 %v2905, 0.0
      %v3348 = vmax.f32 %v2908, 0.0
      %v3349 = vmax.f32 %v2913, 0.0
      %v3350 = vmax.f32 %v2916, 0.0
      %v3351 = vmax.f32 %v2921, 0.0
      %v3352 = vmax.f32 %v2924, 0.0
      %v3353 = vmax.f32 %v2929, 0.0
      %v3354 = vmax.f32 %v2932, 0.0
      %v3355 = vmax.f32 %v2937, 0.0
      %v3356 = vmax.f32 %v2940, 0.0
      %v3357 = vmax.f32 %v2945, 0.0
      %v3358 = vmax.f32 %v2948, 0.0
      %v3359 = vmax.f32 %v2953, 0.0
      %v3360 = vmax.f32 %v2956, 0.0
      %v3361 = vmax.f32 %v2961, 0.0
      %v3362 = vmax.f32 %v2964, 0.0
      %v3363 = vmax.f32 %v2969, 0.0
      %v3364 = vmax.f32 %v2972, 0.0
      %v3365 = vmax.f32 %v2977, 0.0
      %v3366 = vmax.f32 %v2980, 0.0
      %v3367 = vmax.f32 %v2985, 0.0
      %v3368 = vmax.f32 %v2988, 0.0
      %v3369 = vmax.f32 %v2993, 0.0
      %v3370 = vmax.f32 %v2996, 0.0
      %v3371 = vmax.f32 %v3001, 0.0
      %v3372 = vmax.f32 %v3004, 0.0
      %v3373 = vmax.f32 %v3009, 0.0
      %v3374 = vmax.f32 %v3012, 0.0
      %v3375 = vmax.f32 %v3017, 0.0
      %v3376 = vmax.f32 %v3020, 0.0
      %v3377 = vmax.f32 %v3025, 0.0
      %v3378 = vmax.f32 %v3028, 0.0
      %v3379 = vmax.f32 %v3033, 0.0
      %v3380 = vmax.f32 %v3036, 0.0
      %v3381 = vmax.f32 %v3041, 0.0
      %v3382 = vmax.f32 %v3044, 0.0
      %v3383 = vmax.f32 %v3049, 0.0
      %v3384 = vmax.f32 %v3052, 0.0
      %v3385 = vmax.f32 %v3057, 0.0
      %v3386 = vmax.f32 %v3060, 0.0
      %v3387 = vmax.f32 %v3065, 0.0
      %v3388 = vmax.f32 %v3068, 0.0
      %v3389 = vmax.f32 %v3073, 0.0
      %v3390 = vmax.f32 %v3076, 0.0
      %v3391 = vmax.f32 %v3081, 0.0
      %v3392 = vmax.f32 %v3084, 0.0
      %v3393 = vmax.f32 %v3089, 0.0
      %v3394 = vmax.f32 %v3092, 0.0
      %v3395 = vmax.f32 %v3097, 0.0
      %v3396 = vmax.f32 %v3100, 0.0
      %v3397 = vmax.f32 %v3105, 0.0
      %v3398 = vmax.f32 %v3108, 0.0
      %v3399 = vmax.f32 %v3113, 0.0
      %v3400 = vmax.f32 %v3116, 0.0
      %v3401 = vmax.f32 %v3121, 0.0
      %v3402 = vmax.f32 %v3124, 0.0
      %v3403 = vmax.f32 %v3129, 0.0
      %v3404 = vmax.f32 %v3132, 0.0
      %v3405 = vmax.f32 %v3137, 0.0
      %v3406 = vmax.f32 %v3140, 0.0
      %v3407 = vmax.f32 %v3145, 0.0
      %v3408 = vmax.f32 %v3148, 0.0
      %v3409 = vmax.f32 %v3153, 0.0
      %v3410 = vmax.f32 %v3156, 0.0
      %v3411 = vmax.f32 %v3161, 0.0
      %v3412 = vmax.f32 %v3164, 0.0
      %v3413 = vmax.f32 %v3169, 0.0
      %v3414 = vmax.f32 %v3172, 0.0
      %v3415 = vmax.f32 %v3177, 0.0
      %v3416 = vmax.f32 %v3180, 0.0
      %v3417 = vmax.f32 %v3185, 0.0
      %v3418 = vmax.f32 %v3188, 0.0
      %v3419 = vmax.f32 %v3193, 0.0
      %v3420 = vmax.f32 %v3196, 0.0
      %v3421 = vmax.f32 %v3201, 0.0
      %v3422 = vmax.f32 %v3204, 0.0
      %v3423 = vmax.f32 %v3209, 0.0
      %v3424 = vmax.f32 %v3212, 0.0
      %v3425 = vmax.f32 %v3217, 0.0
      %v3426 = vmax.f32 %v3220, 0.0
      %v3427 = vmax.f32 %v3225, 0.0
      %v3428 = vmax.f32 %v3228, 0.0
      %v3429 = vmax.f32 %v3233, 0.0
      %v3430 = vmax.f32 %v3236, 0.0
      %v3431 = vmax.f32 %v3241, 0.0
      %v3432 = vmax.f32 %v3244, 0.0
      %v3433 = vmax.f32 %v3249, 0.0
      %v3434 = vmax.f32 %v3252, 0.0
      %v3435 = vmax.f32 %v3257, 0.0
      %v3436 = vmax.f32 %v3260, 0.0
      %v3437 = vmax.f32 %v3265, 0.0
      %v3438 = vmax.f32 %v3268, 0.0
      %v3439 = vmax.f32 %v3273, 0.0
      %v3440 = vmax.f32 %v3276, 0.0
      %v3441 = vmax.f32 %v3281, 0.0
      %v3442 = vmax.f32 %v3284, 0.0
      %v3443 = vmax.f32 %v3289, 0.0
      %v3444 = vmax.f32 %v3292, 0.0
      %v3445 = vmax.f32 %v3297, 0.0
      %v3446 = vmax.f32 %v3300, 0.0
      %v3447 = vmax.f32 %v3305, 0.0
      %v3448 = vmax.f32 %v3308, 0.0
      %v3449 = vmax.f32 %v3313, 0.0
      %v3450 = vmax.f32 %v3316, 0.0
      %v3451 = vmax.f32 %v3321, 0.0
      %v3452 = vmax.f32 %v3324, 0.0
      %v3453 = vpack.c.bf16 %v3328, %v3327
      %v3454 = vpack.c.bf16 %v3330, %v3329
      %v3455 = vpack.c.bf16 %v3332, %v3331
      %v3456 = vpack.c.bf16 %v3334, %v3333
      %v3457 = vpack.c.bf16 %v3336, %v3335
      %v3458 = vpack.c.bf16 %v3338, %v3337
      %v3459 = vpack.c.bf16 %v3340, %v3339
      %v3460 = vpack.c.bf16 %v3342, %v3341
      %v3461 = vpack.c.bf16 %v3344, %v3343
      %v3462 = vpack.c.bf16 %v3346, %v3345
      %v3463 = vpack.c.bf16 %v3348, %v3347
      %v3464 = vpack.c.bf16 %v3350, %v3349
      %v3465 = vpack.c.bf16 %v3352, %v3351
      %v3466 = vpack.c.bf16 %v3354, %v3353
      %v3467 = vpack.c.bf16 %v3356, %v3355
      %v3468 = vpack.c.bf16 %v3358, %v3357
      %v3469 = vpack.c.bf16 %v3360, %v3359
      %v3470 = vpack.c.bf16 %v3362, %v3361
      %v3471 = vpack.c.bf16 %v3364, %v3363
      %v3472 = vpack.c.bf16 %v3366, %v3365
      %v3473 = vpack.c.bf16 %v3368, %v3367
      %v3474 = vpack.c.bf16 %v3370, %v3369
      %v3475 = vpack.c.bf16 %v3372, %v3371
      %v3476 = vpack.c.bf16 %v3374, %v3373
      %v3477 = vpack.c.bf16 %v3376, %v3375
      %v3478 = vpack.c.bf16 %v3378, %v3377
      %v3479 = vpack.c.bf16 %v3380, %v3379
      %v3480 = vpack.c.bf16 %v3382, %v3381
      %v3481 = vpack.c.bf16 %v3384, %v3383
      %v3482 = vpack.c.bf16 %v3386, %v3385
      %v3483 = vpack.c.bf16 %v3388, %v3387
      %v3484 = vpack.c.bf16 %v3390, %v3389
      %v3485 = vpack.c.bf16 %v3392, %v3391
      %v3486 = vpack.c.bf16 %v3394, %v3393
      %v3487 = vpack.c.bf16 %v3396, %v3395
      %v3488 = vpack.c.bf16 %v3398, %v3397
      %v3489 = vpack.c.bf16 %v3400, %v3399
      %v3490 = vpack.c.bf16 %v3402, %v3401
      %v3491 = vpack.c.bf16 %v3404, %v3403
      %v3492 = vpack.c.bf16 %v3406, %v3405
      %v3493 = vpack.c.bf16 %v3408, %v3407
      %v3494 = vpack.c.bf16 %v3410, %v3409
      %v3495 = vpack.c.bf16 %v3412, %v3411
      %v3496 = vpack.c.bf16 %v3414, %v3413
      %v3497 = vpack.c.bf16 %v3416, %v3415
      %v3498 = vpack.c.bf16 %v3418, %v3417
      %v3499 = vpack.c.bf16 %v3420, %v3419
      %v3500 = vpack.c.bf16 %v3422, %v3421
      %v3501 = vpack.c.bf16 %v3424, %v3423
      %v3502 = vpack.c.bf16 %v3426, %v3425
      %v3503 = vpack.c.bf16 %v3428, %v3427
      %v3504 = vpack.c.bf16 %v3430, %v3429
      %v3505 = vpack.c.bf16 %v3432, %v3431
      %v3506 = vpack.c.bf16 %v3434, %v3433
      %v3507 = vpack.c.bf16 %v3436, %v3435
      %v3508 = vpack.c.bf16 %v3438, %v3437
      %v3509 = vpack.c.bf16 %v3440, %v3439
      %v3510 = vpack.c.bf16 %v3442, %v3441
      %v3511 = vpack.c.bf16 %v3444, %v3443
      %v3512 = vpack.c.bf16 %v3446, %v3445
      %v3513 = vpack.c.bf16 %v3448, %v3447
      %v3514 = vpack.c.bf16 %v3450, %v3449
      %v3515 = vpack.c.bf16 %v3452, %v3451
      %s3516 = scalar_lea.vmem %s3, 32
      %v3517 = vld [vmem:[%s3516] sm:$0xf]
      %v3518 = vld [vmem:[%s3516 + $0x4] sm:$0xf]
      %v3519 = vld [vmem:[%s3516 + $0x8] sm:$0xf]
      %v3520 = vld [vmem:[%s3516 + $0xc] sm:$0xf]
      %v3521 = vld [vmem:[%s2 + $0x3] sm:$0x1]
      %v3522 = vlaneseq
      %v3523 = vshrl.u32 %v3522, 7
      %v3524 = vsub.s32 0, %v3523
      %v3525 = vrot.slane %v3521, %v3524
      %v3530 = vunpack.c.l.b16 %v3517
      %v3531 = vunpack.c.l.b16 %v3518
      %v3532 = vunpack.c.l.b16 %v3519
      %v3533 = vunpack.c.l.b16 %v3520
      %v3534 = vpack.c.b16 %v3531, %v3530
      %v3535 = vpack.c.b16 %v3533, %v3532
      %v3539 = vsel %vm1663, %v3453, 0
      %v3542 = vsel %vm1663, %v3454, 0
      %v3545 = vsel %vm1663, %v3455, 0
      %v3548 = vsel %vm1663, %v3456, 0
      %v3551 = vsel %vm1663, %v3457, 0
      %v3554 = vsel %vm1663, %v3458, 0
      %v3557 = vsel %vm1663, %v3459, 0
      %v3560 = vsel %vm1663, %v3460, 0
      %v3563 = vsel %vm1663, %v3461, 0
      %v3566 = vsel %vm1663, %v3462, 0
      %v3569 = vsel %vm1663, %v3463, 0
      %v3572 = vsel %vm1663, %v3464, 0
      %v3575 = vsel %vm1663, %v3465, 0
      %v3578 = vsel %vm1663, %v3466, 0
      %v3581 = vsel %vm1663, %v3467, 0
      %v3584 = vsel %vm1663, %v3468, 0
      %v3587 = vsel %vm1663, %v3469, 0
      %v3590 = vsel %vm1663, %v3470, 0
      %v3593 = vsel %vm1663, %v3471, 0
      %v3596 = vsel %vm1663, %v3472, 0
      %v3599 = vsel %vm1663, %v3473, 0
      %v3602 = vsel %vm1663, %v3474, 0
      %v3605 = vsel %vm1663, %v3475, 0
      %v3608 = vsel %vm1663, %v3476, 0
      %v3611 = vsel %vm1663, %v3477, 0
      %v3614 = vsel %vm1663, %v3478, 0
      %v3617 = vsel %vm1663, %v3479, 0
      %v3620 = vsel %vm1663, %v3480, 0
      %v3623 = vsel %vm1663, %v3481, 0
      %v3626 = vsel %vm1663, %v3482, 0
      %v3629 = vsel %vm1663, %v3483, 0
      %v3632 = vsel %vm1663, %v3484, 0
      %v3635 = vsel %vm1663, %v3485, 0
      %v3638 = vsel %vm1663, %v3486, 0
      %v3641 = vsel %vm1663, %v3487, 0
      %v3644 = vsel %vm1663, %v3488, 0
      %v3647 = vsel %vm1663, %v3489, 0
      %v3650 = vsel %vm1663, %v3490, 0
      %v3653 = vsel %vm1663, %v3491, 0
      %v3656 = vsel %vm1663, %v3492, 0
      %v3659 = vsel %vm1663, %v3493, 0
      %v3662 = vsel %vm1663, %v3494, 0
      %v3665 = vsel %vm1663, %v3495, 0
      %v3668 = vsel %vm1663, %v3496, 0
      %v3671 = vsel %vm1663, %v3497, 0
      %v3674 = vsel %vm1663, %v3498, 0
      %v3677 = vsel %vm1663, %v3499, 0
      %v3680 = vsel %vm1663, %v3500, 0
      %v3683 = vsel %vm1663, %v3501, 0
      %v3686 = vsel %vm1663, %v3502, 0
      %v3689 = vsel %vm1663, %v3503, 0
      %v3692 = vsel %vm1663, %v3504, 0
      %v3695 = vsel %vm1663, %v3505, 0
      %v3698 = vsel %vm1663, %v3506, 0
      %v3701 = vsel %vm1663, %v3507, 0
      %v3704 = vsel %vm1663, %v3508, 0
      %v3707 = vsel %vm1663, %v3509, 0
      %v3710 = vsel %vm1663, %v3510, 0
      %v3713 = vsel %vm1663, %v3511, 0
      %v3716 = vsel %vm1663, %v3512, 0
      %v3719 = vsel %vm1663, %v3513, 0
      %v3722 = vsel %vm1663, %v3514, 0
      %v3725 = vsel %vm1663, %v3515, 0
      %3727 = vmatprep.subr.bf16.mxu0 0
      %3728 = vmatpush1.bf16.msra.mxu0 %v3534
      %3729 = vmatprep.subr.bf16.mxu0 0
      %3730 = vmatpush1.bf16.msra.mxu0 %v3535
      %3731 = vmatprep.subr.bf16.mxu0 0
      %3732 = vmatpush1.bf16.msra.mxu0 0
      %3733 = vmatprep.subr.bf16.mxu0 0
      %3734 = vmatpush1.bf16.msra.mxu0 0
      %3735 = vmatprep.subr.bf16.mxu0 0
      %3736 = vmatpush1.bf16.msra.mxu0 0
      %3737 = vmatprep.subr.bf16.mxu0 0
      %3738 = vmatpush1.bf16.msra.mxu0 0
      %3739 = vmatprep.subr.bf16.mxu0 0
      %3740 = vmatpush1.bf16.msra.mxu0 0
      %3741 = vmatprep.subr.bf16.mxu0 0
      %3742 = vmatpush1.bf16.msra.mxu0 0
      %3743 = vmatprep.subr.bf16.mxu0 0
      %3744 = vmatpush1.bf16.msra.mxu0 0
      %3745 = vmatprep.subr.bf16.mxu0 0
      %3746 = vmatpush1.bf16.msra.mxu0 0
      %3747 = vmatprep.subr.bf16.mxu0 0
      %3748 = vmatpush1.bf16.msra.mxu0 0
      %3749 = vmatprep.subr.bf16.mxu0 0
      %3750 = vmatpush1.bf16.msra.mxu0 0
      %3751 = vmatprep.subr.bf16.mxu0 0
      %3752 = vmatpush1.bf16.msra.mxu0 0
      %3753 = vmatprep.subr.bf16.mxu0 0
      %3754 = vmatpush1.bf16.msra.mxu0 0
      %3755 = vmatprep.subr.bf16.mxu0 0
      %3756 = vmatpush1.bf16.msra.mxu0 0
      %3757 = vmatprep.subr.bf16.mxu0 0
      %3758 = vmatpush1.bf16.msra.mxu0 0
      %3759 = vmatprep.mubr.bf16.mxu0 0
      %3760 = vmatmul.mubr.bf16.gmra.mrb[0].mxu0 %v3539
      %v3761 = vpop.f32.mrb[0].mxu0
      %v3762 = vadd.f32 %v3525, %v3761
      %v3763 = vpop.f32.mrb[0].mxu0
      %v3764 = vpop.f32.mrb[0].mxu0
      %v3765 = vadd.f32 %v3525, %v3764
      %v3766 = vpop.f32.mrb[0].mxu0
      %3767 = vmatprep.mubr.bf16.mxu0 0
      %3768 = vmatmul.mubr.bf16.gmra.mrb[0].mxu0 %v3542
      %v3769 = vpop.f32.mrb[0].mxu0
      %v3770 = vadd.f32 %v3525, %v3769
      %v3771 = vpop.f32.mrb[0].mxu0
      %v3772 = vpop.f32.mrb[0].mxu0
      %v3773 = vadd.f32 %v3525, %v3772
      %v3774 = vpop.f32.mrb[0].mxu0
      %3775 = vmatprep.mubr.bf16.mxu0 0
      %3776 = vmatmul.mubr.bf16.gmra.mrb[0].mxu0 %v3545
      %v3777 = vpop.f32.mrb[0].mxu0
      %v3778 = vadd.f32 %v3525, %v3777
      %v3779 = vpop.f32.mrb[0].mxu0
      %v3780 = vpop.f32.mrb[0].mxu0
      %v3781 = vadd.f32 %v3525, %v3780
      %v3782 = vpop.f32.mrb[0].mxu0
      %3783 = vmatprep.mubr.bf16.mxu0 0
      %3784 = vmatmul.mubr.bf16.gmra.mrb[0].mxu0 %v3548
      %v3785 = vpop.f32.mrb[0].mxu0
      %v3786 = vadd.f32 %v3525, %v3785
      %v3787 = vpop.f32.mrb[0].mxu0
      %v3788 = vpop.f32.mrb[0].mxu0
      %v3789 = vadd.f32 %v3525, %v3788
      %v3790 = vpop.f32.mrb[0].mxu0
      %3791 = vmatprep.mubr.bf16.mxu0 0
      %3792 = vmatmul.mubr.bf16.gmra.mrb[0].mxu0 %v3551
      %v3793 = vpop.f32.mrb[0].mxu0
      %v3794 = vadd.f32 %v3525, %v3793
      %v3795 = vpop.f32.mrb[0].mxu0
      %v3796 = vpop.f32.mrb[0].mxu0
      %v3797 = vadd.f32 %v3525, %v3796
      %v3798 = vpop.f32.mrb[0].mxu0
      %3799 = vmatprep.mubr.bf16.mxu0 0
      %3800 = vmatmul.mubr.bf16.gmra.mrb[0].mxu0 %v3554
      %v3801 = vpop.f32.mrb[0].mxu0
      %v3802 = vadd.f32 %v3525, %v3801
      %v3803 = vpop.f32.mrb[0].mxu0
      %v3804 = vpop.f32.mrb[0].mxu0
      %v3805 = vadd.f32 %v3525, %v3804
      %v3806 = vpop.f32.mrb[0].mxu0
      %3807 = vmatprep.mubr.bf16.mxu0 0
      %3808 = vmatmul.mubr.bf16.gmra.mrb[0].mxu0 %v3557
      %v3809 = vpop.f32.mrb[0].mxu0
      %v3810 = vadd.f32 %v3525, %v3809
      %v3811 = vpop.f32.mrb[0].mxu0
      %v3812 = vpop.f32.mrb[0].mxu0
      %v3813 = vadd.f32 %v3525, %v3812
      %v3814 = vpop.f32.mrb[0].mxu0
      %3815 = vmatprep.mubr.bf16.mxu0 0
      %3816 = vmatmul.mubr.bf16.gmra.mrb[0].mxu0 %v3560
      %v3817 = vpop.f32.mrb[0].mxu0
      %v3818 = vadd.f32 %v3525, %v3817
      %v3819 = vpop.f32.mrb[0].mxu0
      %v3820 = vpop.f32.mrb[0].mxu0
      %v3821 = vadd.f32 %v3525, %v3820
      %v3822 = vpop.f32.mrb[0].mxu0
      %3823 = vmatprep.mubr.bf16.mxu0 0
      %3824 = vmatmul.mubr.bf16.gmra.mrb[0].mxu0 %v3563
      %v3825 = vpop.f32.mrb[0].mxu0
      %v3826 = vadd.f32 %v3525, %v3825
      %v3827 = vpop.f32.mrb[0].mxu0
      %v3828 = vpop.f32.mrb[0].mxu0
      %v3829 = vadd.f32 %v3525, %v3828
      %v3830 = vpop.f32.mrb[0].mxu0
      %3831 = vmatprep.mubr.bf16.mxu0 0
      %3832 = vmatmul.mubr.bf16.gmra.mrb[0].mxu0 %v3566
      %v3833 = vpop.f32.mrb[0].mxu0
      %v3834 = vadd.f32 %v3525, %v3833
      %v3835 = vpop.f32.mrb[0].mxu0
      %v3836 = vpop.f32.mrb[0].mxu0
      %v3837 = vadd.f32 %v3525, %v3836
      %v3838 = vpop.f32.mrb[0].mxu0
      %3839 = vmatprep.mubr.bf16.mxu0 0
      %3840 = vmatmul.mubr.bf16.gmra.mrb[0].mxu0 %v3569
      %v3841 = vpop.f32.mrb[0].mxu0
      %v3842 = vadd.f32 %v3525, %v3841
      %v3843 = vpop.f32.mrb[0].mxu0
      %v3844 = vpop.f32.mrb[0].mxu0
      %v3845 = vadd.f32 %v3525, %v3844
      %v3846 = vpop.f32.mrb[0].mxu0
      %3847 = vmatprep.mubr.bf16.mxu0 0
      %3848 = vmatmul.mubr.bf16.gmra.mrb[0].mxu0 %v3572
      %v3849 = vpop.f32.mrb[0].mxu0
      %v3850 = vadd.f32 %v3525, %v3849
      %v3851 = vpop.f32.mrb[0].mxu0
      %v3852 = vpop.f32.mrb[0].mxu0
      %v3853 = vadd.f32 %v3525, %v3852
      %v3854 = vpop.f32.mrb[0].mxu0
      %3855 = vmatprep.mubr.bf16.mxu0 0
      %3856 = vmatmul.mubr.bf16.gmra.mrb[0].mxu0 %v3575
      %v3857 = vpop.f32.mrb[0].mxu0
      %v3858 = vadd.f32 %v3525, %v3857
      %v3859 = vpop.f32.mrb[0].mxu0
      %v3860 = vpop.f32.mrb[0].mxu0
      %v3861 = vadd.f32 %v3525, %v3860
      %v3862 = vpop.f32.mrb[0].mxu0
      %3863 = vmatprep.mubr.bf16.mxu0 0
      %3864 = vmatmul.mubr.bf16.gmra.mrb[0].mxu0 %v3578
      %v3865 = vpop.f32.mrb[0].mxu0
      %v3866 = vadd.f32 %v3525, %v3865
      %v3867 = vpop.f32.mrb[0].mxu0
      %v3868 = vpop.f32.mrb[0].mxu0
      %v3869 = vadd.f32 %v3525, %v3868
      %v3870 = vpop.f32.mrb[0].mxu0
      %3871 = vmatprep.mubr.bf16.mxu0 0
      %3872 = vmatmul.mubr.bf16.gmra.mrb[0].mxu0 %v3581
      %v3873 = vpop.f32.mrb[0].mxu0
      %v3874 = vadd.f32 %v3525, %v3873
      %v3875 = vpop.f32.mrb[0].mxu0
      %v3876 = vpop.f32.mrb[0].mxu0
      %v3877 = vadd.f32 %v3525, %v3876
      %v3878 = vpop.f32.mrb[0].mxu0
      %3879 = vmatprep.mubr.bf16.mxu0 0
      %3880 = vmatmul.mubr.bf16.gmra.mrb[0].mxu0 %v3584
      %v3881 = vpop.f32.mrb[0].mxu0
      %v3882 = vadd.f32 %v3525, %v3881
      %v3883 = vpop.f32.mrb[0].mxu0
      %v3884 = vpop.f32.mrb[0].mxu0
      %v3885 = vadd.f32 %v3525, %v3884
      %v3886 = vpop.f32.mrb[0].mxu0
      %3887 = vmatprep.mubr.bf16.mxu0 0
      %3888 = vmatmul.mubr.bf16.gmra.mrb[0].mxu0 %v3587
      %v3889 = vpop.f32.mrb[0].mxu0
      %v3890 = vadd.f32 %v3525, %v3889
      %v3891 = vpop.f32.mrb[0].mxu0
      %v3892 = vpop.f32.mrb[0].mxu0
      %v3893 = vadd.f32 %v3525, %v3892
      %v3894 = vpop.f32.mrb[0].mxu0
      %3895 = vmatprep.mubr.bf16.mxu0 0
      %3896 = vmatmul.mubr.bf16.gmra.mrb[0].mxu0 %v3590
      %v3897 = vpop.f32.mrb[0].mxu0
      %v3898 = vadd.f32 %v3525, %v3897
      %v3899 = vpop.f32.mrb[0].mxu0
      %v3900 = vpop.f32.mrb[0].mxu0
      %v3901 = vadd.f32 %v3525, %v3900
      %v3902 = vpop.f32.mrb[0].mxu0
      %3903 = vmatprep.mubr.bf16.mxu0 0
      %3904 = vmatmul.mubr.bf16.gmra.mrb[0].mxu0 %v3593
      %v3905 = vpop.f32.mrb[0].mxu0
      %v3906 = vadd.f32 %v3525, %v3905
      %v3907 = vpop.f32.mrb[0].mxu0
      %v3908 = vpop.f32.mrb[0].mxu0
      %v3909 = vadd.f32 %v3525, %v3908
      %v3910 = vpop.f32.mrb[0].mxu0
      %3911 = vmatprep.mubr.bf16.mxu0 0
      %3912 = vmatmul.mubr.bf16.gmra.mrb[0].mxu0 %v3596
      %v3913 = vpop.f32.mrb[0].mxu0
      %v3914 = vadd.f32 %v3525, %v3913
      %v3915 = vpop.f32.mrb[0].mxu0
      %v3916 = vpop.f32.mrb[0].mxu0
      %v3917 = vadd.f32 %v3525, %v3916
      %v3918 = vpop.f32.mrb[0].mxu0
      %3919 = vmatprep.mubr.bf16.mxu0 0
      %3920 = vmatmul.mubr.bf16.gmra.mrb[0].mxu0 %v3599
      %v3921 = vpop.f32.mrb[0].mxu0
      %v3922 = vadd.f32 %v3525, %v3921
      %v3923 = vpop.f32.mrb[0].mxu0
      %v3924 = vpop.f32.mrb[0].mxu0
      %v3925 = vadd.f32 %v3525, %v3924
      %v3926 = vpop.f32.mrb[0].mxu0
      %3927 = vmatprep.mubr.bf16.mxu0 0
      %3928 = vmatmul.mubr.bf16.gmra.mrb[0].mxu0 %v3602
      %v3929 = vpop.f32.mrb[0].mxu0
      %v3930 = vadd.f32 %v3525, %v3929
      %v3931 = vpop.f32.mrb[0].mxu0
      %v3932 = vpop.f32.mrb[0].mxu0
      %v3933 = vadd.f32 %v3525, %v3932
      %v3934 = vpop.f32.mrb[0].mxu0
      %3935 = vmatprep.mubr.bf16.mxu0 0
      %3936 = vmatmul.mubr.bf16.gmra.mrb[0].mxu0 %v3605
      %v3937 = vpop.f32.mrb[0].mxu0
      %v3938 = vadd.f32 %v3525, %v3937
      %v3939 = vpop.f32.mrb[0].mxu0
      %v3940 = vpop.f32.mrb[0].mxu0
      %v3941 = vadd.f32 %v3525, %v3940
      %v3942 = vpop.f32.mrb[0].mxu0
      %3943 = vmatprep.mubr.bf16.mxu0 0
      %3944 = vmatmul.mubr.bf16.gmra.mrb[0].mxu0 %v3608
      %v3945 = vpop.f32.mrb[0].mxu0
      %v3946 = vadd.f32 %v3525, %v3945
      %v3947 = vpop.f32.mrb[0].mxu0
      %v3948 = vpop.f32.mrb[0].mxu0
      %v3949 = vadd.f32 %v3525, %v3948
      %v3950 = vpop.f32.mrb[0].mxu0
      %3951 = vmatprep.mubr.bf16.mxu0 0
      %3952 = vmatmul.mubr.bf16.gmra.mrb[0].mxu0 %v3611
      %v3953 = vpop.f32.mrb[0].mxu0
      %v3954 = vadd.f32 %v3525, %v3953
      %v3955 = vpop.f32.mrb[0].mxu0
      %v3956 = vpop.f32.mrb[0].mxu0
      %v3957 = vadd.f32 %v3525, %v3956
      %v3958 = vpop.f32.mrb[0].mxu0
      %3959 = vmatprep.mubr.bf16.mxu0 0
      %3960 = vmatmul.mubr.bf16.gmra.mrb[0].mxu0 %v3614
      %v3961 = vpop.f32.mrb[0].mxu0
      %v3962 = vadd.f32 %v3525, %v3961
      %v3963 = vpop.f32.mrb[0].mxu0
      %v3964 = vpop.f32.mrb[0].mxu0
      %v3965 = vadd.f32 %v3525, %v3964
      %v3966 = vpop.f32.mrb[0].mxu0
      %3967 = vmatprep.mubr.bf16.mxu0 0
      %3968 = vmatmul.mubr.bf16.gmra.mrb[0].mxu0 %v3617
      %v3969 = vpop.f32.mrb[0].mxu0
      %v3970 = vadd.f32 %v3525, %v3969
      %v3971 = vpop.f32.mrb[0].mxu0
      %v3972 = vpop.f32.mrb[0].mxu0
      %v3973 = vadd.f32 %v3525, %v3972
      %v3974 = vpop.f32.mrb[0].mxu0
      %3975 = vmatprep.mubr.bf16.mxu0 0
      %3976 = vmatmul.mubr.bf16.gmra.mrb[0].mxu0 %v3620
      %v3977 = vpop.f32.mrb[0].mxu0
      %v3978 = vadd.f32 %v3525, %v3977
      %v3979 = vpop.f32.mrb[0].mxu0
      %v3980 = vpop.f32.mrb[0].mxu0
      %v3981 = vadd.f32 %v3525, %v3980
      %v3982 = vpop.f32.mrb[0].mxu0
      %3983 = vmatprep.mubr.bf16.mxu0 0
      %3984 = vmatmul.mubr.bf16.gmra.mrb[0].mxu0 %v3623
      %v3985 = vpop.f32.mrb[0].mxu0
      %v3986 = vadd.f32 %v3525, %v3985
      %v3987 = vpop.f32.mrb[0].mxu0
      %v3988 = vpop.f32.mrb[0].mxu0
      %v3989 = vadd.f32 %v3525, %v3988
      %v3990 = vpop.f32.mrb[0].mxu0
      %3991 = vmatprep.mubr.bf16.mxu0 0
      %3992 = vmatmul.mubr.bf16.gmra.mrb[0].mxu0 %v3626
      %v3993 = vpop.f32.mrb[0].mxu0
      %v3994 = vadd.f32 %v3525, %v3993
      %v3995 = vpop.f32.mrb[0].mxu0
      %v3996 = vpop.f32.mrb[0].mxu0
      %v3997 = vadd.f32 %v3525, %v3996
      %v3998 = vpop.f32.mrb[0].mxu0
      %3999 = vmatprep.mubr.bf16.mxu0 0
      %4000 = vmatmul.mubr.bf16.gmra.mrb[0].mxu0 %v3629
      %v4001 = vpop.f32.mrb[0].mxu0
      %v4002 = vadd.f32 %v3525, %v4001
      %v4003 = vpop.f32.mrb[0].mxu0
      %v4004 = vpop.f32.mrb[0].mxu0
      %v4005 = vadd.f32 %v3525, %v4004
      %v4006 = vpop.f32.mrb[0].mxu0
      %4007 = vmatprep.mubr.bf16.mxu0 0
      %4008 = vmatmul.mubr.bf16.gmra.mrb[0].mxu0 %v3632
      %v4009 = vpop.f32.mrb[0].mxu0
      %v4010 = vadd.f32 %v3525, %v4009
      %v4011 = vpop.f32.mrb[0].mxu0
      %v4012 = vpop.f32.mrb[0].mxu0
      %v4013 = vadd.f32 %v3525, %v4012
      %v4014 = vpop.f32.mrb[0].mxu0
      %4015 = vmatprep.mubr.bf16.mxu0 0
      %4016 = vmatmul.mubr.bf16.gmra.mrb[0].mxu0 %v3635
      %v4017 = vpop.f32.mrb[0].mxu0
      %v4018 = vadd.f32 %v3525, %v4017
      %v4019 = vpop.f32.mrb[0].mxu0
      %v4020 = vpop.f32.mrb[0].mxu0
      %v4021 = vadd.f32 %v3525, %v4020
      %v4022 = vpop.f32.mrb[0].mxu0
      %4023 = vmatprep.mubr.bf16.mxu0 0
      %4024 = vmatmul.mubr.bf16.gmra.mrb[0].mxu0 %v3638
      %v4025 = vpop.f32.mrb[0].mxu0
      %v4026 = vadd.f32 %v3525, %v4025
      %v4027 = vpop.f32.mrb[0].mxu0
      %v4028 = vpop.f32.mrb[0].mxu0
      %v4029 = vadd.f32 %v3525, %v4028
      %v4030 = vpop.f32.mrb[0].mxu0
      %4031 = vmatprep.mubr.bf16.mxu0 0
      %4032 = vmatmul.mubr.bf16.gmra.mrb[0].mxu0 %v3641
      %v4033 = vpop.f32.mrb[0].mxu0
      %v4034 = vadd.f32 %v3525, %v4033
      %v4035 = vpop.f32.mrb[0].mxu0
      %v4036 = vpop.f32.mrb[0].mxu0
      %v4037 = vadd.f32 %v3525, %v4036
      %v4038 = vpop.f32.mrb[0].mxu0
      %4039 = vmatprep.mubr.bf16.mxu0 0
      %4040 = vmatmul.mubr.bf16.gmra.mrb[0].mxu0 %v3644
      %v4041 = vpop.f32.mrb[0].mxu0
      %v4042 = vadd.f32 %v3525, %v4041
      %v4043 = vpop.f32.mrb[0].mxu0
      %v4044 = vpop.f32.mrb[0].mxu0
      %v4045 = vadd.f32 %v3525, %v4044
      %v4046 = vpop.f32.mrb[0].mxu0
      %4047 = vmatprep.mubr.bf16.mxu0 0
      %4048 = vmatmul.mubr.bf16.gmra.mrb[0].mxu0 %v3647
      %v4049 = vpop.f32.mrb[0].mxu0
      %v4050 = vadd.f32 %v3525, %v4049
      %v4051 = vpop.f32.mrb[0].mxu0
      %v4052 = vpop.f32.mrb[0].mxu0
      %v4053 = vadd.f32 %v3525, %v4052
      %v4054 = vpop.f32.mrb[0].mxu0
      %4055 = vmatprep.mubr.bf16.mxu0 0
      %4056 = vmatmul.mubr.bf16.gmra.mrb[0].mxu0 %v3650
      %v4057 = vpop.f32.mrb[0].mxu0
      %v4058 = vadd.f32 %v3525, %v4057
      %v4059 = vpop.f32.mrb[0].mxu0
      %v4060 = vpop.f32.mrb[0].mxu0
      %v4061 = vadd.f32 %v3525, %v4060
      %v4062 = vpop.f32.mrb[0].mxu0
      %4063 = vmatprep.mubr.bf16.mxu0 0
      %4064 = vmatmul.mubr.bf16.gmra.mrb[0].mxu0 %v3653
      %v4065 = vpop.f32.mrb[0].mxu0
      %v4066 = vadd.f32 %v3525, %v4065
      %v4067 = vpop.f32.mrb[0].mxu0
      %v4068 = vpop.f32.mrb[0].mxu0
      %v4069 = vadd.f32 %v3525, %v4068
      %v4070 = vpop.f32.mrb[0].mxu0
      %4071 = vmatprep.mubr.bf16.mxu0 0
      %4072 = vmatmul.mubr.bf16.gmra.mrb[0].mxu0 %v3656
      %v4073 = vpop.f32.mrb[0].mxu0
      %v4074 = vadd.f32 %v3525, %v4073
      %v4075 = vpop.f32.mrb[0].mxu0
      %v4076 = vpop.f32.mrb[0].mxu0
      %v4077 = vadd.f32 %v3525, %v4076
      %v4078 = vpop.f32.mrb[0].mxu0
      %4079 = vmatprep.mubr.bf16.mxu0 0
      %4080 = vmatmul.mubr.bf16.gmra.mrb[0].mxu0 %v3659
      %v4081 = vpop.f32.mrb[0].mxu0
      %v4082 = vadd.f32 %v3525, %v4081
      %v4083 = vpop.f32.mrb[0].mxu0
      %v4084 = vpop.f32.mrb[0].mxu0
      %v4085 = vadd.f32 %v3525, %v4084
      %v4086 = vpop.f32.mrb[0].mxu0
      %4087 = vmatprep.mubr.bf16.mxu0 0
      %4088 = vmatmul.mubr.bf16.gmra.mrb[0].mxu0 %v3662
      %v4089 = vpop.f32.mrb[0].mxu0
      %v4090 = vadd.f32 %v3525, %v4089
      %v4091 = vpop.f32.mrb[0].mxu0
      %v4092 = vpop.f32.mrb[0].mxu0
      %v4093 = vadd.f32 %v3525, %v4092
      %v4094 = vpop.f32.mrb[0].mxu0
      %4095 = vmatprep.mubr.bf16.mxu0 0
      %4096 = vmatmul.mubr.bf16.gmra.mrb[0].mxu0 %v3665
      %v4097 = vpop.f32.mrb[0].mxu0
      %v4098 = vadd.f32 %v3525, %v4097
      %v4099 = vpop.f32.mrb[0].mxu0
      %v4100 = vpop.f32.mrb[0].mxu0
      %v4101 = vadd.f32 %v3525, %v4100
      %v4102 = vpop.f32.mrb[0].mxu0
      %4103 = vmatprep.mubr.bf16.mxu0 0
      %4104 = vmatmul.mubr.bf16.gmra.mrb[0].mxu0 %v3668
      %v4105 = vpop.f32.mrb[0].mxu0
      %v4106 = vadd.f32 %v3525, %v4105
      %v4107 = vpop.f32.mrb[0].mxu0
      %v4108 = vpop.f32.mrb[0].mxu0
      %v4109 = vadd.f32 %v3525, %v4108
      %v4110 = vpop.f32.mrb[0].mxu0
      %4111 = vmatprep.mubr.bf16.mxu0 0
      %4112 = vmatmul.mubr.bf16.gmra.mrb[0].mxu0 %v3671
      %v4113 = vpop.f32.mrb[0].mxu0
      %v4114 = vadd.f32 %v3525, %v4113
      %v4115 = vpop.f32.mrb[0].mxu0
      %v4116 = vpop.f32.mrb[0].mxu0
      %v4117 = vadd.f32 %v3525, %v4116
      %v4118 = vpop.f32.mrb[0].mxu0
      %4119 = vmatprep.mubr.bf16.mxu0 0
      %4120 = vmatmul.mubr.bf16.gmra.mrb[0].mxu0 %v3674
      %v4121 = vpop.f32.mrb[0].mxu0
      %v4122 = vadd.f32 %v3525, %v4121
      %v4123 = vpop.f32.mrb[0].mxu0
      %v4124 = vpop.f32.mrb[0].mxu0
      %v4125 = vadd.f32 %v3525, %v4124
      %v4126 = vpop.f32.mrb[0].mxu0
      %4127 = vmatprep.mubr.bf16.mxu0 0
      %4128 = vmatmul.mubr.bf16.gmra.mrb[0].mxu0 %v3677
      %v4129 = vpop.f32.mrb[0].mxu0
      %v4130 = vadd.f32 %v3525, %v4129
      %v4131 = vpop.f32.mrb[0].mxu0
      %v4132 = vpop.f32.mrb[0].mxu0
      %v4133 = vadd.f32 %v3525, %v4132
      %v4134 = vpop.f32.mrb[0].mxu0
      %4135 = vmatprep.mubr.bf16.mxu0 0
      %4136 = vmatmul.mubr.bf16.gmra.mrb[0].mxu0 %v3680
      %v4137 = vpop.f32.mrb[0].mxu0
      %v4138 = vadd.f32 %v3525, %v4137
      %v4139 = vpop.f32.mrb[0].mxu0
      %v4140 = vpop.f32.mrb[0].mxu0
      %v4141 = vadd.f32 %v3525, %v4140
      %v4142 = vpop.f32.mrb[0].mxu0
      %4143 = vmatprep.mubr.bf16.mxu0 0
      %4144 = vmatmul.mubr.bf16.gmra.mrb[0].mxu0 %v3683
      %v4145 = vpop.f32.mrb[0].mxu0
      %v4146 = vadd.f32 %v3525, %v4145
      %v4147 = vpop.f32.mrb[0].mxu0
      %v4148 = vpop.f32.mrb[0].mxu0
      %v4149 = vadd.f32 %v3525, %v4148
      %v4150 = vpop.f32.mrb[0].mxu0
      %4151 = vmatprep.mubr.bf16.mxu0 0
      %4152 = vmatmul.mubr.bf16.gmra.mrb[0].mxu0 %v3686
      %v4153 = vpop.f32.mrb[0].mxu0
      %v4154 = vadd.f32 %v3525, %v4153
      %v4155 = vpop.f32.mrb[0].mxu0
      %v4156 = vpop.f32.mrb[0].mxu0
      %v4157 = vadd.f32 %v3525, %v4156
      %v4158 = vpop.f32.mrb[0].mxu0
      %4159 = vmatprep.mubr.bf16.mxu0 0
      %4160 = vmatmul.mubr.bf16.gmra.mrb[0].mxu0 %v3689
      %v4161 = vpop.f32.mrb[0].mxu0
      %v4162 = vadd.f32 %v3525, %v4161
      %v4163 = vpop.f32.mrb[0].mxu0
      %v4164 = vpop.f32.mrb[0].mxu0
      %v4165 = vadd.f32 %v3525, %v4164
      %v4166 = vpop.f32.mrb[0].mxu0
      %4167 = vmatprep.mubr.bf16.mxu0 0
      %4168 = vmatmul.mubr.bf16.gmra.mrb[0].mxu0 %v3692
      %v4169 = vpop.f32.mrb[0].mxu0
      %v4170 = vadd.f32 %v3525, %v4169
      %v4171 = vpop.f32.mrb[0].mxu0
      %v4172 = vpop.f32.mrb[0].mxu0
      %v4173 = vadd.f32 %v3525, %v4172
      %v4174 = vpop.f32.mrb[0].mxu0
      %4175 = vmatprep.mubr.bf16.mxu0 0
      %4176 = vmatmul.mubr.bf16.gmra.mrb[0].mxu0 %v3695
      %v4177 = vpop.f32.mrb[0].mxu0
      %v4178 = vadd.f32 %v3525, %v4177
      %v4179 = vpop.f32.mrb[0].mxu0
      %v4180 = vpop.f32.mrb[0].mxu0
      %v4181 = vadd.f32 %v3525, %v4180
      %v4182 = vpop.f32.mrb[0].mxu0
      %4183 = vmatprep.mubr.bf16.mxu0 0
      %4184 = vmatmul.mubr.bf16.gmra.mrb[0].mxu0 %v3698
      %v4185 = vpop.f32.mrb[0].mxu0
      %v4186 = vadd.f32 %v3525, %v4185
      %v4187 = vpop.f32.mrb[0].mxu0
      %v4188 = vpop.f32.mrb[0].mxu0
      %v4189 = vadd.f32 %v3525, %v4188
      %v4190 = vpop.f32.mrb[0].mxu0
      %4191 = vmatprep.mubr.bf16.mxu0 0
      %4192 = vmatmul.mubr.bf16.gmra.mrb[0].mxu0 %v3701
      %v4193 = vpop.f32.mrb[0].mxu0
      %v4194 = vadd.f32 %v3525, %v4193
      %v4195 = vpop.f32.mrb[0].mxu0
      %v4196 = vpop.f32.mrb[0].mxu0
      %v4197 = vadd.f32 %v3525, %v4196
      %v4198 = vpop.f32.mrb[0].mxu0
      %4199 = vmatprep.mubr.bf16.mxu0 0
      %4200 = vmatmul.mubr.bf16.gmra.mrb[0].mxu0 %v3704
      %v4201 = vpop.f32.mrb[0].mxu0
      %v4202 = vadd.f32 %v3525, %v4201
      %v4203 = vpop.f32.mrb[0].mxu0
      %v4204 = vpop.f32.mrb[0].mxu0
      %v4205 = vadd.f32 %v3525, %v4204
      %v4206 = vpop.f32.mrb[0].mxu0
      %4207 = vmatprep.mubr.bf16.mxu0 0
      %4208 = vmatmul.mubr.bf16.gmra.mrb[0].mxu0 %v3707
      %v4209 = vpop.f32.mrb[0].mxu0
      %v4210 = vadd.f32 %v3525, %v4209
      %v4211 = vpop.f32.mrb[0].mxu0
      %v4212 = vpop.f32.mrb[0].mxu0
      %v4213 = vadd.f32 %v3525, %v4212
      %v4214 = vpop.f32.mrb[0].mxu0
      %4215 = vmatprep.mubr.bf16.mxu0 0
      %4216 = vmatmul.mubr.bf16.gmra.mrb[0].mxu0 %v3710
      %v4217 = vpop.f32.mrb[0].mxu0
      %v4218 = vadd.f32 %v3525, %v4217
      %v4219 = vpop.f32.mrb[0].mxu0
      %v4220 = vpop.f32.mrb[0].mxu0
      %v4221 = vadd.f32 %v3525, %v4220
      %v4222 = vpop.f32.mrb[0].mxu0
      %4223 = vmatprep.mubr.bf16.mxu0 0
      %4224 = vmatmul.mubr.bf16.gmra.mrb[0].mxu0 %v3713
      %v4225 = vpop.f32.mrb[0].mxu0
      %v4226 = vadd.f32 %v3525, %v4225
      %v4227 = vpop.f32.mrb[0].mxu0
      %v4228 = vpop.f32.mrb[0].mxu0
      %v4229 = vadd.f32 %v3525, %v4228
      %v4230 = vpop.f32.mrb[0].mxu0
      %4231 = vmatprep.mubr.bf16.mxu0 0
      %4232 = vmatmul.mubr.bf16.gmra.mrb[0].mxu0 %v3716
      %v4233 = vpop.f32.mrb[0].mxu0
      %v4234 = vadd.f32 %v3525, %v4233
      %v4235 = vpop.f32.mrb[0].mxu0
      %v4236 = vpop.f32.mrb[0].mxu0
      %v4237 = vadd.f32 %v3525, %v4236
      %v4238 = vpop.f32.mrb[0].mxu0
      %4239 = vmatprep.mubr.bf16.mxu0 0
      %4240 = vmatmul.mubr.bf16.gmra.mrb[0].mxu0 %v3719
      %v4241 = vpop.f32.mrb[0].mxu0
      %v4242 = vadd.f32 %v3525, %v4241
      %v4243 = vpop.f32.mrb[0].mxu0
      %v4244 = vpop.f32.mrb[0].mxu0
      %v4245 = vadd.f32 %v3525, %v4244
      %v4246 = vpop.f32.mrb[0].mxu0
      %4247 = vmatprep.mubr.bf16.mxu0 0
      %4248 = vmatmul.mubr.bf16.gmra.mrb[0].mxu0 %v3722
      %v4249 = vpop.f32.mrb[0].mxu0
      %v4250 = vadd.f32 %v3525, %v4249
      %v4251 = vpop.f32.mrb[0].mxu0
      %v4252 = vpop.f32.mrb[0].mxu0
      %v4253 = vadd.f32 %v3525, %v4252
      %v4254 = vpop.f32.mrb[0].mxu0
      %4255 = vmatprep.mubr.bf16.mxu0 0
      %4256 = vmatmul.mubr.bf16.gmra.mrb[0].mxu0 %v3725
      %v4257 = vpop.f32.mrb[0].mxu0
      %v4258 = vadd.f32 %v3525, %v4257
      %v4259 = vpop.f32.mrb[0].mxu0
      %v4260 = vpop.f32.mrb[0].mxu0
      %v4261 = vadd.f32 %v3525, %v4260
      %v4262 = vpop.f32.mrb[0].mxu0
      %4263 = vdwg.mxu0
      %v4264 = vmax.f32 %v3762, 0.0
      %v4265 = vmax.f32 %v3765, 0.0
      %v4266 = vmax.f32 %v3770, 0.0
      %v4267 = vmax.f32 %v3773, 0.0
      %v4268 = vmax.f32 %v3778, 0.0
      %v4269 = vmax.f32 %v3781, 0.0
      %v4270 = vmax.f32 %v3786, 0.0
      %v4271 = vmax.f32 %v3789, 0.0
      %v4272 = vmax.f32 %v3794, 0.0
      %v4273 = vmax.f32 %v3797, 0.0
      %v4274 = vmax.f32 %v3802, 0.0
      %v4275 = vmax.f32 %v3805, 0.0
      %v4276 = vmax.f32 %v3810, 0.0
      %v4277 = vmax.f32 %v3813, 0.0
      %v4278 = vmax.f32 %v3818, 0.0
      %v4279 = vmax.f32 %v3821, 0.0
      %v4280 = vmax.f32 %v3826, 0.0
      %v4281 = vmax.f32 %v3829, 0.0
      %v4282 = vmax.f32 %v3834, 0.0
      %v4283 = vmax.f32 %v3837, 0.0
      %v4284 = vmax.f32 %v3842, 0.0
      %v4285 = vmax.f32 %v3845, 0.0
      %v4286 = vmax.f32 %v3850, 0.0
      %v4287 = vmax.f32 %v3853, 0.0
      %v4288 = vmax.f32 %v3858, 0.0
      %v4289 = vmax.f32 %v3861, 0.0
      %v4290 = vmax.f32 %v3866, 0.0
      %v4291 = vmax.f32 %v3869, 0.0
      %v4292 = vmax.f32 %v3874, 0.0
      %v4293 = vmax.f32 %v3877, 0.0
      %v4294 = vmax.f32 %v3882, 0.0
      %v4295 = vmax.f32 %v3885, 0.0
      %v4296 = vmax.f32 %v3890, 0.0
      %v4297 = vmax.f32 %v3893, 0.0
      %v4298 = vmax.f32 %v3898, 0.0
      %v4299 = vmax.f32 %v3901, 0.0
      %v4300 = vmax.f32 %v3906, 0.0
      %v4301 = vmax.f32 %v3909, 0.0
      %v4302 = vmax.f32 %v3914, 0.0
      %v4303 = vmax.f32 %v3917, 0.0
      %v4304 = vmax.f32 %v3922, 0.0
      %v4305 = vmax.f32 %v3925, 0.0
      %v4306 = vmax.f32 %v3930, 0.0
      %v4307 = vmax.f32 %v3933, 0.0
      %v4308 = vmax.f32 %v3938, 0.0
      %v4309 = vmax.f32 %v3941, 0.0
      %v4310 = vmax.f32 %v3946, 0.0
      %v4311 = vmax.f32 %v3949, 0.0
      %v4312 = vmax.f32 %v3954, 0.0
      %v4313 = vmax.f32 %v3957, 0.0
      %v4314 = vmax.f32 %v3962, 0.0
      %v4315 = vmax.f32 %v3965, 0.0
      %v4316 = vmax.f32 %v3970, 0.0
      %v4317 = vmax.f32 %v3973, 0.0
      %v4318 = vmax.f32 %v3978, 0.0
      %v4319 = vmax.f32 %v3981, 0.0
      %v4320 = vmax.f32 %v3986, 0.0
      %v4321 = vmax.f32 %v3989, 0.0
      %v4322 = vmax.f32 %v3994, 0.0
      %v4323 = vmax.f32 %v3997, 0.0
      %v4324 = vmax.f32 %v4002, 0.0
      %v4325 = vmax.f32 %v4005, 0.0
      %v4326 = vmax.f32 %v4010, 0.0
      %v4327 = vmax.f32 %v4013, 0.0
      %v4328 = vmax.f32 %v4018, 0.0
      %v4329 = vmax.f32 %v4021, 0.0
      %v4330 = vmax.f32 %v4026, 0.0
      %v4331 = vmax.f32 %v4029, 0.0
      %v4332 = vmax.f32 %v4034, 0.0
      %v4333 = vmax.f32 %v4037, 0.0
      %v4334 = vmax.f32 %v4042, 0.0
      %v4335 = vmax.f32 %v4045, 0.0
      %v4336 = vmax.f32 %v4050, 0.0
      %v4337 = vmax.f32 %v4053, 0.0
      %v4338 = vmax.f32 %v4058, 0.0
      %v4339 = vmax.f32 %v4061, 0.0
      %v4340 = vmax.f32 %v4066, 0.0
      %v4341 = vmax.f32 %v4069, 0.0
      %v4342 = vmax.f32 %v4074, 0.0
      %v4343 = vmax.f32 %v4077, 0.0
      %v4344 = vmax.f32 %v4082, 0.0
      %v4345 = vmax.f32 %v4085, 0.0
      %v4346 = vmax.f32 %v4090, 0.0
      %v4347 = vmax.f32 %v4093, 0.0
      %v4348 = vmax.f32 %v4098, 0.0
      %v4349 = vmax.f32 %v4101, 0.0
      %v4350 = vmax.f32 %v4106, 0.0
      %v4351 = vmax.f32 %v4109, 0.0
      %v4352 = vmax.f32 %v4114, 0.0
      %v4353 = vmax.f32 %v4117, 0.0
      %v4354 = vmax.f32 %v4122, 0.0
      %v4355 = vmax.f32 %v4125, 0.0
      %v4356 = vmax.f32 %v4130, 0.0
      %v4357 = vmax.f32 %v4133, 0.0
      %v4358 = vmax.f32 %v4138, 0.0
      %v4359 = vmax.f32 %v4141, 0.0
      %v4360 = vmax.f32 %v4146, 0.0
      %v4361 = vmax.f32 %v4149, 0.0
      %v4362 = vmax.f32 %v4154, 0.0
      %v4363 = vmax.f32 %v4157, 0.0
      %v4364 = vmax.f32 %v4162, 0.0
      %v4365 = vmax.f32 %v4165, 0.0
      %v4366 = vmax.f32 %v4170, 0.0
      %v4367 = vmax.f32 %v4173, 0.0
      %v4368 = vmax.f32 %v4178, 0.0
      %v4369 = vmax.f32 %v4181, 0.0
      %v4370 = vmax.f32 %v4186, 0.0
      %v4371 = vmax.f32 %v4189, 0.0
      %v4372 = vmax.f32 %v4194, 0.0
      %v4373 = vmax.f32 %v4197, 0.0
      %v4374 = vmax.f32 %v4202, 0.0
      %v4375 = vmax.f32 %v4205, 0.0
      %v4376 = vmax.f32 %v4210, 0.0
      %v4377 = vmax.f32 %v4213, 0.0
      %v4378 = vmax.f32 %v4218, 0.0
      %v4379 = vmax.f32 %v4221, 0.0
      %v4380 = vmax.f32 %v4226, 0.0
      %v4381 = vmax.f32 %v4229, 0.0
      %v4382 = vmax.f32 %v4234, 0.0
      %v4383 = vmax.f32 %v4237, 0.0
      %v4384 = vmax.f32 %v4242, 0.0
      %v4385 = vmax.f32 %v4245, 0.0
      %v4386 = vmax.f32 %v4250, 0.0
      %v4387 = vmax.f32 %v4253, 0.0
      %v4388 = vmax.f32 %v4258, 0.0
      %v4389 = vmax.f32 %v4261, 0.0
      %v4390 = vpack.c.bf16 %v4265, %v4264
      %v4391 = vpack.c.bf16 %v4267, %v4266
      %v4392 = vpack.c.bf16 %v4269, %v4268
      %v4393 = vpack.c.bf16 %v4271, %v4270
      %v4394 = vpack.c.bf16 %v4273, %v4272
      %v4395 = vpack.c.bf16 %v4275, %v4274
      %v4396 = vpack.c.bf16 %v4277, %v4276
      %v4397 = vpack.c.bf16 %v4279, %v4278
      %v4398 = vpack.c.bf16 %v4281, %v4280
      %v4399 = vpack.c.bf16 %v4283, %v4282
      %v4400 = vpack.c.bf16 %v4285, %v4284
      %v4401 = vpack.c.bf16 %v4287, %v4286
      %v4402 = vpack.c.bf16 %v4289, %v4288
      %v4403 = vpack.c.bf16 %v4291, %v4290
      %v4404 = vpack.c.bf16 %v4293, %v4292
      %v4405 = vpack.c.bf16 %v4295, %v4294
      %v4406 = vpack.c.bf16 %v4297, %v4296
      %v4407 = vpack.c.bf16 %v4299, %v4298
      %v4408 = vpack.c.bf16 %v4301, %v4300
      %v4409 = vpack.c.bf16 %v4303, %v4302
      %v4410 = vpack.c.bf16 %v4305, %v4304
      %v4411 = vpack.c.bf16 %v4307, %v4306
      %v4412 = vpack.c.bf16 %v4309, %v4308
      %v4413 = vpack.c.bf16 %v4311, %v4310
      %v4414 = vpack.c.bf16 %v4313, %v4312
      %v4415 = vpack.c.bf16 %v4315, %v4314
      %v4416 = vpack.c.bf16 %v4317, %v4316
      %v4417 = vpack.c.bf16 %v4319, %v4318
      %v4418 = vpack.c.bf16 %v4321, %v4320
      %v4419 = vpack.c.bf16 %v4323, %v4322
      %v4420 = vpack.c.bf16 %v4325, %v4324
      %v4421 = vpack.c.bf16 %v4327, %v4326
      %v4422 = vpack.c.bf16 %v4329, %v4328
      %v4423 = vpack.c.bf16 %v4331, %v4330
      %v4424 = vpack.c.bf16 %v4333, %v4332
      %v4425 = vpack.c.bf16 %v4335, %v4334
      %v4426 = vpack.c.bf16 %v4337, %v4336
      %v4427 = vpack.c.bf16 %v4339, %v4338
      %v4428 = vpack.c.bf16 %v4341, %v4340
      %v4429 = vpack.c.bf16 %v4343, %v4342
      %v4430 = vpack.c.bf16 %v4345, %v4344
      %v4431 = vpack.c.bf16 %v4347, %v4346
      %v4432 = vpack.c.bf16 %v4349, %v4348
      %v4433 = vpack.c.bf16 %v4351, %v4350
      %v4434 = vpack.c.bf16 %v4353, %v4352
      %v4435 = vpack.c.bf16 %v4355, %v4354
      %v4436 = vpack.c.bf16 %v4357, %v4356
      %v4437 = vpack.c.bf16 %v4359, %v4358
      %v4438 = vpack.c.bf16 %v4361, %v4360
      %v4439 = vpack.c.bf16 %v4363, %v4362
      %v4440 = vpack.c.bf16 %v4365, %v4364
      %v4441 = vpack.c.bf16 %v4367, %v4366
      %v4442 = vpack.c.bf16 %v4369, %v4368
      %v4443 = vpack.c.bf16 %v4371, %v4370
      %v4444 = vpack.c.bf16 %v4373, %v4372
      %v4445 = vpack.c.bf16 %v4375, %v4374
      %v4446 = vpack.c.bf16 %v4377, %v4376
      %v4447 = vpack.c.bf16 %v4379, %v4378
      %v4448 = vpack.c.bf16 %v4381, %v4380
      %v4449 = vpack.c.bf16 %v4383, %v4382
      %v4450 = vpack.c.bf16 %v4385, %v4384
      %v4451 = vpack.c.bf16 %v4387, %v4386
      %v4452 = vpack.c.bf16 %v4389, %v4388
      %v4453 = vld [vmem:[%s4] sm:$0xf]
      %v4454 = vld [vmem:[%s4 + $0x4] sm:$0xf]
      %v4455 = vld [vmem:[%s4 + $0x8] sm:$0xf]
      %v4456 = vld [vmem:[%s4 + $0xc] sm:$0xf]
      %v4457 = vld [vmem:[%s5] sm:$0x1]
      %v4459 = vlaneseq
      %v4460 = vshrl.u32 %v4459, 7
      %v4461 = vsub.s32 0, %v4460
      %v4462 = vrot.slane %v4457, %v4461
      %v4468 = vunpack.c.l.b16 %v4453
      %v4469 = vunpack.c.l.b16 %v4454
      %v4470 = vunpack.c.l.b16 %v4455
      %v4471 = vunpack.c.l.b16 %v4456
      %v4472 = vpack.c.b16 %v4469, %v4468
      %v4473 = vpack.c.b16 %v4471, %v4470
      %v4477 = vsel %vm1663, %v4390, 0
      %v4480 = vsel %vm1663, %v4391, 0
      %v4483 = vsel %vm1663, %v4392, 0
      %v4486 = vsel %vm1663, %v4393, 0
      %v4489 = vsel %vm1663, %v4394, 0
      %v4492 = vsel %vm1663, %v4395, 0
      %v4495 = vsel %vm1663, %v4396, 0
      %v4498 = vsel %vm1663, %v4397, 0
      %v4501 = vsel %vm1663, %v4398, 0
      %v4504 = vsel %vm1663, %v4399, 0
      %v4507 = vsel %vm1663, %v4400, 0
      %v4510 = vsel %vm1663, %v4401, 0
      %v4513 = vsel %vm1663, %v4402, 0
      %v4516 = vsel %vm1663, %v4403, 0
      %v4519 = vsel %vm1663, %v4404, 0
      %v4522 = vsel %vm1663, %v4405, 0
      %v4525 = vsel %vm1663, %v4406, 0
      %v4528 = vsel %vm1663, %v4407, 0
      %v4531 = vsel %vm1663, %v4408, 0
      %v4534 = vsel %vm1663, %v4409, 0
      %v4537 = vsel %vm1663, %v4410, 0
      %v4540 = vsel %vm1663, %v4411, 0
      %v4543 = vsel %vm1663, %v4412, 0
      %v4546 = vsel %vm1663, %v4413, 0
      %v4549 = vsel %vm1663, %v4414, 0
      %v4552 = vsel %vm1663, %v4415, 0
      %v4555 = vsel %vm1663, %v4416, 0
      %v4558 = vsel %vm1663, %v4417, 0
      %v4561 = vsel %vm1663, %v4418, 0
      %v4564 = vsel %vm1663, %v4419, 0
      %v4567 = vsel %vm1663, %v4420, 0
      %v4570 = vsel %vm1663, %v4421, 0
      %v4573 = vsel %vm1663, %v4422, 0
      %v4576 = vsel %vm1663, %v4423, 0
      %v4579 = vsel %vm1663, %v4424, 0
      %v4582 = vsel %vm1663, %v4425, 0
      %v4585 = vsel %vm1663, %v4426, 0
      %v4588 = vsel %vm1663, %v4427, 0
      %v4591 = vsel %vm1663, %v4428, 0
      %v4594 = vsel %vm1663, %v4429, 0
      %v4597 = vsel %vm1663, %v4430, 0
      %v4600 = vsel %vm1663, %v4431, 0
      %v4603 = vsel %vm1663, %v4432, 0
      %v4606 = vsel %vm1663, %v4433, 0
      %v4609 = vsel %vm1663, %v4434, 0
      %v4612 = vsel %vm1663, %v4435, 0
      %v4615 = vsel %vm1663, %v4436, 0
      %v4618 = vsel %vm1663, %v4437, 0
      %v4621 = vsel %vm1663, %v4438, 0
      %v4624 = vsel %vm1663, %v4439, 0
      %v4627 = vsel %vm1663, %v4440, 0
      %v4630 = vsel %vm1663, %v4441, 0
      %v4633 = vsel %vm1663, %v4442, 0
      %v4636 = vsel %vm1663, %v4443, 0
      %v4639 = vsel %vm1663, %v4444, 0
      %v4642 = vsel %vm1663, %v4445, 0
      %v4645 = vsel %vm1663, %v4446, 0
      %v4648 = vsel %vm1663, %v4447, 0
      %v4651 = vsel %vm1663, %v4448, 0
      %v4654 = vsel %vm1663, %v4449, 0
      %v4657 = vsel %vm1663, %v4450, 0
      %v4660 = vsel %vm1663, %v4451, 0
      %v4663 = vsel %vm1663, %v4452, 0
      %4665 = vmatprep.subr.bf16.mxu0 0
      %4666 = vmatpush1.bf16.msra.mxu0 %v4472
      %4667 = vmatprep.subr.bf16.mxu0 0
      %4668 = vmatpush1.bf16.msra.mxu0 %v4473
      %4669 = vmatprep.subr.bf16.mxu0 0
      %4670 = vmatpush1.bf16.msra.mxu0 0
      %4671 = vmatprep.subr.bf16.mxu0 0
      %4672 = vmatpush1.bf16.msra.mxu0 0
      %4673 = vmatprep.subr.bf16.mxu0 0
      %4674 = vmatpush1.bf16.msra.mxu0 0
      %4675 = vmatprep.subr.bf16.mxu0 0
      %4676 = vmatpush1.bf16.msra.mxu0 0
      %4677 = vmatprep.subr.bf16.mxu0 0
      %4678 = vmatpush1.bf16.msra.mxu0 0
      %4679 = vmatprep.subr.bf16.mxu0 0
      %4680 = vmatpush1.bf16.msra.mxu0 0
      %4681 = vmatprep.subr.bf16.mxu0 0
      %4682 = vmatpush1.bf16.msra.mxu0 0
      %4683 = vmatprep.subr.bf16.mxu0 0
      %4684 = vmatpush1.bf16.msra.mxu0 0
      %4685 = vmatprep.subr.bf16.mxu0 0
      %4686 = vmatpush1.bf16.msra.mxu0 0
      %4687 = vmatprep.subr.bf16.mxu0 0
      %4688 = vmatpush1.bf16.msra.mxu0 0
      %4689 = vmatprep.subr.bf16.mxu0 0
      %4690 = vmatpush1.bf16.msra.mxu0 0
      %4691 = vmatprep.subr.bf16.mxu0 0
      %4692 = vmatpush1.bf16.msra.mxu0 0
      %4693 = vmatprep.subr.bf16.mxu0 0
      %4694 = vmatpush1.bf16.msra.mxu0 0
      %4695 = vmatprep.subr.bf16.mxu0 0
      %4696 = vmatpush1.bf16.msra.mxu0 0
      %4697 = vmatprep.mubr.bf16.mxu0 0
      %4698 = vmatmul.mubr.bf16.gmra.mrb[0].mxu0 %v4477
      %v4699 = vpop.f32.mrb[0].mxu0
      %v4700 = vadd.f32 %v4462, %v4699
      %v4701 = vpop.f32.mrb[0].mxu0
      %v4702 = vpop.f32.mrb[0].mxu0
      %v4703 = vadd.f32 %v4462, %v4702
      %v4704 = vpop.f32.mrb[0].mxu0
      %4705 = vmatprep.mubr.bf16.mxu0 0
      %4706 = vmatmul.mubr.bf16.gmra.mrb[0].mxu0 %v4480
      %v4707 = vpop.f32.mrb[0].mxu0
      %v4708 = vadd.f32 %v4462, %v4707
      %v4709 = vpop.f32.mrb[0].mxu0
      %v4710 = vpop.f32.mrb[0].mxu0
      %v4711 = vadd.f32 %v4462, %v4710
      %v4712 = vpop.f32.mrb[0].mxu0
      %4713 = vmatprep.mubr.bf16.mxu0 0
      %4714 = vmatmul.mubr.bf16.gmra.mrb[0].mxu0 %v4483
      %v4715 = vpop.f32.mrb[0].mxu0
      %v4716 = vadd.f32 %v4462, %v4715
      %v4717 = vpop.f32.mrb[0].mxu0
      %v4718 = vpop.f32.mrb[0].mxu0
      %v4719 = vadd.f32 %v4462, %v4718
      %v4720 = vpop.f32.mrb[0].mxu0
      %4721 = vmatprep.mubr.bf16.mxu0 0
      %4722 = vmatmul.mubr.bf16.gmra.mrb[0].mxu0 %v4486
      %v4723 = vpop.f32.mrb[0].mxu0
      %v4724 = vadd.f32 %v4462, %v4723
      %v4725 = vpop.f32.mrb[0].mxu0
      %v4726 = vpop.f32.mrb[0].mxu0
      %v4727 = vadd.f32 %v4462, %v4726
      %v4728 = vpop.f32.mrb[0].mxu0
      %4729 = vmatprep.mubr.bf16.mxu0 0
      %4730 = vmatmul.mubr.bf16.gmra.mrb[0].mxu0 %v4489
      %v4731 = vpop.f32.mrb[0].mxu0
      %v4732 = vadd.f32 %v4462, %v4731
      %v4733 = vpop.f32.mrb[0].mxu0
      %v4734 = vpop.f32.mrb[0].mxu0
      %v4735 = vadd.f32 %v4462, %v4734
      %v4736 = vpop.f32.mrb[0].mxu0
      %4737 = vmatprep.mubr.bf16.mxu0 0
      %4738 = vmatmul.mubr.bf16.gmra.mrb[0].mxu0 %v4492
      %v4739 = vpop.f32.mrb[0].mxu0
      %v4740 = vadd.f32 %v4462, %v4739
      %v4741 = vpop.f32.mrb[0].mxu0
      %v4742 = vpop.f32.mrb[0].mxu0
      %v4743 = vadd.f32 %v4462, %v4742
      %v4744 = vpop.f32.mrb[0].mxu0
      %4745 = vmatprep.mubr.bf16.mxu0 0
      %4746 = vmatmul.mubr.bf16.gmra.mrb[0].mxu0 %v4495
      %v4747 = vpop.f32.mrb[0].mxu0
      %v4748 = vadd.f32 %v4462, %v4747
      %v4749 = vpop.f32.mrb[0].mxu0
      %v4750 = vpop.f32.mrb[0].mxu0
      %v4751 = vadd.f32 %v4462, %v4750
      %v4752 = vpop.f32.mrb[0].mxu0
      %4753 = vmatprep.mubr.bf16.mxu0 0
      %4754 = vmatmul.mubr.bf16.gmra.mrb[0].mxu0 %v4498
      %v4755 = vpop.f32.mrb[0].mxu0
      %v4756 = vadd.f32 %v4462, %v4755
      %v4757 = vpop.f32.mrb[0].mxu0
      %v4758 = vpop.f32.mrb[0].mxu0
      %v4759 = vadd.f32 %v4462, %v4758
      %v4760 = vpop.f32.mrb[0].mxu0
      %4761 = vmatprep.mubr.bf16.mxu0 0
      %4762 = vmatmul.mubr.bf16.gmra.mrb[0].mxu0 %v4501
      %v4763 = vpop.f32.mrb[0].mxu0
      %v4764 = vadd.f32 %v4462, %v4763
      %v4765 = vpop.f32.mrb[0].mxu0
      %v4766 = vpop.f32.mrb[0].mxu0
      %v4767 = vadd.f32 %v4462, %v4766
      %v4768 = vpop.f32.mrb[0].mxu0
      %4769 = vmatprep.mubr.bf16.mxu0 0
      %4770 = vmatmul.mubr.bf16.gmra.mrb[0].mxu0 %v4504
      %v4771 = vpop.f32.mrb[0].mxu0
      %v4772 = vadd.f32 %v4462, %v4771
      %v4773 = vpop.f32.mrb[0].mxu0
      %v4774 = vpop.f32.mrb[0].mxu0
      %v4775 = vadd.f32 %v4462, %v4774
      %v4776 = vpop.f32.mrb[0].mxu0
      %4777 = vmatprep.mubr.bf16.mxu0 0
      %4778 = vmatmul.mubr.bf16.gmra.mrb[0].mxu0 %v4507
      %v4779 = vpop.f32.mrb[0].mxu0
      %v4780 = vadd.f32 %v4462, %v4779
      %v4781 = vpop.f32.mrb[0].mxu0
      %v4782 = vpop.f32.mrb[0].mxu0
      %v4783 = vadd.f32 %v4462, %v4782
      %v4784 = vpop.f32.mrb[0].mxu0
      %4785 = vmatprep.mubr.bf16.mxu0 0
      %4786 = vmatmul.mubr.bf16.gmra.mrb[0].mxu0 %v4510
      %v4787 = vpop.f32.mrb[0].mxu0
      %v4788 = vadd.f32 %v4462, %v4787
      %v4789 = vpop.f32.mrb[0].mxu0
      %v4790 = vpop.f32.mrb[0].mxu0
      %v4791 = vadd.f32 %v4462, %v4790
      %v4792 = vpop.f32.mrb[0].mxu0
      %4793 = vmatprep.mubr.bf16.mxu0 0
      %4794 = vmatmul.mubr.bf16.gmra.mrb[0].mxu0 %v4513
      %v4795 = vpop.f32.mrb[0].mxu0
      %v4796 = vadd.f32 %v4462, %v4795
      %v4797 = vpop.f32.mrb[0].mxu0
      %v4798 = vpop.f32.mrb[0].mxu0
      %v4799 = vadd.f32 %v4462, %v4798
      %v4800 = vpop.f32.mrb[0].mxu0
      %4801 = vmatprep.mubr.bf16.mxu0 0
      %4802 = vmatmul.mubr.bf16.gmra.mrb[0].mxu0 %v4516
      %v4803 = vpop.f32.mrb[0].mxu0
      %v4804 = vadd.f32 %v4462, %v4803
      %v4805 = vpop.f32.mrb[0].mxu0
      %v4806 = vpop.f32.mrb[0].mxu0
      %v4807 = vadd.f32 %v4462, %v4806
      %v4808 = vpop.f32.mrb[0].mxu0
      %4809 = vmatprep.mubr.bf16.mxu0 0
      %4810 = vmatmul.mubr.bf16.gmra.mrb[0].mxu0 %v4519
      %v4811 = vpop.f32.mrb[0].mxu0
      %v4812 = vadd.f32 %v4462, %v4811
      %v4813 = vpop.f32.mrb[0].mxu0
      %v4814 = vpop.f32.mrb[0].mxu0
      %v4815 = vadd.f32 %v4462, %v4814
      %v4816 = vpop.f32.mrb[0].mxu0
      %4817 = vmatprep.mubr.bf16.mxu0 0
      %4818 = vmatmul.mubr.bf16.gmra.mrb[0].mxu0 %v4522
      %v4819 = vpop.f32.mrb[0].mxu0
      %v4820 = vadd.f32 %v4462, %v4819
      %v4821 = vpop.f32.mrb[0].mxu0
      %v4822 = vpop.f32.mrb[0].mxu0
      %v4823 = vadd.f32 %v4462, %v4822
      %v4824 = vpop.f32.mrb[0].mxu0
      %4825 = vmatprep.mubr.bf16.mxu0 0
      %4826 = vmatmul.mubr.bf16.gmra.mrb[0].mxu0 %v4525
      %v4827 = vpop.f32.mrb[0].mxu0
      %v4828 = vadd.f32 %v4462, %v4827
      %v4829 = vpop.f32.mrb[0].mxu0
      %v4830 = vpop.f32.mrb[0].mxu0
      %v4831 = vadd.f32 %v4462, %v4830
      %v4832 = vpop.f32.mrb[0].mxu0
      %4833 = vmatprep.mubr.bf16.mxu0 0
      %4834 = vmatmul.mubr.bf16.gmra.mrb[0].mxu0 %v4528
      %v4835 = vpop.f32.mrb[0].mxu0
      %v4836 = vadd.f32 %v4462, %v4835
      %v4837 = vpop.f32.mrb[0].mxu0
      %v4838 = vpop.f32.mrb[0].mxu0
      %v4839 = vadd.f32 %v4462, %v4838
      %v4840 = vpop.f32.mrb[0].mxu0
      %4841 = vmatprep.mubr.bf16.mxu0 0
      %4842 = vmatmul.mubr.bf16.gmra.mrb[0].mxu0 %v4531
      %v4843 = vpop.f32.mrb[0].mxu0
      %v4844 = vadd.f32 %v4462, %v4843
      %v4845 = vpop.f32.mrb[0].mxu0
      %v4846 = vpop.f32.mrb[0].mxu0
      %v4847 = vadd.f32 %v4462, %v4846
      %v4848 = vpop.f32.mrb[0].mxu0
      %4849 = vmatprep.mubr.bf16.mxu0 0
      %4850 = vmatmul.mubr.bf16.gmra.mrb[0].mxu0 %v4534
      %v4851 = vpop.f32.mrb[0].mxu0
      %v4852 = vadd.f32 %v4462, %v4851
      %v4853 = vpop.f32.mrb[0].mxu0
      %v4854 = vpop.f32.mrb[0].mxu0
      %v4855 = vadd.f32 %v4462, %v4854
      %v4856 = vpop.f32.mrb[0].mxu0
      %4857 = vmatprep.mubr.bf16.mxu0 0
      %4858 = vmatmul.mubr.bf16.gmra.mrb[0].mxu0 %v4537
      %v4859 = vpop.f32.mrb[0].mxu0
      %v4860 = vadd.f32 %v4462, %v4859
      %v4861 = vpop.f32.mrb[0].mxu0
      %v4862 = vpop.f32.mrb[0].mxu0
      %v4863 = vadd.f32 %v4462, %v4862
      %v4864 = vpop.f32.mrb[0].mxu0
      %4865 = vmatprep.mubr.bf16.mxu0 0
      %4866 = vmatmul.mubr.bf16.gmra.mrb[0].mxu0 %v4540
      %v4867 = vpop.f32.mrb[0].mxu0
      %v4868 = vadd.f32 %v4462, %v4867
      %v4869 = vpop.f32.mrb[0].mxu0
      %v4870 = vpop.f32.mrb[0].mxu0
      %v4871 = vadd.f32 %v4462, %v4870
      %v4872 = vpop.f32.mrb[0].mxu0
      %4873 = vmatprep.mubr.bf16.mxu0 0
      %4874 = vmatmul.mubr.bf16.gmra.mrb[0].mxu0 %v4543
      %v4875 = vpop.f32.mrb[0].mxu0
      %v4876 = vadd.f32 %v4462, %v4875
      %v4877 = vpop.f32.mrb[0].mxu0
      %v4878 = vpop.f32.mrb[0].mxu0
      %v4879 = vadd.f32 %v4462, %v4878
      %v4880 = vpop.f32.mrb[0].mxu0
      %4881 = vmatprep.mubr.bf16.mxu0 0
      %4882 = vmatmul.mubr.bf16.gmra.mrb[0].mxu0 %v4546
      %v4883 = vpop.f32.mrb[0].mxu0
      %v4884 = vadd.f32 %v4462, %v4883
      %v4885 = vpop.f32.mrb[0].mxu0
      %v4886 = vpop.f32.mrb[0].mxu0
      %v4887 = vadd.f32 %v4462, %v4886
      %v4888 = vpop.f32.mrb[0].mxu0
      %4889 = vmatprep.mubr.bf16.mxu0 0
      %4890 = vmatmul.mubr.bf16.gmra.mrb[0].mxu0 %v4549
      %v4891 = vpop.f32.mrb[0].mxu0
      %v4892 = vadd.f32 %v4462, %v4891
      %v4893 = vpop.f32.mrb[0].mxu0
      %v4894 = vpop.f32.mrb[0].mxu0
      %v4895 = vadd.f32 %v4462, %v4894
      %v4896 = vpop.f32.mrb[0].mxu0
      %4897 = vmatprep.mubr.bf16.mxu0 0
      %4898 = vmatmul.mubr.bf16.gmra.mrb[0].mxu0 %v4552
      %v4899 = vpop.f32.mrb[0].mxu0
      %v4900 = vadd.f32 %v4462, %v4899
      %v4901 = vpop.f32.mrb[0].mxu0
      %v4902 = vpop.f32.mrb[0].mxu0
      %v4903 = vadd.f32 %v4462, %v4902
      %v4904 = vpop.f32.mrb[0].mxu0
      %4905 = vmatprep.mubr.bf16.mxu0 0
      %4906 = vmatmul.mubr.bf16.gmra.mrb[0].mxu0 %v4555
      %v4907 = vpop.f32.mrb[0].mxu0
      %v4908 = vadd.f32 %v4462, %v4907
      %v4909 = vpop.f32.mrb[0].mxu0
      %v4910 = vpop.f32.mrb[0].mxu0
      %v4911 = vadd.f32 %v4462, %v4910
      %v4912 = vpop.f32.mrb[0].mxu0
      %4913 = vmatprep.mubr.bf16.mxu0 0
      %4914 = vmatmul.mubr.bf16.gmra.mrb[0].mxu0 %v4558
      %v4915 = vpop.f32.mrb[0].mxu0
      %v4916 = vadd.f32 %v4462, %v4915
      %v4917 = vpop.f32.mrb[0].mxu0
      %v4918 = vpop.f32.mrb[0].mxu0
      %v4919 = vadd.f32 %v4462, %v4918
      %v4920 = vpop.f32.mrb[0].mxu0
      %4921 = vmatprep.mubr.bf16.mxu0 0
      %4922 = vmatmul.mubr.bf16.gmra.mrb[0].mxu0 %v4561
      %v4923 = vpop.f32.mrb[0].mxu0
      %v4924 = vadd.f32 %v4462, %v4923
      %v4925 = vpop.f32.mrb[0].mxu0
      %v4926 = vpop.f32.mrb[0].mxu0
      %v4927 = vadd.f32 %v4462, %v4926
      %v4928 = vpop.f32.mrb[0].mxu0
      %4929 = vmatprep.mubr.bf16.mxu0 0
      %4930 = vmatmul.mubr.bf16.gmra.mrb[0].mxu0 %v4564
      %v4931 = vpop.f32.mrb[0].mxu0
      %v4932 = vadd.f32 %v4462, %v4931
      %v4933 = vpop.f32.mrb[0].mxu0
      %v4934 = vpop.f32.mrb[0].mxu0
      %v4935 = vadd.f32 %v4462, %v4934
      %v4936 = vpop.f32.mrb[0].mxu0
      %4937 = vmatprep.mubr.bf16.mxu0 0
      %4938 = vmatmul.mubr.bf16.gmra.mrb[0].mxu0 %v4567
      %v4939 = vpop.f32.mrb[0].mxu0
      %v4940 = vadd.f32 %v4462, %v4939
      %v4941 = vpop.f32.mrb[0].mxu0
      %v4942 = vpop.f32.mrb[0].mxu0
      %v4943 = vadd.f32 %v4462, %v4942
      %v4944 = vpop.f32.mrb[0].mxu0
      %4945 = vmatprep.mubr.bf16.mxu0 0
      %4946 = vmatmul.mubr.bf16.gmra.mrb[0].mxu0 %v4570
      %v4947 = vpop.f32.mrb[0].mxu0
      %v4948 = vadd.f32 %v4462, %v4947
      %v4949 = vpop.f32.mrb[0].mxu0
      %v4950 = vpop.f32.mrb[0].mxu0
      %v4951 = vadd.f32 %v4462, %v4950
      %v4952 = vpop.f32.mrb[0].mxu0
      %4953 = vmatprep.mubr.bf16.mxu0 0
      %4954 = vmatmul.mubr.bf16.gmra.mrb[0].mxu0 %v4573
      %v4955 = vpop.f32.mrb[0].mxu0
      %v4956 = vadd.f32 %v4462, %v4955
      %v4957 = vpop.f32.mrb[0].mxu0
      %v4958 = vpop.f32.mrb[0].mxu0
      %v4959 = vadd.f32 %v4462, %v4958
      %v4960 = vpop.f32.mrb[0].mxu0
      %4961 = vmatprep.mubr.bf16.mxu0 0
      %4962 = vmatmul.mubr.bf16.gmra.mrb[0].mxu0 %v4576
      %v4963 = vpop.f32.mrb[0].mxu0
      %v4964 = vadd.f32 %v4462, %v4963
      %v4965 = vpop.f32.mrb[0].mxu0
      %v4966 = vpop.f32.mrb[0].mxu0
      %v4967 = vadd.f32 %v4462, %v4966
      %v4968 = vpop.f32.mrb[0].mxu0
      %4969 = vmatprep.mubr.bf16.mxu0 0
      %4970 = vmatmul.mubr.bf16.gmra.mrb[0].mxu0 %v4579
      %v4971 = vpop.f32.mrb[0].mxu0
      %v4972 = vadd.f32 %v4462, %v4971
      %v4973 = vpop.f32.mrb[0].mxu0
      %v4974 = vpop.f32.mrb[0].mxu0
      %v4975 = vadd.f32 %v4462, %v4974
      %v4976 = vpop.f32.mrb[0].mxu0
      %4977 = vmatprep.mubr.bf16.mxu0 0
      %4978 = vmatmul.mubr.bf16.gmra.mrb[0].mxu0 %v4582
      %v4979 = vpop.f32.mrb[0].mxu0
      %v4980 = vadd.f32 %v4462, %v4979
      %v4981 = vpop.f32.mrb[0].mxu0
      %v4982 = vpop.f32.mrb[0].mxu0
      %v4983 = vadd.f32 %v4462, %v4982
      %v4984 = vpop.f32.mrb[0].mxu0
      %4985 = vmatprep.mubr.bf16.mxu0 0
      %4986 = vmatmul.mubr.bf16.gmra.mrb[0].mxu0 %v4585
      %v4987 = vpop.f32.mrb[0].mxu0
      %v4988 = vadd.f32 %v4462, %v4987
      %v4989 = vpop.f32.mrb[0].mxu0
      %v4990 = vpop.f32.mrb[0].mxu0
      %v4991 = vadd.f32 %v4462, %v4990
      %v4992 = vpop.f32.mrb[0].mxu0
      %4993 = vmatprep.mubr.bf16.mxu0 0
      %4994 = vmatmul.mubr.bf16.gmra.mrb[0].mxu0 %v4588
      %v4995 = vpop.f32.mrb[0].mxu0
      %v4996 = vadd.f32 %v4462, %v4995
      %v4997 = vpop.f32.mrb[0].mxu0
      %v4998 = vpop.f32.mrb[0].mxu0
      %v4999 = vadd.f32 %v4462, %v4998
      %v5000 = vpop.f32.mrb[0].mxu0
      %5001 = vmatprep.mubr.bf16.mxu0 0
      %5002 = vmatmul.mubr.bf16.gmra.mrb[0].mxu0 %v4591
      %v5003 = vpop.f32.mrb[0].mxu0
      %v5004 = vadd.f32 %v4462, %v5003
      %v5005 = vpop.f32.mrb[0].mxu0
      %v5006 = vpop.f32.mrb[0].mxu0
      %v5007 = vadd.f32 %v4462, %v5006
      %v5008 = vpop.f32.mrb[0].mxu0
      %5009 = vmatprep.mubr.bf16.mxu0 0
      %5010 = vmatmul.mubr.bf16.gmra.mrb[0].mxu0 %v4594
      %v5011 = vpop.f32.mrb[0].mxu0
      %v5012 = vadd.f32 %v4462, %v5011
      %v5013 = vpop.f32.mrb[0].mxu0
      %v5014 = vpop.f32.mrb[0].mxu0
      %v5015 = vadd.f32 %v4462, %v5014
      %v5016 = vpop.f32.mrb[0].mxu0
      %5017 = vmatprep.mubr.bf16.mxu0 0
      %5018 = vmatmul.mubr.bf16.gmra.mrb[0].mxu0 %v4597
      %v5019 = vpop.f32.mrb[0].mxu0
      %v5020 = vadd.f32 %v4462, %v5019
      %v5021 = vpop.f32.mrb[0].mxu0
      %v5022 = vpop.f32.mrb[0].mxu0
      %v5023 = vadd.f32 %v4462, %v5022
      %v5024 = vpop.f32.mrb[0].mxu0
      %5025 = vmatprep.mubr.bf16.mxu0 0
      %5026 = vmatmul.mubr.bf16.gmra.mrb[0].mxu0 %v4600
      %v5027 = vpop.f32.mrb[0].mxu0
      %v5028 = vadd.f32 %v4462, %v5027
      %v5029 = vpop.f32.mrb[0].mxu0
      %v5030 = vpop.f32.mrb[0].mxu0
      %v5031 = vadd.f32 %v4462, %v5030
      %v5032 = vpop.f32.mrb[0].mxu0
      %5033 = vmatprep.mubr.bf16.mxu0 0
      %5034 = vmatmul.mubr.bf16.gmra.mrb[0].mxu0 %v4603
      %v5035 = vpop.f32.mrb[0].mxu0
      %v5036 = vadd.f32 %v4462, %v5035
      %v5037 = vpop.f32.mrb[0].mxu0
      %v5038 = vpop.f32.mrb[0].mxu0
      %v5039 = vadd.f32 %v4462, %v5038
      %v5040 = vpop.f32.mrb[0].mxu0
      %5041 = vmatprep.mubr.bf16.mxu0 0
      %5042 = vmatmul.mubr.bf16.gmra.mrb[0].mxu0 %v4606
      %v5043 = vpop.f32.mrb[0].mxu0
      %v5044 = vadd.f32 %v4462, %v5043
      %v5045 = vpop.f32.mrb[0].mxu0
      %v5046 = vpop.f32.mrb[0].mxu0
      %v5047 = vadd.f32 %v4462, %v5046
      %v5048 = vpop.f32.mrb[0].mxu0
      %5049 = vmatprep.mubr.bf16.mxu0 0
      %5050 = vmatmul.mubr.bf16.gmra.mrb[0].mxu0 %v4609
      %v5051 = vpop.f32.mrb[0].mxu0
      %v5052 = vadd.f32 %v4462, %v5051
      %v5053 = vpop.f32.mrb[0].mxu0
      %v5054 = vpop.f32.mrb[0].mxu0
      %v5055 = vadd.f32 %v4462, %v5054
      %v5056 = vpop.f32.mrb[0].mxu0
      %5057 = vmatprep.mubr.bf16.mxu0 0
      %5058 = vmatmul.mubr.bf16.gmra.mrb[0].mxu0 %v4612
      %v5059 = vpop.f32.mrb[0].mxu0
      %v5060 = vadd.f32 %v4462, %v5059
      %v5061 = vpop.f32.mrb[0].mxu0
      %v5062 = vpop.f32.mrb[0].mxu0
      %v5063 = vadd.f32 %v4462, %v5062
      %v5064 = vpop.f32.mrb[0].mxu0
      %5065 = vmatprep.mubr.bf16.mxu0 0
      %5066 = vmatmul.mubr.bf16.gmra.mrb[0].mxu0 %v4615
      %v5067 = vpop.f32.mrb[0].mxu0
      %v5068 = vadd.f32 %v4462, %v5067
      %v5069 = vpop.f32.mrb[0].mxu0
      %v5070 = vpop.f32.mrb[0].mxu0
      %v5071 = vadd.f32 %v4462, %v5070
      %v5072 = vpop.f32.mrb[0].mxu0
      %5073 = vmatprep.mubr.bf16.mxu0 0
      %5074 = vmatmul.mubr.bf16.gmra.mrb[0].mxu0 %v4618
      %v5075 = vpop.f32.mrb[0].mxu0
      %v5076 = vadd.f32 %v4462, %v5075
      %v5077 = vpop.f32.mrb[0].mxu0
      %v5078 = vpop.f32.mrb[0].mxu0
      %v5079 = vadd.f32 %v4462, %v5078
      %v5080 = vpop.f32.mrb[0].mxu0
      %5081 = vmatprep.mubr.bf16.mxu0 0
      %5082 = vmatmul.mubr.bf16.gmra.mrb[0].mxu0 %v4621
      %v5083 = vpop.f32.mrb[0].mxu0
      %v5084 = vadd.f32 %v4462, %v5083
      %v5085 = vpop.f32.mrb[0].mxu0
      %v5086 = vpop.f32.mrb[0].mxu0
      %v5087 = vadd.f32 %v4462, %v5086
      %v5088 = vpop.f32.mrb[0].mxu0
      %5089 = vmatprep.mubr.bf16.mxu0 0
      %5090 = vmatmul.mubr.bf16.gmra.mrb[0].mxu0 %v4624
      %v5091 = vpop.f32.mrb[0].mxu0
      %v5092 = vadd.f32 %v4462, %v5091
      %v5093 = vpop.f32.mrb[0].mxu0
      %v5094 = vpop.f32.mrb[0].mxu0
      %v5095 = vadd.f32 %v4462, %v5094
      %v5096 = vpop.f32.mrb[0].mxu0
      %5097 = vmatprep.mubr.bf16.mxu0 0
      %5098 = vmatmul.mubr.bf16.gmra.mrb[0].mxu0 %v4627
      %v5099 = vpop.f32.mrb[0].mxu0
      %v5100 = vadd.f32 %v4462, %v5099
      %v5101 = vpop.f32.mrb[0].mxu0
      %v5102 = vpop.f32.mrb[0].mxu0
      %v5103 = vadd.f32 %v4462, %v5102
      %v5104 = vpop.f32.mrb[0].mxu0
      %5105 = vmatprep.mubr.bf16.mxu0 0
      %5106 = vmatmul.mubr.bf16.gmra.mrb[0].mxu0 %v4630
      %v5107 = vpop.f32.mrb[0].mxu0
      %v5108 = vadd.f32 %v4462, %v5107
      %v5109 = vpop.f32.mrb[0].mxu0
      %v5110 = vpop.f32.mrb[0].mxu0
      %v5111 = vadd.f32 %v4462, %v5110
      %v5112 = vpop.f32.mrb[0].mxu0
      %5113 = vmatprep.mubr.bf16.mxu0 0
      %5114 = vmatmul.mubr.bf16.gmra.mrb[0].mxu0 %v4633
      %v5115 = vpop.f32.mrb[0].mxu0
      %v5116 = vadd.f32 %v4462, %v5115
      %v5117 = vpop.f32.mrb[0].mxu0
      %v5118 = vpop.f32.mrb[0].mxu0
      %v5119 = vadd.f32 %v4462, %v5118
      %v5120 = vpop.f32.mrb[0].mxu0
      %5121 = vmatprep.mubr.bf16.mxu0 0
      %5122 = vmatmul.mubr.bf16.gmra.mrb[0].mxu0 %v4636
      %v5123 = vpop.f32.mrb[0].mxu0
      %v5124 = vadd.f32 %v4462, %v5123
      %v5125 = vpop.f32.mrb[0].mxu0
      %v5126 = vpop.f32.mrb[0].mxu0
      %v5127 = vadd.f32 %v4462, %v5126
      %v5128 = vpop.f32.mrb[0].mxu0
      %5129 = vmatprep.mubr.bf16.mxu0 0
      %5130 = vmatmul.mubr.bf16.gmra.mrb[0].mxu0 %v4639
      %v5131 = vpop.f32.mrb[0].mxu0
      %v5132 = vadd.f32 %v4462, %v5131
      %v5133 = vpop.f32.mrb[0].mxu0
      %v5134 = vpop.f32.mrb[0].mxu0
      %v5135 = vadd.f32 %v4462, %v5134
      %v5136 = vpop.f32.mrb[0].mxu0
      %5137 = vmatprep.mubr.bf16.mxu0 0
      %5138 = vmatmul.mubr.bf16.gmra.mrb[0].mxu0 %v4642
      %v5139 = vpop.f32.mrb[0].mxu0
      %v5140 = vadd.f32 %v4462, %v5139
      %v5141 = vpop.f32.mrb[0].mxu0
      %v5142 = vpop.f32.mrb[0].mxu0
      %v5143 = vadd.f32 %v4462, %v5142
      %v5144 = vpop.f32.mrb[0].mxu0
      %5145 = vmatprep.mubr.bf16.mxu0 0
      %5146 = vmatmul.mubr.bf16.gmra.mrb[0].mxu0 %v4645
      %v5147 = vpop.f32.mrb[0].mxu0
      %v5148 = vadd.f32 %v4462, %v5147
      %v5149 = vpop.f32.mrb[0].mxu0
      %v5150 = vpop.f32.mrb[0].mxu0
      %v5151 = vadd.f32 %v4462, %v5150
      %v5152 = vpop.f32.mrb[0].mxu0
      %5153 = vmatprep.mubr.bf16.mxu0 0
      %5154 = vmatmul.mubr.bf16.gmra.mrb[0].mxu0 %v4648
      %v5155 = vpop.f32.mrb[0].mxu0
      %v5156 = vadd.f32 %v4462, %v5155
      %v5157 = vpop.f32.mrb[0].mxu0
      %v5158 = vpop.f32.mrb[0].mxu0
      %v5159 = vadd.f32 %v4462, %v5158
      %v5160 = vpop.f32.mrb[0].mxu0
      %5161 = vmatprep.mubr.bf16.mxu0 0
      %5162 = vmatmul.mubr.bf16.gmra.mrb[0].mxu0 %v4651
      %v5163 = vpop.f32.mrb[0].mxu0
      %v5164 = vadd.f32 %v4462, %v5163
      %v5165 = vpop.f32.mrb[0].mxu0
      %v5166 = vpop.f32.mrb[0].mxu0
      %v5167 = vadd.f32 %v4462, %v5166
      %v5168 = vpop.f32.mrb[0].mxu0
      %5169 = vmatprep.mubr.bf16.mxu0 0
      %5170 = vmatmul.mubr.bf16.gmra.mrb[0].mxu0 %v4654
      %v5171 = vpop.f32.mrb[0].mxu0
      %v5172 = vadd.f32 %v4462, %v5171
      %v5173 = vpop.f32.mrb[0].mxu0
      %v5174 = vpop.f32.mrb[0].mxu0
      %v5175 = vadd.f32 %v4462, %v5174
      %v5176 = vpop.f32.mrb[0].mxu0
      %5177 = vmatprep.mubr.bf16.mxu0 0
      %5178 = vmatmul.mubr.bf16.gmra.mrb[0].mxu0 %v4657
      %v5179 = vpop.f32.mrb[0].mxu0
      %v5180 = vadd.f32 %v4462, %v5179
      %v5181 = vpop.f32.mrb[0].mxu0
      %v5182 = vpop.f32.mrb[0].mxu0
      %v5183 = vadd.f32 %v4462, %v5182
      %v5184 = vpop.f32.mrb[0].mxu0
      %5185 = vmatprep.mubr.bf16.mxu0 0
      %5186 = vmatmul.mubr.bf16.gmra.mrb[0].mxu0 %v4660
      %v5187 = vpop.f32.mrb[0].mxu0
      %v5188 = vadd.f32 %v4462, %v5187
      %v5189 = vpop.f32.mrb[0].mxu0
      %v5190 = vpop.f32.mrb[0].mxu0
      %v5191 = vadd.f32 %v4462, %v5190
      %v5192 = vpop.f32.mrb[0].mxu0
      %5193 = vmatprep.mubr.bf16.mxu0 0
      %5194 = vmatmul.mubr.bf16.gmra.mrb[0].mxu0 %v4663
      %v5195 = vpop.f32.mrb[0].mxu0
      %v5196 = vadd.f32 %v4462, %v5195
      %v5197 = vpop.f32.mrb[0].mxu0
      %v5198 = vpop.f32.mrb[0].mxu0
      %v5199 = vadd.f32 %v4462, %v5198
      %v5200 = vpop.f32.mrb[0].mxu0
      %5201 = vdwg.mxu0
      %v5202 = vxor.u32 %v4700, 2147483648
      %v5203 = vxor.u32 %v4703, 2147483648
      %v5204 = vxor.u32 %v4708, 2147483648
      %v5205 = vxor.u32 %v4711, 2147483648
      %v5206 = vxor.u32 %v4716, 2147483648
      %v5207 = vxor.u32 %v4719, 2147483648
      %v5208 = vxor.u32 %v4724, 2147483648
      %v5209 = vxor.u32 %v4727, 2147483648
      %v5210 = vxor.u32 %v4732, 2147483648
      %v5211 = vxor.u32 %v4735, 2147483648
      %v5212 = vxor.u32 %v4740, 2147483648
      %v5213 = vxor.u32 %v4743, 2147483648
      %v5214 = vxor.u32 %v4748, 2147483648
      %v5215 = vxor.u32 %v4751, 2147483648
      %v5216 = vxor.u32 %v4756, 2147483648
      %v5217 = vxor.u32 %v4759, 2147483648
      %v5218 = vxor.u32 %v4764, 2147483648
      %v5219 = vxor.u32 %v4767, 2147483648
      %v5220 = vxor.u32 %v4772, 2147483648
      %v5221 = vxor.u32 %v4775, 2147483648
      %v5222 = vxor.u32 %v4780, 2147483648
      %v5223 = vxor.u32 %v4783, 2147483648
      %v5224 = vxor.u32 %v4788, 2147483648
      %v5225 = vxor.u32 %v4791, 2147483648
      %v5226 = vxor.u32 %v4796, 2147483648
      %v5227 = vxor.u32 %v4799, 2147483648
      %v5228 = vxor.u32 %v4804, 2147483648
      %v5229 = vxor.u32 %v4807, 2147483648
      %v5230 = vxor.u32 %v4812, 2147483648
      %v5231 = vxor.u32 %v4815, 2147483648
      %v5232 = vxor.u32 %v4820, 2147483648
      %v5233 = vxor.u32 %v4823, 2147483648
      %v5234 = vxor.u32 %v4828, 2147483648
      %v5235 = vxor.u32 %v4831, 2147483648
      %v5236 = vxor.u32 %v4836, 2147483648
      %v5237 = vxor.u32 %v4839, 2147483648
      %v5238 = vxor.u32 %v4844, 2147483648
      %v5239 = vxor.u32 %v4847, 2147483648
      %v5240 = vxor.u32 %v4852, 2147483648
      %v5241 = vxor.u32 %v4855, 2147483648
      %v5242 = vxor.u32 %v4860, 2147483648
      %v5243 = vxor.u32 %v4863, 2147483648
      %v5244 = vxor.u32 %v4868, 2147483648
      %v5245 = vxor.u32 %v4871, 2147483648
      %v5246 = vxor.u32 %v4876, 2147483648
      %v5247 = vxor.u32 %v4879, 2147483648
      %v5248 = vxor.u32 %v4884, 2147483648
      %v5249 = vxor.u32 %v4887, 2147483648
      %v5250 = vxor.u32 %v4892, 2147483648
      %v5251 = vxor.u32 %v4895, 2147483648
      %v5252 = vxor.u32 %v4900, 2147483648
      %v5253 = vxor.u32 %v4903, 2147483648
      %v5254 = vxor.u32 %v4908, 2147483648
      %v5255 = vxor.u32 %v4911, 2147483648
      %v5256 = vxor.u32 %v4916, 2147483648
      %v5257 = vxor.u32 %v4919, 2147483648
      %v5258 = vxor.u32 %v4924, 2147483648
      %v5259 = vxor.u32 %v4927, 2147483648
      %v5260 = vxor.u32 %v4932, 2147483648
      %v5261 = vxor.u32 %v4935, 2147483648
      %v5262 = vxor.u32 %v4940, 2147483648
      %v5263 = vxor.u32 %v4943, 2147483648
      %v5264 = vxor.u32 %v4948, 2147483648
      %v5265 = vxor.u32 %v4951, 2147483648
      %v5266 = vxor.u32 %v4956, 2147483648
      %v5267 = vxor.u32 %v4959, 2147483648
      %v5268 = vxor.u32 %v4964, 2147483648
      %v5269 = vxor.u32 %v4967, 2147483648
      %v5270 = vxor.u32 %v4972, 2147483648
      %v5271 = vxor.u32 %v4975, 2147483648
      %v5272 = vxor.u32 %v4980, 2147483648
      %v5273 = vxor.u32 %v4983, 2147483648
      %v5274 = vxor.u32 %v4988, 2147483648
      %v5275 = vxor.u32 %v4991, 2147483648
      %v5276 = vxor.u32 %v4996, 2147483648
      %v5277 = vxor.u32 %v4999, 2147483648
      %v5278 = vxor.u32 %v5004, 2147483648
      %v5279 = vxor.u32 %v5007, 2147483648
      %v5280 = vxor.u32 %v5012, 2147483648
      %v5281 = vxor.u32 %v5015, 2147483648
      %v5282 = vxor.u32 %v5020, 2147483648
      %v5283 = vxor.u32 %v5023, 2147483648
      %v5284 = vxor.u32 %v5028, 2147483648
      %v5285 = vxor.u32 %v5031, 2147483648
      %v5286 = vxor.u32 %v5036, 2147483648
      %v5287 = vxor.u32 %v5039, 2147483648
      %v5288 = vxor.u32 %v5044, 2147483648
      %v5289 = vxor.u32 %v5047, 2147483648
      %v5290 = vxor.u32 %v5052, 2147483648
      %v5291 = vxor.u32 %v5055, 2147483648
      %v5292 = vxor.u32 %v5060, 2147483648
      %v5293 = vxor.u32 %v5063, 2147483648
      %v5294 = vxor.u32 %v5068, 2147483648
      %v5295 = vxor.u32 %v5071, 2147483648
      %v5296 = vxor.u32 %v5076, 2147483648
      %v5297 = vxor.u32 %v5079, 2147483648
      %v5298 = vxor.u32 %v5084, 2147483648
      %v5299 = vxor.u32 %v5087, 2147483648
      %v5300 = vxor.u32 %v5092, 2147483648
      %v5301 = vxor.u32 %v5095, 2147483648
      %v5302 = vxor.u32 %v5100, 2147483648
      %v5303 = vxor.u32 %v5103, 2147483648
      %v5304 = vxor.u32 %v5108, 2147483648
      %v5305 = vxor.u32 %v5111, 2147483648
      %v5306 = vxor.u32 %v5116, 2147483648
      %v5307 = vxor.u32 %v5119, 2147483648
      %v5308 = vxor.u32 %v5124, 2147483648
      %v5309 = vxor.u32 %v5127, 2147483648
      %v5310 = vxor.u32 %v5132, 2147483648
      %v5311 = vxor.u32 %v5135, 2147483648
      %v5312 = vxor.u32 %v5140, 2147483648
      %v5313 = vxor.u32 %v5143, 2147483648
      %v5314 = vxor.u32 %v5148, 2147483648
      %v5315 = vxor.u32 %v5151, 2147483648
      %v5316 = vxor.u32 %v5156, 2147483648
      %v5317 = vxor.u32 %v5159, 2147483648
      %v5318 = vxor.u32 %v5164, 2147483648
      %v5319 = vxor.u32 %v5167, 2147483648
      %v5320 = vxor.u32 %v5172, 2147483648
      %v5321 = vxor.u32 %v5175, 2147483648
      %v5322 = vxor.u32 %v5180, 2147483648
      %v5323 = vxor.u32 %v5183, 2147483648
      %v5324 = vxor.u32 %v5188, 2147483648
      %v5325 = vxor.u32 %v5191, 2147483648
      %v5326 = vxor.u32 %v5196, 2147483648
      %v5327 = vxor.u32 %v5199, 2147483648
      %v5328 = vmul.f32 %v5202, 1.442695
      %v5329 = vpow.pop %v5328
      %v5330 = vmul.f32 %v5203, 1.442695
      %v5331 = vpow.pop %v5330
      %v5332 = vmul.f32 %v5204, 1.442695
      %v5333 = vpow.pop %v5332
      %v5334 = vmul.f32 %v5205, 1.442695
      %v5335 = vpow.pop %v5334
      %v5336 = vmul.f32 %v5206, 1.442695
      %v5337 = vpow.pop %v5336
      %v5338 = vmul.f32 %v5207, 1.442695
      %v5339 = vpow.pop %v5338
      %v5340 = vmul.f32 %v5208, 1.442695
      %v5341 = vpow.pop %v5340
      %v5342 = vmul.f32 %v5209, 1.442695
      %v5343 = vpow.pop %v5342
      %v5344 = vmul.f32 %v5210, 1.442695
      %v5345 = vpow.pop %v5344
      %v5346 = vmul.f32 %v5211, 1.442695
      %v5347 = vpow.pop %v5346
      %v5348 = vmul.f32 %v5212, 1.442695
      %v5349 = vpow.pop %v5348
      %v5350 = vmul.f32 %v5213, 1.442695
      %v5351 = vpow.pop %v5350
      %v5352 = vmul.f32 %v5214, 1.442695
      %v5353 = vpow.pop %v5352
      %v5354 = vmul.f32 %v5215, 1.442695
      %v5355 = vpow.pop %v5354
      %v5356 = vmul.f32 %v5216, 1.442695
      %v5357 = vpow.pop %v5356
      %v5358 = vmul.f32 %v5217, 1.442695
      %v5359 = vpow.pop %v5358
      %v5360 = vmul.f32 %v5218, 1.442695
      %v5361 = vpow.pop %v5360
      %v5362 = vmul.f32 %v5219, 1.442695
      %v5363 = vpow.pop %v5362
      %v5364 = vmul.f32 %v5220, 1.442695
      %v5365 = vpow.pop %v5364
      %v5366 = vmul.f32 %v5221, 1.442695
      %v5367 = vpow.pop %v5366
      %v5368 = vmul.f32 %v5222, 1.442695
      %v5369 = vpow.pop %v5368
      %v5370 = vmul.f32 %v5223, 1.442695
      %v5371 = vpow.pop %v5370
      %v5372 = vmul.f32 %v5224, 1.442695
      %v5373 = vpow.pop %v5372
      %v5374 = vmul.f32 %v5225, 1.442695
      %v5375 = vpow.pop %v5374
      %v5376 = vmul.f32 %v5226, 1.442695
      %v5377 = vpow.pop %v5376
      %v5378 = vmul.f32 %v5227, 1.442695
      %v5379 = vpow.pop %v5378
      %v5380 = vmul.f32 %v5228, 1.442695
      %v5381 = vpow.pop %v5380
      %v5382 = vmul.f32 %v5229, 1.442695
      %v5383 = vpow.pop %v5382
      %v5384 = vmul.f32 %v5230, 1.442695
      %v5385 = vpow.pop %v5384
      %v5386 = vmul.f32 %v5231, 1.442695
      %v5387 = vpow.pop %v5386
      %v5388 = vmul.f32 %v5232, 1.442695
      %v5389 = vpow.pop %v5388
      %v5390 = vmul.f32 %v5233, 1.442695
      %v5391 = vpow.pop %v5390
      %v5392 = vmul.f32 %v5234, 1.442695
      %v5393 = vpow.pop %v5392
      %v5394 = vmul.f32 %v5235, 1.442695
      %v5395 = vpow.pop %v5394
      %v5396 = vmul.f32 %v5236, 1.442695
      %v5397 = vpow.pop %v5396
      %v5398 = vmul.f32 %v5237, 1.442695
      %v5399 = vpow.pop %v5398
      %v5400 = vmul.f32 %v5238, 1.442695
      %v5401 = vpow.pop %v5400
      %v5402 = vmul.f32 %v5239, 1.442695
      %v5403 = vpow.pop %v5402
      %v5404 = vmul.f32 %v5240, 1.442695
      %v5405 = vpow.pop %v5404
      %v5406 = vmul.f32 %v5241, 1.442695
      %v5407 = vpow.pop %v5406
      %v5408 = vmul.f32 %v5242, 1.442695
      %v5409 = vpow.pop %v5408
      %v5410 = vmul.f32 %v5243, 1.442695
      %v5411 = vpow.pop %v5410
      %v5412 = vmul.f32 %v5244, 1.442695
      %v5413 = vpow.pop %v5412
      %v5414 = vmul.f32 %v5245, 1.442695
      %v5415 = vpow.pop %v5414
      %v5416 = vmul.f32 %v5246, 1.442695
      %v5417 = vpow.pop %v5416
      %v5418 = vmul.f32 %v5247, 1.442695
      %v5419 = vpow.pop %v5418
      %v5420 = vmul.f32 %v5248, 1.442695
      %v5421 = vpow.pop %v5420
      %v5422 = vmul.f32 %v5249, 1.442695
      %v5423 = vpow.pop %v5422
      %v5424 = vmul.f32 %v5250, 1.442695
      %v5425 = vpow.pop %v5424
      %v5426 = vmul.f32 %v5251, 1.442695
      %v5427 = vpow.pop %v5426
      %v5428 = vmul.f32 %v5252, 1.442695
      %v5429 = vpow.pop %v5428
      %v5430 = vmul.f32 %v5253, 1.442695
      %v5431 = vpow.pop %v5430
      %v5432 = vmul.f32 %v5254, 1.442695
      %v5433 = vpow.pop %v5432
      %v5434 = vmul.f32 %v5255, 1.442695
      %v5435 = vpow.pop %v5434
      %v5436 = vmul.f32 %v5256, 1.442695
      %v5437 = vpow.pop %v5436
      %v5438 = vmul.f32 %v5257, 1.442695
      %v5439 = vpow.pop %v5438
      %v5440 = vmul.f32 %v5258, 1.442695
      %v5441 = vpow.pop %v5440
      %v5442 = vmul.f32 %v5259, 1.442695
      %v5443 = vpow.pop %v5442
      %v5444 = vmul.f32 %v5260, 1.442695
      %v5445 = vpow.pop %v5444
      %v5446 = vmul.f32 %v5261, 1.442695
      %v5447 = vpow.pop %v5446
      %v5448 = vmul.f32 %v5262, 1.442695
      %v5449 = vpow.pop %v5448
      %v5450 = vmul.f32 %v5263, 1.442695
      %v5451 = vpow.pop %v5450
      %v5452 = vmul.f32 %v5264, 1.442695
      %v5453 = vpow.pop %v5452
      %v5454 = vmul.f32 %v5265, 1.442695
      %v5455 = vpow.pop %v5454
      %v5456 = vmul.f32 %v5266, 1.442695
      %v5457 = vpow.pop %v5456
      %v5458 = vmul.f32 %v5267, 1.442695
      %v5459 = vpow.pop %v5458
      %v5460 = vmul.f32 %v5268, 1.442695
      %v5461 = vpow.pop %v5460
      %v5462 = vmul.f32 %v5269, 1.442695
      %v5463 = vpow.pop %v5462
      %v5464 = vmul.f32 %v5270, 1.442695
      %v5465 = vpow.pop %v5464
      %v5466 = vmul.f32 %v5271, 1.442695
      %v5467 = vpow.pop %v5466
      %v5468 = vmul.f32 %v5272, 1.442695
      %v5469 = vpow.pop %v5468
      %v5470 = vmul.f32 %v5273, 1.442695
      %v5471 = vpow.pop %v5470
      %v5472 = vmul.f32 %v5274, 1.442695
      %v5473 = vpow.pop %v5472
      %v5474 = vmul.f32 %v5275, 1.442695
      %v5475 = vpow.pop %v5474
      %v5476 = vmul.f32 %v5276, 1.442695
      %v5477 = vpow.pop %v5476
      %v5478 = vmul.f32 %v5277, 1.442695
      %v5479 = vpow.pop %v5478
      %v5480 = vmul.f32 %v5278, 1.442695
      %v5481 = vpow.pop %v5480
      %v5482 = vmul.f32 %v5279, 1.442695
      %v5483 = vpow.pop %v5482
      %v5484 = vmul.f32 %v5280, 1.442695
      %v5485 = vpow.pop %v5484
      %v5486 = vmul.f32 %v5281, 1.442695
      %v5487 = vpow.pop %v5486
      %v5488 = vmul.f32 %v5282, 1.442695
      %v5489 = vpow.pop %v5488
      %v5490 = vmul.f32 %v5283, 1.442695
      %v5491 = vpow.pop %v5490
      %v5492 = vmul.f32 %v5284, 1.442695
      %v5493 = vpow.pop %v5492
      %v5494 = vmul.f32 %v5285, 1.442695
      %v5495 = vpow.pop %v5494
      %v5496 = vmul.f32 %v5286, 1.442695
      %v5497 = vpow.pop %v5496
      %v5498 = vmul.f32 %v5287, 1.442695
      %v5499 = vpow.pop %v5498
      %v5500 = vmul.f32 %v5288, 1.442695
      %v5501 = vpow.pop %v5500
      %v5502 = vmul.f32 %v5289, 1.442695
      %v5503 = vpow.pop %v5502
      %v5504 = vmul.f32 %v5290, 1.442695
      %v5505 = vpow.pop %v5504
      %v5506 = vmul.f32 %v5291, 1.442695
      %v5507 = vpow.pop %v5506
      %v5508 = vmul.f32 %v5292, 1.442695
      %v5509 = vpow.pop %v5508
      %v5510 = vmul.f32 %v5293, 1.442695
      %v5511 = vpow.pop %v5510
      %v5512 = vmul.f32 %v5294, 1.442695
      %v5513 = vpow.pop %v5512
      %v5514 = vmul.f32 %v5295, 1.442695
      %v5515 = vpow.pop %v5514
      %v5516 = vmul.f32 %v5296, 1.442695
      %v5517 = vpow.pop %v5516
      %v5518 = vmul.f32 %v5297, 1.442695
      %v5519 = vpow.pop %v5518
      %v5520 = vmul.f32 %v5298, 1.442695
      %v5521 = vpow.pop %v5520
      %v5522 = vmul.f32 %v5299, 1.442695
      %v5523 = vpow.pop %v5522
      %v5524 = vmul.f32 %v5300, 1.442695
      %v5525 = vpow.pop %v5524
      %v5526 = vmul.f32 %v5301, 1.442695
      %v5527 = vpow.pop %v5526
      %v5528 = vmul.f32 %v5302, 1.442695
      %v5529 = vpow.pop %v5528
      %v5530 = vmul.f32 %v5303, 1.442695
      %v5531 = vpow.pop %v5530
      %v5532 = vmul.f32 %v5304, 1.442695
      %v5533 = vpow.pop %v5532
      %v5534 = vmul.f32 %v5305, 1.442695
      %v5535 = vpow.pop %v5534
      %v5536 = vmul.f32 %v5306, 1.442695
      %v5537 = vpow.pop %v5536
      %v5538 = vmul.f32 %v5307, 1.442695
      %v5539 = vpow.pop %v5538
      %v5540 = vmul.f32 %v5308, 1.442695
      %v5541 = vpow.pop %v5540
      %v5542 = vmul.f32 %v5309, 1.442695
      %v5543 = vpow.pop %v5542
      %v5544 = vmul.f32 %v5310, 1.442695
      %v5545 = vpow.pop %v5544
      %v5546 = vmul.f32 %v5311, 1.442695
      %v5547 = vpow.pop %v5546
      %v5548 = vmul.f32 %v5312, 1.442695
      %v5549 = vpow.pop %v5548
      %v5550 = vmul.f32 %v5313, 1.442695
      %v5551 = vpow.pop %v5550
      %v5552 = vmul.f32 %v5314, 1.442695
      %v5553 = vpow.pop %v5552
      %v5554 = vmul.f32 %v5315, 1.442695
      %v5555 = vpow.pop %v5554
      %v5556 = vmul.f32 %v5316, 1.442695
      %v5557 = vpow.pop %v5556
      %v5558 = vmul.f32 %v5317, 1.442695
      %v5559 = vpow.pop %v5558
      %v5560 = vmul.f32 %v5318, 1.442695
      %v5561 = vpow.pop %v5560
      %v5562 = vmul.f32 %v5319, 1.442695
      %v5563 = vpow.pop %v5562
      %v5564 = vmul.f32 %v5320, 1.442695
      %v5565 = vpow.pop %v5564
      %v5566 = vmul.f32 %v5321, 1.442695
      %v5567 = vpow.pop %v5566
      %v5568 = vmul.f32 %v5322, 1.442695
      %v5569 = vpow.pop %v5568
      %v5570 = vmul.f32 %v5323, 1.442695
      %v5571 = vpow.pop %v5570
      %v5572 = vmul.f32 %v5324, 1.442695
      %v5573 = vpow.pop %v5572
      %v5574 = vmul.f32 %v5325, 1.442695
      %v5575 = vpow.pop %v5574
      %v5576 = vmul.f32 %v5326, 1.442695
      %v5577 = vpow.pop %v5576
      %v5578 = vmul.f32 %v5327, 1.442695
      %v5579 = vpow.pop %v5578
      %v5580 = vadd.f32 %v5329, 1.0
      %v5581 = vadd.f32 %v5331, 1.0
      %v5582 = vadd.f32 %v5333, 1.0
      %v5583 = vadd.f32 %v5335, 1.0
      %v5584 = vadd.f32 %v5337, 1.0
      %v5585 = vadd.f32 %v5339, 1.0
      %v5586 = vadd.f32 %v5341, 1.0
      %v5587 = vadd.f32 %v5343, 1.0
      %v5588 = vadd.f32 %v5345, 1.0
      %v5589 = vadd.f32 %v5347, 1.0
      %v5590 = vadd.f32 %v5349, 1.0
      %v5591 = vadd.f32 %v5351, 1.0
      %v5592 = vadd.f32 %v5353, 1.0
      %v5593 = vadd.f32 %v5355, 1.0
      %v5594 = vadd.f32 %v5357, 1.0
      %v5595 = vadd.f32 %v5359, 1.0
      %v5596 = vadd.f32 %v5361, 1.0
      %v5597 = vadd.f32 %v5363, 1.0
      %v5598 = vadd.f32 %v5365, 1.0
      %v5599 = vadd.f32 %v5367, 1.0
      %v5600 = vadd.f32 %v5369, 1.0
      %v5601 = vadd.f32 %v5371, 1.0
      %v5602 = vadd.f32 %v5373, 1.0
      %v5603 = vadd.f32 %v5375, 1.0
      %v5604 = vadd.f32 %v5377, 1.0
      %v5605 = vadd.f32 %v5379, 1.0
      %v5606 = vadd.f32 %v5381, 1.0
      %v5607 = vadd.f32 %v5383, 1.0
      %v5608 = vadd.f32 %v5385, 1.0
      %v5609 = vadd.f32 %v5387, 1.0
      %v5610 = vadd.f32 %v5389, 1.0
      %v5611 = vadd.f32 %v5391, 1.0
      %v5612 = vadd.f32 %v5393, 1.0
      %v5613 = vadd.f32 %v5395, 1.0
      %v5614 = vadd.f32 %v5397, 1.0
      %v5615 = vadd.f32 %v5399, 1.0
      %v5616 = vadd.f32 %v5401, 1.0
      %v5617 = vadd.f32 %v5403, 1.0
      %v5618 = vadd.f32 %v5405, 1.0
      %v5619 = vadd.f32 %v5407, 1.0
      %v5620 = vadd.f32 %v5409, 1.0
      %v5621 = vadd.f32 %v5411, 1.0
      %v5622 = vadd.f32 %v5413, 1.0
      %v5623 = vadd.f32 %v5415, 1.0
      %v5624 = vadd.f32 %v5417, 1.0
      %v5625 = vadd.f32 %v5419, 1.0
      %v5626 = vadd.f32 %v5421, 1.0
      %v5627 = vadd.f32 %v5423, 1.0
      %v5628 = vadd.f32 %v5425, 1.0
      %v5629 = vadd.f32 %v5427, 1.0
      %v5630 = vadd.f32 %v5429, 1.0
      %v5631 = vadd.f32 %v5431, 1.0
      %v5632 = vadd.f32 %v5433, 1.0
      %v5633 = vadd.f32 %v5435, 1.0
      %v5634 = vadd.f32 %v5437, 1.0
      %v5635 = vadd.f32 %v5439, 1.0
      %v5636 = vadd.f32 %v5441, 1.0
      %v5637 = vadd.f32 %v5443, 1.0
      %v5638 = vadd.f32 %v5445, 1.0
      %v5639 = vadd.f32 %v5447, 1.0
      %v5640 = vadd.f32 %v5449, 1.0
      %v5641 = vadd.f32 %v5451, 1.0
      %v5642 = vadd.f32 %v5453, 1.0
      %v5643 = vadd.f32 %v5455, 1.0
      %v5644 = vadd.f32 %v5457, 1.0
      %v5645 = vadd.f32 %v5459, 1.0
      %v5646 = vadd.f32 %v5461, 1.0
      %v5647 = vadd.f32 %v5463, 1.0
      %v5648 = vadd.f32 %v5465, 1.0
      %v5649 = vadd.f32 %v5467, 1.0
      %v5650 = vadd.f32 %v5469, 1.0
      %v5651 = vadd.f32 %v5471, 1.0
      %v5652 = vadd.f32 %v5473, 1.0
      %v5653 = vadd.f32 %v5475, 1.0
      %v5654 = vadd.f32 %v5477, 1.0
      %v5655 = vadd.f32 %v5479, 1.0
      %v5656 = vadd.f32 %v5481, 1.0
      %v5657 = vadd.f32 %v5483, 1.0
      %v5658 = vadd.f32 %v5485, 1.0
      %v5659 = vadd.f32 %v5487, 1.0
      %v5660 = vadd.f32 %v5489, 1.0
      %v5661 = vadd.f32 %v5491, 1.0
      %v5662 = vadd.f32 %v5493, 1.0
      %v5663 = vadd.f32 %v5495, 1.0
      %v5664 = vadd.f32 %v5497, 1.0
      %v5665 = vadd.f32 %v5499, 1.0
      %v5666 = vadd.f32 %v5501, 1.0
      %v5667 = vadd.f32 %v5503, 1.0
      %v5668 = vadd.f32 %v5505, 1.0
      %v5669 = vadd.f32 %v5507, 1.0
      %v5670 = vadd.f32 %v5509, 1.0
      %v5671 = vadd.f32 %v5511, 1.0
      %v5672 = vadd.f32 %v5513, 1.0
      %v5673 = vadd.f32 %v5515, 1.0
      %v5674 = vadd.f32 %v5517, 1.0
      %v5675 = vadd.f32 %v5519, 1.0
      %v5676 = vadd.f32 %v5521, 1.0
      %v5677 = vadd.f32 %v5523, 1.0
      %v5678 = vadd.f32 %v5525, 1.0
      %v5679 = vadd.f32 %v5527, 1.0
      %v5680 = vadd.f32 %v5529, 1.0
      %v5681 = vadd.f32 %v5531, 1.0
      %v5682 = vadd.f32 %v5533, 1.0
      %v5683 = vadd.f32 %v5535, 1.0
      %v5684 = vadd.f32 %v5537, 1.0
      %v5685 = vadd.f32 %v5539, 1.0
      %v5686 = vadd.f32 %v5541, 1.0
      %v5687 = vadd.f32 %v5543, 1.0
      %v5688 = vadd.f32 %v5545, 1.0
      %v5689 = vadd.f32 %v5547, 1.0
      %v5690 = vadd.f32 %v5549, 1.0
      %v5691 = vadd.f32 %v5551, 1.0
      %v5692 = vadd.f32 %v5553, 1.0
      %v5693 = vadd.f32 %v5555, 1.0
      %v5694 = vadd.f32 %v5557, 1.0
      %v5695 = vadd.f32 %v5559, 1.0
      %v5696 = vadd.f32 %v5561, 1.0
      %v5697 = vadd.f32 %v5563, 1.0
      %v5698 = vadd.f32 %v5565, 1.0
      %v5699 = vadd.f32 %v5567, 1.0
      %v5700 = vadd.f32 %v5569, 1.0
      %v5701 = vadd.f32 %v5571, 1.0
      %v5702 = vadd.f32 %v5573, 1.0
      %v5703 = vadd.f32 %v5575, 1.0
      %v5704 = vadd.f32 %v5577, 1.0
      %v5705 = vadd.f32 %v5579, 1.0
      %v5706 = vrcp.pop %v5580
      %v5707 = vmul.f32 1.0, %v5706
      %v5708 = vrcp.pop %v5581
      %v5709 = vmul.f32 1.0, %v5708
      %v5710 = vrcp.pop %v5582
      %v5711 = vmul.f32 1.0, %v5710
      %v5712 = vrcp.pop %v5583
      %v5713 = vmul.f32 1.0, %v5712
      %v5714 = vrcp.pop %v5584
      %v5715 = vmul.f32 1.0, %v5714
      %v5716 = vrcp.pop %v5585
      %v5717 = vmul.f32 1.0, %v5716
      %v5718 = vrcp.pop %v5586
      %v5719 = vmul.f32 1.0, %v5718
      %v5720 = vrcp.pop %v5587
      %v5721 = vmul.f32 1.0, %v5720
      %v5722 = vrcp.pop %v5588
      %v5723 = vmul.f32 1.0, %v5722
      %v5724 = vrcp.pop %v5589
      %v5725 = vmul.f32 1.0, %v5724
      %v5726 = vrcp.pop %v5590
      %v5727 = vmul.f32 1.0, %v5726
      %v5728 = vrcp.pop %v5591
      %v5729 = vmul.f32 1.0, %v5728
      %v5730 = vrcp.pop %v5592
      %v5731 = vmul.f32 1.0, %v5730
      %v5732 = vrcp.pop %v5593
      %v5733 = vmul.f32 1.0, %v5732
      %v5734 = vrcp.pop %v5594
      %v5735 = vmul.f32 1.0, %v5734
      %v5736 = vrcp.pop %v5595
      %v5737 = vmul.f32 1.0, %v5736
      %v5738 = vrcp.pop %v5596
      %v5739 = vmul.f32 1.0, %v5738
      %v5740 = vrcp.pop %v5597
      %v5741 = vmul.f32 1.0, %v5740
      %v5742 = vrcp.pop %v5598
      %v5743 = vmul.f32 1.0, %v5742
      %v5744 = vrcp.pop %v5599
      %v5745 = vmul.f32 1.0, %v5744
      %v5746 = vrcp.pop %v5600
      %v5747 = vmul.f32 1.0, %v5746
      %v5748 = vrcp.pop %v5601
      %v5749 = vmul.f32 1.0, %v5748
      %v5750 = vrcp.pop %v5602
      %v5751 = vmul.f32 1.0, %v5750
      %v5752 = vrcp.pop %v5603
      %v5753 = vmul.f32 1.0, %v5752
      %v5754 = vrcp.pop %v5604
      %v5755 = vmul.f32 1.0, %v5754
      %v5756 = vrcp.pop %v5605
      %v5757 = vmul.f32 1.0, %v5756
      %v5758 = vrcp.pop %v5606
      %v5759 = vmul.f32 1.0, %v5758
      %v5760 = vrcp.pop %v5607
      %v5761 = vmul.f32 1.0, %v5760
      %v5762 = vrcp.pop %v5608
      %v5763 = vmul.f32 1.0, %v5762
      %v5764 = vrcp.pop %v5609
      %v5765 = vmul.f32 1.0, %v5764
      %v5766 = vrcp.pop %v5610
      %v5767 = vmul.f32 1.0, %v5766
      %v5768 = vrcp.pop %v5611
      %v5769 = vmul.f32 1.0, %v5768
      %v5770 = vrcp.pop %v5612
      %v5771 = vmul.f32 1.0, %v5770
      %v5772 = vrcp.pop %v5613
      %v5773 = vmul.f32 1.0, %v5772
      %v5774 = vrcp.pop %v5614
      %v5775 = vmul.f32 1.0, %v5774
      %v5776 = vrcp.pop %v5615
      %v5777 = vmul.f32 1.0, %v5776
      %v5778 = vrcp.pop %v5616
      %v5779 = vmul.f32 1.0, %v5778
      %v5780 = vrcp.pop %v5617
      %v5781 = vmul.f32 1.0, %v5780
      %v5782 = vrcp.pop %v5618
      %v5783 = vmul.f32 1.0, %v5782
      %v5784 = vrcp.pop %v5619
      %v5785 = vmul.f32 1.0, %v5784
      %v5786 = vrcp.pop %v5620
      %v5787 = vmul.f32 1.0, %v5786
      %v5788 = vrcp.pop %v5621
      %v5789 = vmul.f32 1.0, %v5788
      %v5790 = vrcp.pop %v5622
      %v5791 = vmul.f32 1.0, %v5790
      %v5792 = vrcp.pop %v5623
      %v5793 = vmul.f32 1.0, %v5792
      %v5794 = vrcp.pop %v5624
      %v5795 = vmul.f32 1.0, %v5794
      %v5796 = vrcp.pop %v5625
      %v5797 = vmul.f32 1.0, %v5796
      %v5798 = vrcp.pop %v5626
      %v5799 = vmul.f32 1.0, %v5798
      %v5800 = vrcp.pop %v5627
      %v5801 = vmul.f32 1.0, %v5800
      %v5802 = vrcp.pop %v5628
      %v5803 = vmul.f32 1.0, %v5802
      %v5804 = vrcp.pop %v5629
      %v5805 = vmul.f32 1.0, %v5804
      %v5806 = vrcp.pop %v5630
      %v5807 = vmul.f32 1.0, %v5806
      %v5808 = vrcp.pop %v5631
      %v5809 = vmul.f32 1.0, %v5808
      %v5810 = vrcp.pop %v5632
      %v5811 = vmul.f32 1.0, %v5810
      %v5812 = vrcp.pop %v5633
      %v5813 = vmul.f32 1.0, %v5812
      %v5814 = vrcp.pop %v5634
      %v5815 = vmul.f32 1.0, %v5814
      %v5816 = vrcp.pop %v5635
      %v5817 = vmul.f32 1.0, %v5816
      %v5818 = vrcp.pop %v5636
      %v5819 = vmul.f32 1.0, %v5818
      %v5820 = vrcp.pop %v5637
      %v5821 = vmul.f32 1.0, %v5820
      %v5822 = vrcp.pop %v5638
      %v5823 = vmul.f32 1.0, %v5822
      %v5824 = vrcp.pop %v5639
      %v5825 = vmul.f32 1.0, %v5824
      %v5826 = vrcp.pop %v5640
      %v5827 = vmul.f32 1.0, %v5826
      %v5828 = vrcp.pop %v5641
      %v5829 = vmul.f32 1.0, %v5828
      %v5830 = vrcp.pop %v5642
      %v5831 = vmul.f32 1.0, %v5830
      %v5832 = vrcp.pop %v5643
      %v5833 = vmul.f32 1.0, %v5832
      %v5834 = vrcp.pop %v5644
      %v5835 = vmul.f32 1.0, %v5834
      %v5836 = vrcp.pop %v5645
      %v5837 = vmul.f32 1.0, %v5836
      %v5838 = vrcp.pop %v5646
      %v5839 = vmul.f32 1.0, %v5838
      %v5840 = vrcp.pop %v5647
      %v5841 = vmul.f32 1.0, %v5840
      %v5842 = vrcp.pop %v5648
      %v5843 = vmul.f32 1.0, %v5842
      %v5844 = vrcp.pop %v5649
      %v5845 = vmul.f32 1.0, %v5844
      %v5846 = vrcp.pop %v5650
      %v5847 = vmul.f32 1.0, %v5846
      %v5848 = vrcp.pop %v5651
      %v5849 = vmul.f32 1.0, %v5848
      %v5850 = vrcp.pop %v5652
      %v5851 = vmul.f32 1.0, %v5850
      %v5852 = vrcp.pop %v5653
      %v5853 = vmul.f32 1.0, %v5852
      %v5854 = vrcp.pop %v5654
      %v5855 = vmul.f32 1.0, %v5854
      %v5856 = vrcp.pop %v5655
      %v5857 = vmul.f32 1.0, %v5856
      %v5858 = vrcp.pop %v5656
      %v5859 = vmul.f32 1.0, %v5858
      %v5860 = vrcp.pop %v5657
      %v5861 = vmul.f32 1.0, %v5860
      %v5862 = vrcp.pop %v5658
      %v5863 = vmul.f32 1.0, %v5862
      %v5864 = vrcp.pop %v5659
      %v5865 = vmul.f32 1.0, %v5864
      %v5866 = vrcp.pop %v5660
      %v5867 = vmul.f32 1.0, %v5866
      %v5868 = vrcp.pop %v5661
      %v5869 = vmul.f32 1.0, %v5868
      %v5870 = vrcp.pop %v5662
      %v5871 = vmul.f32 1.0, %v5870
      %v5872 = vrcp.pop %v5663
      %v5873 = vmul.f32 1.0, %v5872
      %v5874 = vrcp.pop %v5664
      %v5875 = vmul.f32 1.0, %v5874
      %v5876 = vrcp.pop %v5665
      %v5877 = vmul.f32 1.0, %v5876
      %v5878 = vrcp.pop %v5666
      %v5879 = vmul.f32 1.0, %v5878
      %v5880 = vrcp.pop %v5667
      %v5881 = vmul.f32 1.0, %v5880
      %v5882 = vrcp.pop %v5668
      %v5883 = vmul.f32 1.0, %v5882
      %v5884 = vrcp.pop %v5669
      %v5885 = vmul.f32 1.0, %v5884
      %v5886 = vrcp.pop %v5670
      %v5887 = vmul.f32 1.0, %v5886
      %v5888 = vrcp.pop %v5671
      %v5889 = vmul.f32 1.0, %v5888
      %v5890 = vrcp.pop %v5672
      %v5891 = vmul.f32 1.0, %v5890
      %v5892 = vrcp.pop %v5673
      %v5893 = vmul.f32 1.0, %v5892
      %v5894 = vrcp.pop %v5674
      %v5895 = vmul.f32 1.0, %v5894
      %v5896 = vrcp.pop %v5675
      %v5897 = vmul.f32 1.0, %v5896
      %v5898 = vrcp.pop %v5676
      %v5899 = vmul.f32 1.0, %v5898
      %v5900 = vrcp.pop %v5677
      %v5901 = vmul.f32 1.0, %v5900
      %v5902 = vrcp.pop %v5678
      %v5903 = vmul.f32 1.0, %v5902
      %v5904 = vrcp.pop %v5679
      %v5905 = vmul.f32 1.0, %v5904
      %v5906 = vrcp.pop %v5680
      %v5907 = vmul.f32 1.0, %v5906
      %v5908 = vrcp.pop %v5681
      %v5909 = vmul.f32 1.0, %v5908
      %v5910 = vrcp.pop %v5682
      %v5911 = vmul.f32 1.0, %v5910
      %v5912 = vrcp.pop %v5683
      %v5913 = vmul.f32 1.0, %v5912
      %v5914 = vrcp.pop %v5684
      %v5915 = vmul.f32 1.0, %v5914
      %v5916 = vrcp.pop %v5685
      %v5917 = vmul.f32 1.0, %v5916
      %v5918 = vrcp.pop %v5686
      %v5919 = vmul.f32 1.0, %v5918
      %v5920 = vrcp.pop %v5687
      %v5921 = vmul.f32 1.0, %v5920
      %v5922 = vrcp.pop %v5688
      %v5923 = vmul.f32 1.0, %v5922
      %v5924 = vrcp.pop %v5689
      %v5925 = vmul.f32 1.0, %v5924
      %v5926 = vrcp.pop %v5690
      %v5927 = vmul.f32 1.0, %v5926
      %v5928 = vrcp.pop %v5691
      %v5929 = vmul.f32 1.0, %v5928
      %v5930 = vrcp.pop %v5692
      %v5931 = vmul.f32 1.0, %v5930
      %v5932 = vrcp.pop %v5693
      %v5933 = vmul.f32 1.0, %v5932
      %v5934 = vrcp.pop %v5694
      %v5935 = vmul.f32 1.0, %v5934
      %v5936 = vrcp.pop %v5695
      %v5937 = vmul.f32 1.0, %v5936
      %v5938 = vrcp.pop %v5696
      %v5939 = vmul.f32 1.0, %v5938
      %v5940 = vrcp.pop %v5697
      %v5941 = vmul.f32 1.0, %v5940
      %v5942 = vrcp.pop %v5698
      %v5943 = vmul.f32 1.0, %v5942
      %v5944 = vrcp.pop %v5699
      %v5945 = vmul.f32 1.0, %v5944
      %v5946 = vrcp.pop %v5700
      %v5947 = vmul.f32 1.0, %v5946
      %v5948 = vrcp.pop %v5701
      %v5949 = vmul.f32 1.0, %v5948
      %v5950 = vrcp.pop %v5702
      %v5951 = vmul.f32 1.0, %v5950
      %v5952 = vrcp.pop %v5703
      %v5953 = vmul.f32 1.0, %v5952
      %v5954 = vrcp.pop %v5704
      %v5955 = vmul.f32 1.0, %v5954
      %v5956 = vrcp.pop %v5705
      %v5957 = vmul.f32 1.0, %v5956
      %v5958 = vpack.c.bf16 %v5709, %v5707
      %v5959 = vpack.c.bf16 %v5713, %v5711
      %v5960 = vpack.c.bf16 %v5717, %v5715
      %v5961 = vpack.c.bf16 %v5721, %v5719
      %v5962 = vpack.c.bf16 %v5725, %v5723
      %v5963 = vpack.c.bf16 %v5729, %v5727
      %v5964 = vpack.c.bf16 %v5733, %v5731
      %v5965 = vpack.c.bf16 %v5737, %v5735
      %v5966 = vpack.c.bf16 %v5741, %v5739
      %v5967 = vpack.c.bf16 %v5745, %v5743
      %v5968 = vpack.c.bf16 %v5749, %v5747
      %v5969 = vpack.c.bf16 %v5753, %v5751
      %v5970 = vpack.c.bf16 %v5757, %v5755
      %v5971 = vpack.c.bf16 %v5761, %v5759
      %v5972 = vpack.c.bf16 %v5765, %v5763
      %v5973 = vpack.c.bf16 %v5769, %v5767
      %v5974 = vpack.c.bf16 %v5773, %v5771
      %v5975 = vpack.c.bf16 %v5777, %v5775
      %v5976 = vpack.c.bf16 %v5781, %v5779
      %v5977 = vpack.c.bf16 %v5785, %v5783
      %v5978 = vpack.c.bf16 %v5789, %v5787
      %v5979 = vpack.c.bf16 %v5793, %v5791
      %v5980 = vpack.c.bf16 %v5797, %v5795
      %v5981 = vpack.c.bf16 %v5801, %v5799
      %v5982 = vpack.c.bf16 %v5805, %v5803
      %v5983 = vpack.c.bf16 %v5809, %v5807
      %v5984 = vpack.c.bf16 %v5813, %v5811
      %v5985 = vpack.c.bf16 %v5817, %v5815
      %v5986 = vpack.c.bf16 %v5821, %v5819
      %v5987 = vpack.c.bf16 %v5825, %v5823
      %v5988 = vpack.c.bf16 %v5829, %v5827
      %v5989 = vpack.c.bf16 %v5833, %v5831
      %v5990 = vpack.c.bf16 %v5837, %v5835
      %v5991 = vpack.c.bf16 %v5841, %v5839
      %v5992 = vpack.c.bf16 %v5845, %v5843
      %v5993 = vpack.c.bf16 %v5849, %v5847
      %v5994 = vpack.c.bf16 %v5853, %v5851
      %v5995 = vpack.c.bf16 %v5857, %v5855
      %v5996 = vpack.c.bf16 %v5861, %v5859
      %v5997 = vpack.c.bf16 %v5865, %v5863
      %v5998 = vpack.c.bf16 %v5869, %v5867
      %v5999 = vpack.c.bf16 %v5873, %v5871
      %v6000 = vpack.c.bf16 %v5877, %v5875
      %v6001 = vpack.c.bf16 %v5881, %v5879
      %v6002 = vpack.c.bf16 %v5885, %v5883
      %v6003 = vpack.c.bf16 %v5889, %v5887
      %v6004 = vpack.c.bf16 %v5893, %v5891
      %v6005 = vpack.c.bf16 %v5897, %v5895
      %v6006 = vpack.c.bf16 %v5901, %v5899
      %v6007 = vpack.c.bf16 %v5905, %v5903
      %v6008 = vpack.c.bf16 %v5909, %v5907
      %v6009 = vpack.c.bf16 %v5913, %v5911
      %v6010 = vpack.c.bf16 %v5917, %v5915
      %v6011 = vpack.c.bf16 %v5921, %v5919
      %v6012 = vpack.c.bf16 %v5925, %v5923
      %v6013 = vpack.c.bf16 %v5929, %v5927
      %v6014 = vpack.c.bf16 %v5933, %v5931
      %v6015 = vpack.c.bf16 %v5937, %v5935
      %v6016 = vpack.c.bf16 %v5941, %v5939
      %v6017 = vpack.c.bf16 %v5945, %v5943
      %v6018 = vpack.c.bf16 %v5949, %v5947
      %v6019 = vpack.c.bf16 %v5953, %v5951
      %v6020 = vpack.c.bf16 %v5957, %v5955
      %v6084 = vunpack.c.l.b16 %v5958
      %v6085 = vunpack.c.h.b16 %v5958
      %v6086 = vunpack.c.l.b16 %v5959
      %v6087 = vunpack.c.h.b16 %v5959
      %v6088 = vunpack.c.l.b16 %v5960
      %v6089 = vunpack.c.h.b16 %v5960
      %v6090 = vunpack.c.l.b16 %v5961
      %v6091 = vunpack.c.h.b16 %v5961
      %v6092 = vunpack.c.l.b16 %v5962
      %v6093 = vunpack.c.h.b16 %v5962
      %v6094 = vunpack.c.l.b16 %v5963
      %v6095 = vunpack.c.h.b16 %v5963
      %v6096 = vunpack.c.l.b16 %v5964
      %v6097 = vunpack.c.h.b16 %v5964
      %v6098 = vunpack.c.l.b16 %v5965
      %v6099 = vunpack.c.h.b16 %v5965
      %v6100 = vunpack.c.l.b16 %v5966
      %v6101 = vunpack.c.h.b16 %v5966
      %v6102 = vunpack.c.l.b16 %v5967
      %v6103 = vunpack.c.h.b16 %v5967
      %v6104 = vunpack.c.l.b16 %v5968
      %v6105 = vunpack.c.h.b16 %v5968
      %v6106 = vunpack.c.l.b16 %v5969
      %v6107 = vunpack.c.h.b16 %v5969
      %v6108 = vunpack.c.l.b16 %v5970
      %v6109 = vunpack.c.h.b16 %v5970
      %v6110 = vunpack.c.l.b16 %v5971
      %v6111 = vunpack.c.h.b16 %v5971
      %v6112 = vunpack.c.l.b16 %v5972
      %v6113 = vunpack.c.h.b16 %v5972
      %v6114 = vunpack.c.l.b16 %v5973
      %v6115 = vunpack.c.h.b16 %v5973
      %v6116 = vunpack.c.l.b16 %v5974
      %v6117 = vunpack.c.h.b16 %v5974
      %v6118 = vunpack.c.l.b16 %v5975
      %v6119 = vunpack.c.h.b16 %v5975
      %v6120 = vunpack.c.l.b16 %v5976
      %v6121 = vunpack.c.h.b16 %v5976
      %v6122 = vunpack.c.l.b16 %v5977
      %v6123 = vunpack.c.h.b16 %v5977
      %v6124 = vunpack.c.l.b16 %v5978
      %v6125 = vunpack.c.h.b16 %v5978
      %v6126 = vunpack.c.l.b16 %v5979
      %v6127 = vunpack.c.h.b16 %v5979
      %v6128 = vunpack.c.l.b16 %v5980
      %v6129 = vunpack.c.h.b16 %v5980
      %v6130 = vunpack.c.l.b16 %v5981
      %v6131 = vunpack.c.h.b16 %v5981
      %v6132 = vunpack.c.l.b16 %v5982
      %v6133 = vunpack.c.h.b16 %v5982
      %v6134 = vunpack.c.l.b16 %v5983
      %v6135 = vunpack.c.h.b16 %v5983
      %v6136 = vunpack.c.l.b16 %v5984
      %v6137 = vunpack.c.h.b16 %v5984
      %v6138 = vunpack.c.l.b16 %v5985
      %v6139 = vunpack.c.h.b16 %v5985
      %v6140 = vunpack.c.l.b16 %v5986
      %v6141 = vunpack.c.h.b16 %v5986
      %v6142 = vunpack.c.l.b16 %v5987
      %v6143 = vunpack.c.h.b16 %v5987
      %v6144 = vunpack.c.l.b16 %v5988
      %v6145 = vunpack.c.h.b16 %v5988
      %v6146 = vunpack.c.l.b16 %v5989
      %v6147 = vunpack.c.h.b16 %v5989
      %v6148 = vunpack.c.l.b16 %v5990
      %v6149 = vunpack.c.h.b16 %v5990
      %v6150 = vunpack.c.l.b16 %v5991
      %v6151 = vunpack.c.h.b16 %v5991
      %v6152 = vunpack.c.l.b16 %v5992
      %v6153 = vunpack.c.h.b16 %v5992
      %v6154 = vunpack.c.l.b16 %v5993
      %v6155 = vunpack.c.h.b16 %v5993
      %v6156 = vunpack.c.l.b16 %v5994
      %v6157 = vunpack.c.h.b16 %v5994
      %v6158 = vunpack.c.l.b16 %v5995
      %v6159 = vunpack.c.h.b16 %v5995
      %v6160 = vunpack.c.l.b16 %v5996
      %v6161 = vunpack.c.h.b16 %v5996
      %v6162 = vunpack.c.l.b16 %v5997
      %v6163 = vunpack.c.h.b16 %v5997
      %v6164 = vunpack.c.l.b16 %v5998
      %v6165 = vunpack.c.h.b16 %v5998
      %v6166 = vunpack.c.l.b16 %v5999
      %v6167 = vunpack.c.h.b16 %v5999
      %v6168 = vunpack.c.l.b16 %v6000
      %v6169 = vunpack.c.h.b16 %v6000
      %v6170 = vunpack.c.l.b16 %v6001
      %v6171 = vunpack.c.h.b16 %v6001
      %v6172 = vunpack.c.l.b16 %v6002
      %v6173 = vunpack.c.h.b16 %v6002
      %v6174 = vunpack.c.l.b16 %v6003
      %v6175 = vunpack.c.h.b16 %v6003
      %v6176 = vunpack.c.l.b16 %v6004
      %v6177 = vunpack.c.h.b16 %v6004
      %v6178 = vunpack.c.l.b16 %v6005
      %v6179 = vunpack.c.h.b16 %v6005
      %v6180 = vunpack.c.l.b16 %v6006
      %v6181 = vunpack.c.h.b16 %v6006
      %v6182 = vunpack.c.l.b16 %v6007
      %v6183 = vunpack.c.h.b16 %v6007
      %v6184 = vunpack.c.l.b16 %v6008
      %v6185 = vunpack.c.h.b16 %v6008
      %v6186 = vunpack.c.l.b16 %v6009
      %v6187 = vunpack.c.h.b16 %v6009
      %v6188 = vunpack.c.l.b16 %v6010
      %v6189 = vunpack.c.h.b16 %v6010
      %v6190 = vunpack.c.l.b16 %v6011
      %v6191 = vunpack.c.h.b16 %v6011
      %v6192 = vunpack.c.l.b16 %v6012
      %v6193 = vunpack.c.h.b16 %v6012
      %v6194 = vunpack.c.l.b16 %v6013
      %v6195 = vunpack.c.h.b16 %v6013
      %v6196 = vunpack.c.l.b16 %v6014
      %v6197 = vunpack.c.h.b16 %v6014
      %v6198 = vunpack.c.l.b16 %v6015
      %v6199 = vunpack.c.h.b16 %v6015
      %v6200 = vunpack.c.l.b16 %v6016
      %v6201 = vunpack.c.h.b16 %v6016
      %v6202 = vunpack.c.l.b16 %v6017
      %v6203 = vunpack.c.h.b16 %v6017
      %v6204 = vunpack.c.l.b16 %v6018
      %v6205 = vunpack.c.h.b16 %v6018
      %v6206 = vunpack.c.l.b16 %v6019
      %v6207 = vunpack.c.h.b16 %v6019
      %v6208 = vunpack.c.l.b16 %v6020
      %v6209 = vunpack.c.h.b16 %v6020
      %v6210 = vpack.c.b16 %v6084, %v6084
      %v6211 = vpack.c.b16 %v6085, %v6085
      %v6212 = vpack.c.b16 %v6086, %v6086
      %v6213 = vpack.c.b16 %v6087, %v6087
      %v6214 = vpack.c.b16 %v6088, %v6088
      %v6215 = vpack.c.b16 %v6089, %v6089
      %v6216 = vpack.c.b16 %v6090, %v6090
      %v6217 = vpack.c.b16 %v6091, %v6091
      %v6218 = vpack.c.b16 %v6092, %v6092
      %v6219 = vpack.c.b16 %v6093, %v6093
      %v6220 = vpack.c.b16 %v6094, %v6094
      %v6221 = vpack.c.b16 %v6095, %v6095
      %v6222 = vpack.c.b16 %v6096, %v6096
      %v6223 = vpack.c.b16 %v6097, %v6097
      %v6224 = vpack.c.b16 %v6098, %v6098
      %v6225 = vpack.c.b16 %v6099, %v6099
      %v6226 = vpack.c.b16 %v6100, %v6100
      %v6227 = vpack.c.b16 %v6101, %v6101
      %v6228 = vpack.c.b16 %v6102, %v6102
      %v6229 = vpack.c.b16 %v6103, %v6103
      %v6230 = vpack.c.b16 %v6104, %v6104
      %v6231 = vpack.c.b16 %v6105, %v6105
      %v6232 = vpack.c.b16 %v6106, %v6106
      %v6233 = vpack.c.b16 %v6107, %v6107
      %v6234 = vpack.c.b16 %v6108, %v6108
      %v6235 = vpack.c.b16 %v6109, %v6109
      %v6236 = vpack.c.b16 %v6110, %v6110
      %v6237 = vpack.c.b16 %v6111, %v6111
      %v6238 = vpack.c.b16 %v6112, %v6112
      %v6239 = vpack.c.b16 %v6113, %v6113
      %v6240 = vpack.c.b16 %v6114, %v6114
      %v6241 = vpack.c.b16 %v6115, %v6115
      %v6242 = vpack.c.b16 %v6116, %v6116
      %v6243 = vpack.c.b16 %v6117, %v6117
      %v6244 = vpack.c.b16 %v6118, %v6118
      %v6245 = vpack.c.b16 %v6119, %v6119
      %v6246 = vpack.c.b16 %v6120, %v6120
      %v6247 = vpack.c.b16 %v6121, %v6121
      %v6248 = vpack.c.b16 %v6122, %v6122
      %v6249 = vpack.c.b16 %v6123, %v6123
      %v6250 = vpack.c.b16 %v6124, %v6124
      %v6251 = vpack.c.b16 %v6125, %v6125
      %v6252 = vpack.c.b16 %v6126, %v6126
      %v6253 = vpack.c.b16 %v6127, %v6127
      %v6254 = vpack.c.b16 %v6128, %v6128
      %v6255 = vpack.c.b16 %v6129, %v6129
      %v6256 = vpack.c.b16 %v6130, %v6130
      %v6257 = vpack.c.b16 %v6131, %v6131
      %v6258 = vpack.c.b16 %v6132, %v6132
      %v6259 = vpack.c.b16 %v6133, %v6133
      %v6260 = vpack.c.b16 %v6134, %v6134
      %v6261 = vpack.c.b16 %v6135, %v6135
      %v6262 = vpack.c.b16 %v6136, %v6136
      %v6263 = vpack.c.b16 %v6137, %v6137
      %v6264 = vpack.c.b16 %v6138, %v6138
      %v6265 = vpack.c.b16 %v6139, %v6139
      %v6266 = vpack.c.b16 %v6140, %v6140
      %v6267 = vpack.c.b16 %v6141, %v6141
      %v6268 = vpack.c.b16 %v6142, %v6142
      %v6269 = vpack.c.b16 %v6143, %v6143
      %v6270 = vpack.c.b16 %v6144, %v6144
      %v6271 = vpack.c.b16 %v6145, %v6145
      %v6272 = vpack.c.b16 %v6146, %v6146
      %v6273 = vpack.c.b16 %v6147, %v6147
      %v6274 = vpack.c.b16 %v6148, %v6148
      %v6275 = vpack.c.b16 %v6149, %v6149
      %v6276 = vpack.c.b16 %v6150, %v6150
      %v6277 = vpack.c.b16 %v6151, %v6151
      %v6278 = vpack.c.b16 %v6152, %v6152
      %v6279 = vpack.c.b16 %v6153, %v6153
      %v6280 = vpack.c.b16 %v6154, %v6154
      %v6281 = vpack.c.b16 %v6155, %v6155
      %v6282 = vpack.c.b16 %v6156, %v6156
      %v6283 = vpack.c.b16 %v6157, %v6157
      %v6284 = vpack.c.b16 %v6158, %v6158
      %v6285 = vpack.c.b16 %v6159, %v6159
      %v6286 = vpack.c.b16 %v6160, %v6160
      %v6287 = vpack.c.b16 %v6161, %v6161
      %v6288 = vpack.c.b16 %v6162, %v6162
      %v6289 = vpack.c.b16 %v6163, %v6163
      %v6290 = vpack.c.b16 %v6164, %v6164
      %v6291 = vpack.c.b16 %v6165, %v6165
      %v6292 = vpack.c.b16 %v6166, %v6166
      %v6293 = vpack.c.b16 %v6167, %v6167
      %v6294 = vpack.c.b16 %v6168, %v6168
      %v6295 = vpack.c.b16 %v6169, %v6169
      %v6296 = vpack.c.b16 %v6170, %v6170
      %v6297 = vpack.c.b16 %v6171, %v6171
      %v6298 = vpack.c.b16 %v6172, %v6172
      %v6299 = vpack.c.b16 %v6173, %v6173
      %v6300 = vpack.c.b16 %v6174, %v6174
      %v6301 = vpack.c.b16 %v6175, %v6175
      %v6302 = vpack.c.b16 %v6176, %v6176
      %v6303 = vpack.c.b16 %v6177, %v6177
      %v6304 = vpack.c.b16 %v6178, %v6178
      %v6305 = vpack.c.b16 %v6179, %v6179
      %v6306 = vpack.c.b16 %v6180, %v6180
      %v6307 = vpack.c.b16 %v6181, %v6181
      %v6308 = vpack.c.b16 %v6182, %v6182
      %v6309 = vpack.c.b16 %v6183, %v6183
      %v6310 = vpack.c.b16 %v6184, %v6184
      %v6311 = vpack.c.b16 %v6185, %v6185
      %v6312 = vpack.c.b16 %v6186, %v6186
      %v6313 = vpack.c.b16 %v6187, %v6187
      %v6314 = vpack.c.b16 %v6188, %v6188
      %v6315 = vpack.c.b16 %v6189, %v6189
      %v6316 = vpack.c.b16 %v6190, %v6190
      %v6317 = vpack.c.b16 %v6191, %v6191
      %v6318 = vpack.c.b16 %v6192, %v6192
      %v6319 = vpack.c.b16 %v6193, %v6193
      %v6320 = vpack.c.b16 %v6194, %v6194
      %v6321 = vpack.c.b16 %v6195, %v6195
      %v6322 = vpack.c.b16 %v6196, %v6196
      %v6323 = vpack.c.b16 %v6197, %v6197
      %v6324 = vpack.c.b16 %v6198, %v6198
      %v6325 = vpack.c.b16 %v6199, %v6199
      %v6326 = vpack.c.b16 %v6200, %v6200
      %v6327 = vpack.c.b16 %v6201, %v6201
      %v6328 = vpack.c.b16 %v6202, %v6202
      %v6329 = vpack.c.b16 %v6203, %v6203
      %v6330 = vpack.c.b16 %v6204, %v6204
      %v6331 = vpack.c.b16 %v6205, %v6205
      %v6332 = vpack.c.b16 %v6206, %v6206
      %v6333 = vpack.c.b16 %v6207, %v6207
      %v6334 = vpack.c.b16 %v6208, %v6208
      %v6335 = vpack.c.b16 %v6209, %v6209
      %6462 = vst [vmem:[%s253] sm:$0xf] %v6210
      %6463 = vst [vmem:[%s253 + $0x4] sm:$0xf] %v6211
      %6464 = vst [vmem:[%s253 + $0x8] sm:$0xf] %v6212
      %6465 = vst [vmem:[%s253 + $0xc] sm:$0xf] %v6213
      %6466 = vst [vmem:[%s253 + $0x10] sm:$0xf] %v6214
      %6467 = vst [vmem:[%s253 + $0x14] sm:$0xf] %v6215
      %6468 = vst [vmem:[%s253 + $0x18] sm:$0xf] %v6216
      %6469 = vst [vmem:[%s253 + $0x1c] sm:$0xf] %v6217
      %6470 = vst [vmem:[%s253 + $0x20] sm:$0xf] %v6218
      %6471 = vst [vmem:[%s253 + $0x24] sm:$0xf] %v6219
      %6472 = vst [vmem:[%s253 + $0x28] sm:$0xf] %v6220
      %6473 = vst [vmem:[%s253 + $0x2c] sm:$0xf] %v6221
      %6474 = vst [vmem:[%s253 + $0x30] sm:$0xf] %v6222
      %6475 = vst [vmem:[%s253 + $0x34] sm:$0xf] %v6223
      %6476 = vst [vmem:[%s253 + $0x38] sm:$0xf] %v6224
      %6477 = vst [vmem:[%s253 + $0x3c] sm:$0xf] %v6225
      %6478 = vst [vmem:[%s253 + $0x40] sm:$0xf] %v6226
      %6479 = vst [vmem:[%s253 + $0x44] sm:$0xf] %v6227
      %6480 = vst [vmem:[%s253 + $0x48] sm:$0xf] %v6228
      %6481 = vst [vmem:[%s253 + $0x4c] sm:$0xf] %v6229
      %6482 = vst [vmem:[%s253 + $0x50] sm:$0xf] %v6230
      %6483 = vst [vmem:[%s253 + $0x54] sm:$0xf] %v6231
      %6484 = vst [vmem:[%s253 + $0x58] sm:$0xf] %v6232
      %6485 = vst [vmem:[%s253 + $0x5c] sm:$0xf] %v6233
      %6486 = vst [vmem:[%s253 + $0x60] sm:$0xf] %v6234
      %6487 = vst [vmem:[%s253 + $0x64] sm:$0xf] %v6235
      %6488 = vst [vmem:[%s253 + $0x68] sm:$0xf] %v6236
      %6489 = vst [vmem:[%s253 + $0x6c] sm:$0xf] %v6237
      %6490 = vst [vmem:[%s253 + $0x70] sm:$0xf] %v6238
      %6491 = vst [vmem:[%s253 + $0x74] sm:$0xf] %v6239
      %6492 = vst [vmem:[%s253 + $0x78] sm:$0xf] %v6240
      %6493 = vst [vmem:[%s253 + $0x7c] sm:$0xf] %v6241
      %6494 = vst [vmem:[%s253 + $0x80] sm:$0xf] %v6242
      %6495 = vst [vmem:[%s253 + $0x84] sm:$0xf] %v6243
      %6496 = vst [vmem:[%s253 + $0x88] sm:$0xf] %v6244
      %6497 = vst [vmem:[%s253 + $0x8c] sm:$0xf] %v6245
      %6498 = vst [vmem:[%s253 + $0x90] sm:$0xf] %v6246
      %6499 = vst [vmem:[%s253 + $0x94] sm:$0xf] %v6247
      %6500 = vst [vmem:[%s253 + $0x98] sm:$0xf] %v6248
      %6501 = vst [vmem:[%s253 + $0x9c] sm:$0xf] %v6249
      %6502 = vst [vmem:[%s253 + $0xa0] sm:$0xf] %v6250
      %6503 = vst [vmem:[%s253 + $0xa4] sm:$0xf] %v6251
      %6504 = vst [vmem:[%s253 + $0xa8] sm:$0xf] %v6252
      %6505 = vst [vmem:[%s253 + $0xac] sm:$0xf] %v6253
      %6506 = vst [vmem:[%s253 + $0xb0] sm:$0xf] %v6254
      %6507 = vst [vmem:[%s253 + $0xb4] sm:$0xf] %v6255
      %6508 = vst [vmem:[%s253 + $0xb8] sm:$0xf] %v6256
      %6509 = vst [vmem:[%s253 + $0xbc] sm:$0xf] %v6257
      %6510 = vst [vmem:[%s253 + $0xc0] sm:$0xf] %v6258
      %6511 = vst [vmem:[%s253 + $0xc4] sm:$0xf] %v6259
      %6512 = vst [vmem:[%s253 + $0xc8] sm:$0xf] %v6260
      %6513 = vst [vmem:[%s253 + $0xcc] sm:$0xf] %v6261
      %6514 = vst [vmem:[%s253 + $0xd0] sm:$0xf] %v6262
      %6515 = vst [vmem:[%s253 + $0xd4] sm:$0xf] %v6263
      %6516 = vst [vmem:[%s253 + $0xd8] sm:$0xf] %v6264
      %6517 = vst [vmem:[%s253 + $0xdc] sm:$0xf] %v6265
      %6518 = vst [vmem:[%s253 + $0xe0] sm:$0xf] %v6266
      %6519 = vst [vmem:[%s253 + $0xe4] sm:$0xf] %v6267
      %6520 = vst [vmem:[%s253 + $0xe8] sm:$0xf] %v6268
      %6521 = vst [vmem:[%s253 + $0xec] sm:$0xf] %v6269
      %6522 = vst [vmem:[%s253 + $0xf0] sm:$0xf] %v6270
      %6523 = vst [vmem:[%s253 + $0xf4] sm:$0xf] %v6271
      %6524 = vst [vmem:[%s253 + $0xf8] sm:$0xf] %v6272
      %6525 = vst [vmem:[%s253 + $0xfc] sm:$0xf] %v6273
      %6526 = vst [vmem:[%s253 + $0x100] sm:$0xf] %v6274
      %6527 = vst [vmem:[%s253 + $0x104] sm:$0xf] %v6275
      %6528 = vst [vmem:[%s253 + $0x108] sm:$0xf] %v6276
      %6529 = vst [vmem:[%s253 + $0x10c] sm:$0xf] %v6277
      %6530 = vst [vmem:[%s253 + $0x110] sm:$0xf] %v6278
      %6531 = vst [vmem:[%s253 + $0x114] sm:$0xf] %v6279
      %6532 = vst [vmem:[%s253 + $0x118] sm:$0xf] %v6280
      %6533 = vst [vmem:[%s253 + $0x11c] sm:$0xf] %v6281
      %6534 = vst [vmem:[%s253 + $0x120] sm:$0xf] %v6282
      %6535 = vst [vmem:[%s253 + $0x124] sm:$0xf] %v6283
      %6536 = vst [vmem:[%s253 + $0x128] sm:$0xf] %v6284
      %6537 = vst [vmem:[%s253 + $0x12c] sm:$0xf] %v6285
      %6538 = vst [vmem:[%s253 + $0x130] sm:$0xf] %v6286
      %6539 = vst [vmem:[%s253 + $0x134] sm:$0xf] %v6287
      %6540 = vst [vmem:[%s253 + $0x138] sm:$0xf] %v6288
      %6541 = vst [vmem:[%s253 + $0x13c] sm:$0xf] %v6289
      %6542 = vst [vmem:[%s253 + $0x140] sm:$0xf] %v6290
      %6543 = vst [vmem:[%s253 + $0x144] sm:$0xf] %v6291
      %6544 = vst [vmem:[%s253 + $0x148] sm:$0xf] %v6292
      %6545 = vst [vmem:[%s253 + $0x14c] sm:$0xf] %v6293
      %6546 = vst [vmem:[%s253 + $0x150] sm:$0xf] %v6294
      %6547 = vst [vmem:[%s253 + $0x154] sm:$0xf] %v6295
      %6548 = vst [vmem:[%s253 + $0x158] sm:$0xf] %v6296
      %6549 = vst [vmem:[%s253 + $0x15c] sm:$0xf] %v6297
      %6550 = vst [vmem:[%s253 + $0x160] sm:$0xf] %v6298
      %6551 = vst [vmem:[%s253 + $0x164] sm:$0xf] %v6299
      %6552 = vst [vmem:[%s253 + $0x168] sm:$0xf] %v6300
      %6553 = vst [vmem:[%s253 + $0x16c] sm:$0xf] %v6301
      %6554 = vst [vmem:[%s253 + $0x170] sm:$0xf] %v6302
      %6555 = vst [vmem:[%s253 + $0x174] sm:$0xf] %v6303
      %6556 = vst [vmem:[%s253 + $0x178] sm:$0xf] %v6304
      %6557 = vst [vmem:[%s253 + $0x17c] sm:$0xf] %v6305
      %6558 = vst [vmem:[%s253 + $0x180] sm:$0xf] %v6306
      %6559 = vst [vmem:[%s253 + $0x184] sm:$0xf] %v6307
      %6560 = vst [vmem:[%s253 + $0x188] sm:$0xf] %v6308
      %6561 = vst [vmem:[%s253 + $0x18c] sm:$0xf] %v6309
      %6562 = vst [vmem:[%s253 + $0x190] sm:$0xf] %v6310
      %6563 = vst [vmem:[%s253 + $0x194] sm:$0xf] %v6311
      %6564 = vst [vmem:[%s253 + $0x198] sm:$0xf] %v6312
      %6565 = vst [vmem:[%s253 + $0x19c] sm:$0xf] %v6313
      %6566 = vst [vmem:[%s253 + $0x1a0] sm:$0xf] %v6314
      %6567 = vst [vmem:[%s253 + $0x1a4] sm:$0xf] %v6315
      %6568 = vst [vmem:[%s253 + $0x1a8] sm:$0xf] %v6316
      %6569 = vst [vmem:[%s253 + $0x1ac] sm:$0xf] %v6317
      %6570 = vst [vmem:[%s253 + $0x1b0] sm:$0xf] %v6318
      %6571 = vst [vmem:[%s253 + $0x1b4] sm:$0xf] %v6319
      %6572 = vst [vmem:[%s253 + $0x1b8] sm:$0xf] %v6320
      %6573 = vst [vmem:[%s253 + $0x1bc] sm:$0xf] %v6321
      %6574 = vst [vmem:[%s253 + $0x1c0] sm:$0xf] %v6322
      %6575 = vst [vmem:[%s253 + $0x1c4] sm:$0xf] %v6323
      %6576 = vst [vmem:[%s253 + $0x1c8] sm:$0xf] %v6324
      %6577 = vst [vmem:[%s253 + $0x1cc] sm:$0xf] %v6325
      %6578 = vst [vmem:[%s253 + $0x1d0] sm:$0xf] %v6326
      %6579 = vst [vmem:[%s253 + $0x1d4] sm:$0xf] %v6327
      %6580 = vst [vmem:[%s253 + $0x1d8] sm:$0xf] %v6328
      %6581 = vst [vmem:[%s253 + $0x1dc] sm:$0xf] %v6329
      %6582 = vst [vmem:[%s253 + $0x1e0] sm:$0xf] %v6330
      %6583 = vst [vmem:[%s253 + $0x1e4] sm:$0xf] %v6331
      %6584 = vst [vmem:[%s253 + $0x1e8] sm:$0xf] %v6332
      %6585 = vst [vmem:[%s253 + $0x1ec] sm:$0xf] %v6333
      %6586 = vst [vmem:[%s253 + $0x1f0] sm:$0xf] %v6334
      %6587 = vst [vmem:[%s253 + $0x1f4] sm:$0xf] %v6335
      %s6588 = smul.u32 126, %s17
      %p6589 = scmp.lt.s32.totalorder %s6588, 251
      %s6590 = scalar_select %p6589, %s6588, 251
      %s6591 = smul.addr %s6590, 4
      %s6592 = scalar_lea.vmem %s6, %s6591
      // Predicated region
      $region45: #{refract_network_forward.1} parent=43 // pred_check
        %p6593 = pneg %p166
      $region46: #{refract_network_forward.1} parent=43 // pred_check_branch
        %6595 = sbr.rel (%p6593) target = $region48
      $region47: #{refract_network_forward.1} parent=43 // pred_region
        %s6596 = smul.u32 126, %s17
      $region48: #{refract_network_forward.1} parent=43 // pred_fallthru
        _
    $region44: #{refract_network_forward.1} parent=5 // pred_fallthru
      _
    %p6597 = scmp.le.s32.totalorder 2, %s12
    // Predicated region
    $region49: #{refract_network_forward.1} parent=5 // pred_check
      %p6598 = pneg %p6597
    $region50: #{refract_network_forward.1} parent=5 // pred_check_branch
      %6600 = sbr.rel (%p6598) target = $region52
    $region51: #{refract_network_forward.1} parent=5 // pred_region
      %s6601 = ssub.s32 %s12, 2
      // Predicated region
      $region53: #{refract_network_forward.1} parent=51 // pred_check
        %p6602 = pneg %p172
      $region54: #{refract_network_forward.1} parent=51 // pred_check_branch
        %6604 = sbr.rel (%p6602) target = $region56
      $region55: #{refract_network_forward.1} parent=51 // pred_region
        %s6605 = smul.u32 126, %s18
        %p6606 = scmp.lt.s32.totalorder %s6605, 251
        %s6607 = scalar_select %p6606, %s6605, 251
        %s6608 = smul.addr %s6607, 4
        %s6609 = scalar_lea.vmem %s6, %s6608
      $region56: #{refract_network_forward.1} parent=51 // pred_fallthru
        _
    $region52: #{refract_network_forward.1} parent=5 // pred_fallthru
      _
  $region6: #{refract_network_forward.1} parent=0 // loop_footer
    %s16 = sadd.s32 1, %s12
  $region7: #{refract_network_forward.1} parent=0 // loop_footer_branch
    %11 = sbr.rel target = $region3
  $region8: #{refract_network_forward.1} parent=0 // loop_exit
    _

</llo_original>
